<compile_context>
chip_gen: v7x
topology: tpu7x:2x2x1
jax: 0.10.0
libtpu: 0.0.40
codegen_flags: <defaults>
</compile_context>

<pallas_src>
import functools

import numpy as np
import jax
import jax.numpy as jnp
from jax import lax
from jax.experimental import pallas as pl
from jax.experimental.pallas import tpu as pltpu


# ----------------------------- param setup (glue) -----------------------------

def spectral_normalize(w, n_iters=50):
    """Divide conv weight by its spectral norm (weight viewed as (out, -1))."""
    wm = w.reshape(w.shape[0], -1)
    u = jnp.ones((wm.shape[0],), jnp.float32)
    u = u / (jnp.linalg.norm(u) + 1e-12)
    v = wm.T @ u
    v = v / (jnp.linalg.norm(v) + 1e-12)
    for _ in range(n_iters):
        v = wm.T @ u
        v = v / (jnp.linalg.norm(v) + 1e-12)
        u = wm @ v
        u = u / (jnp.linalg.norm(u) + 1e-12)
    sigma = u @ (wm @ v)
    return w / sigma


def extract_patches_s2(x, k=3, pad=1):
    """im2col for stride-2, pad-1, 3x3 conv.  x: (N,C,H,W) -> (N, OH*OW, C*k*k).

    Flattened patch order is (C, kh, kw), matching W.reshape(O, C*k*k)."""
    N, C, H, W = x.shape
    OH, OW = H // 2, W // 2
    xp = jnp.pad(x, ((0, 0), (0, 0), (pad, pad), (pad, pad)))
    slices = []
    for kh in range(k):
        for kw in range(k):
            slices.append(xp[:, :, kh:kh + 2 * OH:2, kw:kw + 2 * OW:2])
    st = jnp.stack(slices, axis=2)            # (N, C, k*k, OH, OW)
    st = st.transpose(0, 3, 4, 1, 2)          # (N, OH, OW, C, k*k)
    return st.reshape(N, OH * OW, C * k * k)


# --------------------------- static geometry constants -------------------------

def _conv2_gather_matrix(oh1, ow1, oh2, ow2):
    """0/1 matrix G (HW1, HW2*9): G[p, q*9+t]=1 iff input pixel p is the tap-t
    neighbour of output pixel q for a 3x3 / stride-2 / zero-pad-1 conv."""
    hw1, hw2 = oh1 * ow1, oh2 * ow2
    g = np.zeros((hw1, hw2 * 9), np.float32)
    for oh in range(oh2):
        for ow in range(ow2):
            q = oh * ow2 + ow
            for kh in range(3):
                for kw in range(3):
                    t = kh * 3 + kw
                    ih, iw = 2 * oh - 1 + kh, 2 * ow - 1 + kw
                    if 0 <= ih < oh1 and 0 <= iw < ow1:
                        g[ih * ow1 + iw, q * 9 + t] = 1.0
    return jnp.asarray(g)


def _tap_pool_matrix(hw2):
    """0/1 matrix P (HW2*9, HW2): sums the 9 tap columns belonging to each q."""
    p = np.zeros((hw2 * 9, hw2), np.float32)
    for q in range(hw2):
        p[q * 9:(q + 1) * 9, q] = 1.0
    return jnp.asarray(p)


def _reflect_tap_basis(size):
    """R (HW, HW, 9): R[p, q, t]=1 iff reflection-pad-1 tap t of output pixel q
    reads input pixel p on a (size, size) single-channel plane."""
    hw = size * size

    def refl(i):
        if i < 0:
            return -i
        if i > size - 1:
            return 2 * (size - 1) - i
        return i

    r = np.zeros((hw, hw, 9), np.float32)
    for oh in range(size):
        for ow in range(size):
            q = oh * size + ow
            for kh in range(3):
                for kw in range(3):
                    t = kh * 3 + kw
                    ih, iw = refl(oh - 1 + kh), refl(ow - 1 + kw)
                    r[ih * size + iw, q, t] = 1.0
    return jnp.asarray(r)


# --------------------------------- fused kernel --------------------------------

def _disc_fused_kernel(p1_ref, w1_ref, b1_ref, g_ref, w2t_ref, pcol_ref, m_ref,
                       b2_ref, br_ref, o_ref, *, n, hw1, c1, hw2, n_resblock):
    eps = 1e-5

    def inorm(v):
        # per-sample InstanceNorm over axis 1 (spatial), biased var, eps=1e-5
        mu = jnp.mean(v, axis=1, keepdims=True)
        var = jnp.mean((v - mu) ** 2, axis=1, keepdims=True)
        return (v - mu) * lax.rsqrt(var + eps)

    # ---- conv1 (3 -> C1, s2) as one batch-folded MXU matmul + IN + LeakyReLU ----
    y = jnp.dot(p1_ref[...], w1_ref[...],
                preferred_element_type=jnp.float32) + b1_ref[...]    # (N*HW1, C1)
    y = inorm(y.reshape(n, hw1, c1))                                 # (N, HW1, C1)
    h1 = jnp.where(y > 0, y, 0.2 * y)

    # ---- switch to channel-rows / spatial-lanes: (N*C1, HW1) ----
    h1t = jnp.concatenate([h1[i].T for i in range(n)], axis=0)

    # ---- conv2 (C1 -> 1, s2, zero-pad 1): gather -> tap-weight -> pool -> sum ----
    z = jnp.dot(h1t, g_ref[...], preferred_element_type=jnp.float32)   # (N*C1, HW2*9)
    zw = z * w2t_ref[...]                                              # per-tap chan weights
    y2 = jnp.dot(zw, pcol_ref[...], preferred_element_type=jnp.float32)  # (N*C1, HW2)
    h2 = jnp.sum(y2.reshape(n, c1, hw2), axis=1) + b2_ref[0]           # (N, HW2)

    # ---- n_resblock x ResnetBlock(dim=1) on (N, HW2), spatial on the lane axis ----
    xcur = h2
    for blk in range(n_resblock):
        k0 = 2 * blk
        v = jnp.dot(xcur, m_ref[k0],
                    preferred_element_type=jnp.float32) + br_ref[k0]
        v = jnp.maximum(inorm(v), 0.0)
        v = jnp.dot(v, m_ref[k0 + 1],
                    preferred_element_type=jnp.float32) + br_ref[k0 + 1]
        v = inorm(v)
        xcur = xcur + v

    o_ref[...] = xcur


# ------------------------------- forward wrapper -------------------------------

def discriminator_forward(x, params, *, n_resblock=4):
    """x: (N, 3, H, W) NCHW float32 -> (N, 1, H//4, W//4)."""
    w1, b1, w2, b2, wr, br = params
    N, Cin, H, W = x.shape
    C1 = w1.shape[0]
    OH1, OW1 = H // 2, W // 2
    OH2, OW2 = OH1 // 2, OW1 // 2
    HW1, HW2 = OH1 * OW1, OH2 * OW2

    # conv1 im2col at the input boundary; everything downstream stays in VMEM.
    p1 = extract_patches_s2(x).reshape(N * HW1, Cin * 9)
    w1r = w1.reshape(C1, -1).T                        # (Cin*9, C1)
    b1r = b1.reshape(1, C1)

    # Static geometry matrices (numpy, trace-time constants).
    gmat = _conv2_gather_matrix(OH1, OW1, OH2, OW2)   # (HW1, HW2*9)
    pcol = _tap_pool_matrix(HW2)                      # (HW2*9, HW2)
    rbasis = _reflect_tap_basis(OH2)                  # (HW2, HW2, 9)

    # conv2 weights aligned with the gather columns / channel rows.
    w2m = w2.reshape(C1, 9)
    w2tile = jnp.tile(w2m, (N, HW2))                  # (N*C1, HW2*9)
    b2s = b2.reshape(1)

    # Resblock convs folded (reflection pad + 3x3 filter) into (HW2, HW2) maps.
    mall = jnp.einsum('pqt,kt->kpq', rbasis, wr)      # (2*n_resblock, HW2, HW2)

    flops = (2 * N * HW1 * Cin * 9 * C1               # conv1 matmul
             + 2 * N * C1 * HW1 * HW2 * 9             # conv2 gather matmul
             + 2 * N * C1 * HW2 * 9 * HW2             # conv2 tap-pool matmul
             + n_resblock * 2 * (2 * N * HW2 * HW2))  # resblock convs
    bytes_accessed = 4 * (p1.size + w1r.size + b1r.size + gmat.size + w2tile.size
                          + pcol.size + mall.size + b2s.size + br.size + N * HW2)
    cost = pl.CostEstimate(flops=int(flops),
                           transcendentals=int(N * C1 + 2 * n_resblock * N),
                           bytes_accessed=int(bytes_accessed))

    kern = functools.partial(_disc_fused_kernel, n=N, hw1=HW1, c1=C1, hw2=HW2,
                             n_resblock=n_resblock)
    vmem = pl.BlockSpec(memory_space=pltpu.MemorySpace.VMEM)
    smem = pl.BlockSpec(memory_space=pltpu.MemorySpace.SMEM)

    out = pl.pallas_call(
        kern,
        out_shape=jax.ShapeDtypeStruct((N, HW2), jnp.float32),
        in_specs=[vmem, vmem, vmem, vmem, vmem, vmem, vmem, smem, smem],
        out_specs=vmem,
        cost_estimate=cost,
    )(p1, w1r, b1r, gmat, w2tile, pcol, mall, b2s, br)

    return out.reshape(N, 1, OH2, OW2)


def make_params(key, img_chn=3, model_chn=64, n_resblock=4):
    ks = jax.random.split(key, 6)
    w1 = spectral_normalize(
        jax.random.normal(ks[0], (model_chn, img_chn, 3, 3), jnp.float32) * 0.2)
    b1 = jax.random.normal(ks[1], (model_chn,), jnp.float32) * 0.1
    w2 = spectral_normalize(
        jax.random.normal(ks[2], (1, model_chn, 3, 3), jnp.float32) * 0.2)
    b2 = jax.random.normal(ks[3], (1,), jnp.float32) * 0.1
    wr_list, br_list = [], []
    for j in range(2 * n_resblock):
        kw, kb = jax.random.split(jax.random.fold_in(ks[4], j))
        w = jax.random.normal(kw, (1, 1, 3, 3), jnp.float32) * 0.3
        b = jax.random.normal(kb, (1,), jnp.float32) * 0.1
        wr_list.append(spectral_normalize(w).reshape(9))
        br_list.append(b[0])
    wr = jnp.stack(wr_list)          # (2*n_resblock, 9)
    br = jnp.stack(br_list)          # (2*n_resblock,)
    return (w1, b1, w2, b2, wr, br)


if __name__ == "__main__":
    key = jax.random.PRNGKey(0)
    k_x, k_p = jax.random.split(key)

    # Discriminator defaults: img_size=16, img_chn=3, model_chn=64,
    # n_downsample=2, n_resblock=4, fc_out=False -> output (N, 1, 4, 4).
    x = jax.random.normal(k_x, (2, 3, 16, 16), jnp.float32)
    params = make_params(k_p, img_chn=3, model_chn=64, n_resblock=4)

    fwd = jax.jit(functools.partial(discriminator_forward, n_resblock=4))
    out = jax.block_until_ready(fwd(x, params))

    assert out.shape == (2, 1, 4, 4), out.shape
    assert bool(jnp.all(jnp.isfinite(out)))
    print("KERNEL_OK")
</pallas_src>

<mosaic_0001>
module attributes {stable_mosaic.version = 11 : i64} {
  func.func @_disc_fused_kernel(%arg0: memref<128x27xf32, #tpu.memory_space<vmem>>, %arg1: memref<27x64xf32, #tpu.memory_space<vmem>>, %arg2: memref<1x64xf32, #tpu.memory_space<vmem>>, %arg3: memref<64x144xf32, #tpu.memory_space<vmem>>, %arg4: memref<128x144xf32, #tpu.memory_space<vmem>>, %arg5: memref<144x16xf32, #tpu.memory_space<vmem>>, %arg6: memref<8x16x16xf32, #tpu.memory_space<vmem>>, %arg7: memref<1xf32, #tpu.memory_space<smem>>, %arg8: memref<8xf32, #tpu.memory_space<smem>>, %arg9: memref<2x16xf32, #tpu.memory_space<vmem>>) attributes {dimension_semantics = [], scalar_prefetch = 0 : i64, scratch_operands = 0 : i64, tpu.core_type = #tpu.core_type<tc>} {
    %c0 = arith.constant 0 : index
    %c0_0 = arith.constant 0 : index
    %0 = vector.load %arg0[%c0, %c0_0] : memref<128x27xf32, #tpu.memory_space<vmem>>, vector<128x27xf32>
    %c0_1 = arith.constant 0 : index
    %c0_2 = arith.constant 0 : index
    %1 = vector.load %arg1[%c0_1, %c0_2] : memref<27x64xf32, #tpu.memory_space<vmem>>, vector<27x64xf32>
    %cst = arith.constant dense<0.000000e+00> : vector<128x64xf32>
    %2 = tpu.matmul %0, %1, %cst {dimension_numbers = #tpu.dot_dimension_numbers<[1], [0], [0], [1], [0, 0, 1, 1], [], []>} : vector<128x27xf32>, vector<27x64xf32>, vector<128x64xf32> -> vector<128x64xf32>
    %c0_3 = arith.constant 0 : index
    %c0_4 = arith.constant 0 : index
    %3 = vector.load %arg2[%c0_3, %c0_4] : memref<1x64xf32, #tpu.memory_space<vmem>>, vector<1x64xf32>
    %4 = vector.broadcast %3 : vector<1x64xf32> to vector<128x64xf32>
    %5 = arith.addf %2, %4 : vector<128x64xf32>
    %6 = vector.shape_cast %5 : vector<128x64xf32> to vector<2x64x64xf32>
    %cst_5 = arith.constant dense<0.000000e+00> : vector<2x64xf32>
    %7 = vector.multi_reduction <add>, %6, %cst_5 [1] : vector<2x64x64xf32> to vector<2x64xf32>
    %8 = vector.shape_cast %7 : vector<2x64xf32> to vector<2x1x64xf32>
    %cst_6 = arith.constant 6.400000e+01 : f32
    %9 = vector.broadcast %cst_6 : f32 to vector<2x1x64xf32>
    %10 = arith.divf %8, %9 : vector<2x1x64xf32>
    %11 = vector.broadcast %10 : vector<2x1x64xf32> to vector<2x64x64xf32>
    %12 = arith.subf %6, %11 : vector<2x64x64xf32>
    %13 = arith.mulf %12, %12 : vector<2x64x64xf32>
    %cst_7 = arith.constant dense<0.000000e+00> : vector<2x64xf32>
    %14 = vector.multi_reduction <add>, %13, %cst_7 [1] : vector<2x64x64xf32> to vector<2x64xf32>
    %15 = vector.shape_cast %14 : vector<2x64xf32> to vector<2x1x64xf32>
    %cst_8 = arith.constant 6.400000e+01 : f32
    %16 = vector.broadcast %cst_8 : f32 to vector<2x1x64xf32>
    %17 = arith.divf %15, %16 : vector<2x1x64xf32>
    %18 = vector.broadcast %10 : vector<2x1x64xf32> to vector<2x64x64xf32>
    %19 = arith.subf %6, %18 : vector<2x64x64xf32>
    %cst_9 = arith.constant 9.99999974E-6 : f32
    %20 = vector.broadcast %cst_9 : f32 to vector<2x1x64xf32>
    %21 = arith.addf %17, %20 : vector<2x1x64xf32>
    %22 = math.rsqrt %21 : vector<2x1x64xf32>
    %23 = vector.broadcast %22 : vector<2x1x64xf32> to vector<2x64x64xf32>
    %24 = arith.mulf %19, %23 : vector<2x64x64xf32>
    %cst_10 = arith.constant 0.000000e+00 : f32
    %25 = vector.broadcast %cst_10 : f32 to vector<2x64x64xf32>
    %26 = arith.cmpf ogt, %24, %25 : vector<2x64x64xf32>
    %cst_11 = arith.constant 2.000000e-01 : f32
    %27 = vector.broadcast %cst_11 : f32 to vector<2x64x64xf32>
    %28 = arith.mulf %27, %24 : vector<2x64x64xf32>
    %29 = arith.select %26, %24, %28 : vector<2x64x64xi1>, vector<2x64x64xf32>
    %30 = vector.extract_strided_slice %29 {offsets = [0, 0, 0], sizes = [1, 64, 64], strides = [1, 1, 1]} : vector<2x64x64xf32> to vector<1x64x64xf32>
    %31 = vector.shape_cast %30 : vector<1x64x64xf32> to vector<64x64xf32>
    %32 = tpu.transpose %31, [1, 0] : vector<64x64xf32> -> vector<64x64xf32>
    %33 = vector.extract_strided_slice %29 {offsets = [1, 0, 0], sizes = [1, 64, 64], strides = [1, 1, 1]} : vector<2x64x64xf32> to vector<1x64x64xf32>
    %34 = vector.shape_cast %33 : vector<1x64x64xf32> to vector<64x64xf32>
    %35 = tpu.transpose %34, [1, 0] : vector<64x64xf32> -> vector<64x64xf32>
    %36 = tpu.concatenate %32, %35 in 0 : vector<64x64xf32>, vector<64x64xf32> -> vector<128x64xf32>
    %c0_12 = arith.constant 0 : index
    %c0_13 = arith.constant 0 : index
    %37 = vector.load %arg3[%c0_12, %c0_13] : memref<64x144xf32, #tpu.memory_space<vmem>>, vector<64x144xf32>
    %cst_14 = arith.constant dense<0.000000e+00> : vector<128x144xf32>
    %38 = tpu.matmul %36, %37, %cst_14 {dimension_numbers = #tpu.dot_dimension_numbers<[1], [0], [0], [1], [0, 0, 1, 1], [], []>} : vector<128x64xf32>, vector<64x144xf32>, vector<128x144xf32> -> vector<128x144xf32>
    %c0_15 = arith.constant 0 : index
    %c0_16 = arith.constant 0 : index
    %39 = vector.load %arg4[%c0_15, %c0_16] : memref<128x144xf32, #tpu.memory_space<vmem>>, vector<128x144xf32>
    %40 = arith.mulf %38, %39 : vector<128x144xf32>
    %c0_17 = arith.constant 0 : index
    %c0_18 = arith.constant 0 : index
    %41 = vector.load %arg5[%c0_17, %c0_18] : memref<144x16xf32, #tpu.memory_space<vmem>>, vector<144x16xf32>
    %cst_19 = arith.constant dense<0.000000e+00> : vector<128x16xf32>
    %42 = tpu.matmul %40, %41, %cst_19 {dimension_numbers = #tpu.dot_dimension_numbers<[1], [0], [0], [1], [0, 0, 1, 1], [], []>} : vector<128x144xf32>, vector<144x16xf32>, vector<128x16xf32> -> vector<128x16xf32>
    %43 = vector.shape_cast %42 : vector<128x16xf32> to vector<2x64x16xf32>
    %cst_20 = arith.constant dense<0.000000e+00> : vector<2x16xf32>
    %44 = vector.multi_reduction <add>, %43, %cst_20 [1] : vector<2x64x16xf32> to vector<2x16xf32>
    %c0_21 = arith.constant 0 : index
    %45 = memref.load %arg7[%c0_21] : memref<1xf32, #tpu.memory_space<smem>>
    %46 = vector.broadcast %45 : f32 to vector<2x16xf32>
    %47 = arith.addf %44, %46 : vector<2x16xf32>
    %c0_22 = arith.constant 0 : index
    %c0_23 = arith.constant 0 : index
    %c0_24 = arith.constant 0 : index
    %48 = vector.load %arg6[%c0_22, %c0_23, %c0_24] : memref<8x16x16xf32, #tpu.memory_space<vmem>>, vector<1x16x16xf32>
    %49 = vector.shape_cast %48 : vector<1x16x16xf32> to vector<16x16xf32>
    %cst_25 = arith.constant dense<0.000000e+00> : vector<2x16xf32>
    %50 = tpu.matmul %47, %49, %cst_25 {dimension_numbers = #tpu.dot_dimension_numbers<[1], [0], [0], [1], [0, 0, 1, 1], [], []>} : vector<2x16xf32>, vector<16x16xf32>, vector<2x16xf32> -> vector<2x16xf32>
    %c0_26 = arith.constant 0 : index
    %51 = memref.load %arg8[%c0_26] : memref<8xf32, #tpu.memory_space<smem>>
    %52 = vector.broadcast %51 : f32 to vector<2x16xf32>
    %53 = arith.addf %50, %52 : vector<2x16xf32>
    %cst_27 = arith.constant dense<0.000000e+00> : vector<2xf32>
    %54 = vector.multi_reduction <add>, %53, %cst_27 [1] : vector<2x16xf32> to vector<2xf32>
    %55 = vector.shape_cast %54 : vector<2xf32> to vector<2x1xf32>
    %cst_28 = arith.constant 1.600000e+01 : f32
    %56 = vector.broadcast %cst_28 : f32 to vector<2x1xf32>
    %57 = arith.divf %55, %56 : vector<2x1xf32>
    %58 = vector.broadcast %57 : vector<2x1xf32> to vector<2x16xf32>
    %59 = arith.subf %53, %58 : vector<2x16xf32>
    %60 = arith.mulf %59, %59 : vector<2x16xf32>
    %cst_29 = arith.constant dense<0.000000e+00> : vector<2xf32>
    %61 = vector.multi_reduction <add>, %60, %cst_29 [1] : vector<2x16xf32> to vector<2xf32>
    %62 = vector.shape_cast %61 : vector<2xf32> to vector<2x1xf32>
    %cst_30 = arith.constant 1.600000e+01 : f32
    %63 = vector.broadcast %cst_30 : f32 to vector<2x1xf32>
    %64 = arith.divf %62, %63 : vector<2x1xf32>
    %65 = vector.broadcast %57 : vector<2x1xf32> to vector<2x16xf32>
    %66 = arith.subf %53, %65 : vector<2x16xf32>
    %cst_31 = arith.constant 9.99999974E-6 : f32
    %67 = vector.broadcast %cst_31 : f32 to vector<2x1xf32>
    %68 = arith.addf %64, %67 : vector<2x1xf32>
    %69 = math.rsqrt %68 : vector<2x1xf32>
    %70 = vector.broadcast %69 : vector<2x1xf32> to vector<2x16xf32>
    %71 = arith.mulf %66, %70 : vector<2x16xf32>
    %cst_32 = arith.constant 0.000000e+00 : f32
    %72 = vector.broadcast %cst_32 : f32 to vector<2x16xf32>
    %73 = arith.maximumf %71, %72 : vector<2x16xf32>
    %c1 = arith.constant 1 : index
    %c0_33 = arith.constant 0 : index
    %c0_34 = arith.constant 0 : index
    %74 = vector.load %arg6[%c1, %c0_33, %c0_34] : memref<8x16x16xf32, #tpu.memory_space<vmem>>, vector<1x16x16xf32>
    %75 = vector.shape_cast %74 : vector<1x16x16xf32> to vector<16x16xf32>
    %cst_35 = arith.constant dense<0.000000e+00> : vector<2x16xf32>
    %76 = tpu.matmul %73, %75, %cst_35 {dimension_numbers = #tpu.dot_dimension_numbers<[1], [0], [0], [1], [0, 0, 1, 1], [], []>} : vector<2x16xf32>, vector<16x16xf32>, vector<2x16xf32> -> vector<2x16xf32>
    %c1_36 = arith.constant 1 : index
    %77 = memref.load %arg8[%c1_36] : memref<8xf32, #tpu.memory_space<smem>>
    %78 = vector.broadcast %77 : f32 to vector<2x16xf32>
    %79 = arith.addf %76, %78 : vector<2x16xf32>
    %cst_37 = arith.constant dense<0.000000e+00> : vector<2xf32>
    %80 = vector.multi_reduction <add>, %79, %cst_37 [1] : vector<2x16xf32> to vector<2xf32>
    %81 = vector.shape_cast %80 : vector<2xf32> to vector<2x1xf32>
    %cst_38 = arith.constant 1.600000e+01 : f32
    %82 = vector.broadcast %cst_38 : f32 to vector<2x1xf32>
    %83 = arith.divf %81, %82 : vector<2x1xf32>
    %84 = vector.broadcast %83 : vector<2x1xf32> to vector<2x16xf32>
    %85 = arith.subf %79, %84 : vector<2x16xf32>
    %86 = arith.mulf %85, %85 : vector<2x16xf32>
    %cst_39 = arith.constant dense<0.000000e+00> : vector<2xf32>
    %87 = vector.multi_reduction <add>, %86, %cst_39 [1] : vector<2x16xf32> to vector<2xf32>
    %88 = vector.shape_cast %87 : vector<2xf32> to vector<2x1xf32>
    %cst_40 = arith.constant 1.600000e+01 : f32
    %89 = vector.broadcast %cst_40 : f32 to vector<2x1xf32>
    %90 = arith.divf %88, %89 : vector<2x1xf32>
    %91 = vector.broadcast %83 : vector<2x1xf32> to vector<2x16xf32>
    %92 = arith.subf %79, %91 : vector<2x16xf32>
    %cst_41 = arith.constant 9.99999974E-6 : f32
    %93 = vector.broadcast %cst_41 : f32 to vector<2x1xf32>
    %94 = arith.addf %90, %93 : vector<2x1xf32>
    %95 = math.rsqrt %94 : vector<2x1xf32>
    %96 = vector.broadcast %95 : vector<2x1xf32> to vector<2x16xf32>
    %97 = arith.mulf %92, %96 : vector<2x16xf32>
    %98 = arith.addf %47, %97 : vector<2x16xf32>
    %c2 = arith.constant 2 : index
    %c0_42 = arith.constant 0 : index
    %c0_43 = arith.constant 0 : index
    %99 = vector.load %arg6[%c2, %c0_42, %c0_43] : memref<8x16x16xf32, #tpu.memory_space<vmem>>, vector<1x16x16xf32>
    %100 = vector.shape_cast %99 : vector<1x16x16xf32> to vector<16x16xf32>
    %cst_44 = arith.constant dense<0.000000e+00> : vector<2x16xf32>
    %101 = tpu.matmul %98, %100, %cst_44 {dimension_numbers = #tpu.dot_dimension_numbers<[1], [0], [0], [1], [0, 0, 1, 1], [], []>} : vector<2x16xf32>, vector<16x16xf32>, vector<2x16xf32> -> vector<2x16xf32>
    %c2_45 = arith.constant 2 : index
    %102 = memref.load %arg8[%c2_45] : memref<8xf32, #tpu.memory_space<smem>>
    %103 = vector.broadcast %102 : f32 to vector<2x16xf32>
    %104 = arith.addf %101, %103 : vector<2x16xf32>
    %cst_46 = arith.constant dense<0.000000e+00> : vector<2xf32>
    %105 = vector.multi_reduction <add>, %104, %cst_46 [1] : vector<2x16xf32> to vector<2xf32>
    %106 = vector.shape_cast %105 : vector<2xf32> to vector<2x1xf32>
    %cst_47 = arith.constant 1.600000e+01 : f32
    %107 = vector.broadcast %cst_47 : f32 to vector<2x1xf32>
    %108 = arith.divf %106, %107 : vector<2x1xf32>
    %109 = vector.broadcast %108 : vector<2x1xf32> to vector<2x16xf32>
    %110 = arith.subf %104, %109 : vector<2x16xf32>
    %111 = arith.mulf %110, %110 : vector<2x16xf32>
    %cst_48 = arith.constant dense<0.000000e+00> : vector<2xf32>
    %112 = vector.multi_reduction <add>, %111, %cst_48 [1] : vector<2x16xf32> to vector<2xf32>
    %113 = vector.shape_cast %112 : vector<2xf32> to vector<2x1xf32>
    %cst_49 = arith.constant 1.600000e+01 : f32
    %114 = vector.broadcast %cst_49 : f32 to vector<2x1xf32>
    %115 = arith.divf %113, %114 : vector<2x1xf32>
    %116 = vector.broadcast %108 : vector<2x1xf32> to vector<2x16xf32>
    %117 = arith.subf %104, %116 : vector<2x16xf32>
    %cst_50 = arith.constant 9.99999974E-6 : f32
    %118 = vector.broadcast %cst_50 : f32 to vector<2x1xf32>
    %119 = arith.addf %115, %118 : vector<2x1xf32>
    %120 = math.rsqrt %119 : vector<2x1xf32>
    %121 = vector.broadcast %120 : vector<2x1xf32> to vector<2x16xf32>
    %122 = arith.mulf %117, %121 : vector<2x16xf32>
    %cst_51 = arith.constant 0.000000e+00 : f32
    %123 = vector.broadcast %cst_51 : f32 to vector<2x16xf32>
    %124 = arith.maximumf %122, %123 : vector<2x16xf32>
    %c3 = arith.constant 3 : index
    %c0_52 = arith.constant 0 : index
    %c0_53 = arith.constant 0 : index
    %125 = vector.load %arg6[%c3, %c0_52, %c0_53] : memref<8x16x16xf32, #tpu.memory_space<vmem>>, vector<1x16x16xf32>
    %126 = vector.shape_cast %125 : vector<1x16x16xf32> to vector<16x16xf32>
    %cst_54 = arith.constant dense<0.000000e+00> : vector<2x16xf32>
    %127 = tpu.matmul %124, %126, %cst_54 {dimension_numbers = #tpu.dot_dimension_numbers<[1], [0], [0], [1], [0, 0, 1, 1], [], []>} : vector<2x16xf32>, vector<16x16xf32>, vector<2x16xf32> -> vector<2x16xf32>
    %c3_55 = arith.constant 3 : index
    %128 = memref.load %arg8[%c3_55] : memref<8xf32, #tpu.memory_space<smem>>
    %129 = vector.broadcast %128 : f32 to vector<2x16xf32>
    %130 = arith.addf %127, %129 : vector<2x16xf32>
    %cst_56 = arith.constant dense<0.000000e+00> : vector<2xf32>
    %131 = vector.multi_reduction <add>, %130, %cst_56 [1] : vector<2x16xf32> to vector<2xf32>
    %132 = vector.shape_cast %131 : vector<2xf32> to vector<2x1xf32>
    %cst_57 = arith.constant 1.600000e+01 : f32
    %133 = vector.broadcast %cst_57 : f32 to vector<2x1xf32>
    %134 = arith.divf %132, %133 : vector<2x1xf32>
    %135 = vector.broadcast %134 : vector<2x1xf32> to vector<2x16xf32>
    %136 = arith.subf %130, %135 : vector<2x16xf32>
    %137 = arith.mulf %136, %136 : vector<2x16xf32>
    %cst_58 = arith.constant dense<0.000000e+00> : vector<2xf32>
    %138 = vector.multi_reduction <add>, %137, %cst_58 [1] : vector<2x16xf32> to vector<2xf32>
    %139 = vector.shape_cast %138 : vector<2xf32> to vector<2x1xf32>
    %cst_59 = arith.constant 1.600000e+01 : f32
    %140 = vector.broadcast %cst_59 : f32 to vector<2x1xf32>
    %141 = arith.divf %139, %140 : vector<2x1xf32>
    %142 = vector.broadcast %134 : vector<2x1xf32> to vector<2x16xf32>
    %143 = arith.subf %130, %142 : vector<2x16xf32>
    %cst_60 = arith.constant 9.99999974E-6 : f32
    %144 = vector.broadcast %cst_60 : f32 to vector<2x1xf32>
    %145 = arith.addf %141, %144 : vector<2x1xf32>
    %146 = math.rsqrt %145 : vector<2x1xf32>
    %147 = vector.broadcast %146 : vector<2x1xf32> to vector<2x16xf32>
    %148 = arith.mulf %143, %147 : vector<2x16xf32>
    %149 = arith.addf %98, %148 : vector<2x16xf32>
    %c4 = arith.constant 4 : index
    %c0_61 = arith.constant 0 : index
    %c0_62 = arith.constant 0 : index
    %150 = vector.load %arg6[%c4, %c0_61, %c0_62] : memref<8x16x16xf32, #tpu.memory_space<vmem>>, vector<1x16x16xf32>
    %151 = vector.shape_cast %150 : vector<1x16x16xf32> to vector<16x16xf32>
    %cst_63 = arith.constant dense<0.000000e+00> : vector<2x16xf32>
    %152 = tpu.matmul %149, %151, %cst_63 {dimension_numbers = #tpu.dot_dimension_numbers<[1], [0], [0], [1], [0, 0, 1, 1], [], []>} : vector<2x16xf32>, vector<16x16xf32>, vector<2x16xf32> -> vector<2x16xf32>
    %c4_64 = arith.constant 4 : index
    %153 = memref.load %arg8[%c4_64] : memref<8xf32, #tpu.memory_space<smem>>
    %154 = vector.broadcast %153 : f32 to vector<2x16xf32>
    %155 = arith.addf %152, %154 : vector<2x16xf32>
    %cst_65 = arith.constant dense<0.000000e+00> : vector<2xf32>
    %156 = vector.multi_reduction <add>, %155, %cst_65 [1] : vector<2x16xf32> to vector<2xf32>
    %157 = vector.shape_cast %156 : vector<2xf32> to vector<2x1xf32>
    %cst_66 = arith.constant 1.600000e+01 : f32
    %158 = vector.broadcast %cst_66 : f32 to vector<2x1xf32>
    %159 = arith.divf %157, %158 : vector<2x1xf32>
    %160 = vector.broadcast %159 : vector<2x1xf32> to vector<2x16xf32>
    %161 = arith.subf %155, %160 : vector<2x16xf32>
    %162 = arith.mulf %161, %161 : vector<2x16xf32>
    %cst_67 = arith.constant dense<0.000000e+00> : vector<2xf32>
    %163 = vector.multi_reduction <add>, %162, %cst_67 [1] : vector<2x16xf32> to vector<2xf32>
    %164 = vector.shape_cast %163 : vector<2xf32> to vector<2x1xf32>
    %cst_68 = arith.constant 1.600000e+01 : f32
    %165 = vector.broadcast %cst_68 : f32 to vector<2x1xf32>
    %166 = arith.divf %164, %165 : vector<2x1xf32>
    %167 = vector.broadcast %159 : vector<2x1xf32> to vector<2x16xf32>
    %168 = arith.subf %155, %167 : vector<2x16xf32>
    %cst_69 = arith.constant 9.99999974E-6 : f32
    %169 = vector.broadcast %cst_69 : f32 to vector<2x1xf32>
    %170 = arith.addf %166, %169 : vector<2x1xf32>
    %171 = math.rsqrt %170 : vector<2x1xf32>
    %172 = vector.broadcast %171 : vector<2x1xf32> to vector<2x16xf32>
    %173 = arith.mulf %168, %172 : vector<2x16xf32>
    %cst_70 = arith.constant 0.000000e+00 : f32
    %174 = vector.broadcast %cst_70 : f32 to vector<2x16xf32>
    %175 = arith.maximumf %173, %174 : vector<2x16xf32>
    %c5 = arith.constant 5 : index
    %c0_71 = arith.constant 0 : index
    %c0_72 = arith.constant 0 : index
    %176 = vector.load %arg6[%c5, %c0_71, %c0_72] : memref<8x16x16xf32, #tpu.memory_space<vmem>>, vector<1x16x16xf32>
    %177 = vector.shape_cast %176 : vector<1x16x16xf32> to vector<16x16xf32>
    %cst_73 = arith.constant dense<0.000000e+00> : vector<2x16xf32>
    %178 = tpu.matmul %175, %177, %cst_73 {dimension_numbers = #tpu.dot_dimension_numbers<[1], [0], [0], [1], [0, 0, 1, 1], [], []>} : vector<2x16xf32>, vector<16x16xf32>, vector<2x16xf32> -> vector<2x16xf32>
    %c5_74 = arith.constant 5 : index
    %179 = memref.load %arg8[%c5_74] : memref<8xf32, #tpu.memory_space<smem>>
    %180 = vector.broadcast %179 : f32 to vector<2x16xf32>
    %181 = arith.addf %178, %180 : vector<2x16xf32>
    %cst_75 = arith.constant dense<0.000000e+00> : vector<2xf32>
    %182 = vector.multi_reduction <add>, %181, %cst_75 [1] : vector<2x16xf32> to vector<2xf32>
    %183 = vector.shape_cast %182 : vector<2xf32> to vector<2x1xf32>
    %cst_76 = arith.constant 1.600000e+01 : f32
    %184 = vector.broadcast %cst_76 : f32 to vector<2x1xf32>
    %185 = arith.divf %183, %184 : vector<2x1xf32>
    %186 = vector.broadcast %185 : vector<2x1xf32> to vector<2x16xf32>
    %187 = arith.subf %181, %186 : vector<2x16xf32>
    %188 = arith.mulf %187, %187 : vector<2x16xf32>
    %cst_77 = arith.constant dense<0.000000e+00> : vector<2xf32>
    %189 = vector.multi_reduction <add>, %188, %cst_77 [1] : vector<2x16xf32> to vector<2xf32>
    %190 = vector.shape_cast %189 : vector<2xf32> to vector<2x1xf32>
    %cst_78 = arith.constant 1.600000e+01 : f32
    %191 = vector.broadcast %cst_78 : f32 to vector<2x1xf32>
    %192 = arith.divf %190, %191 : vector<2x1xf32>
    %193 = vector.broadcast %185 : vector<2x1xf32> to vector<2x16xf32>
    %194 = arith.subf %181, %193 : vector<2x16xf32>
    %cst_79 = arith.constant 9.99999974E-6 : f32
    %195 = vector.broadcast %cst_79 : f32 to vector<2x1xf32>
    %196 = arith.addf %192, %195 : vector<2x1xf32>
    %197 = math.rsqrt %196 : vector<2x1xf32>
    %198 = vector.broadcast %197 : vector<2x1xf32> to vector<2x16xf32>
    %199 = arith.mulf %194, %198 : vector<2x16xf32>
    %200 = arith.addf %149, %199 : vector<2x16xf32>
    %c6 = arith.constant 6 : index
    %c0_80 = arith.constant 0 : index
    %c0_81 = arith.constant 0 : index
    %201 = vector.load %arg6[%c6, %c0_80, %c0_81] : memref<8x16x16xf32, #tpu.memory_space<vmem>>, vector<1x16x16xf32>
    %202 = vector.shape_cast %201 : vector<1x16x16xf32> to vector<16x16xf32>
    %cst_82 = arith.constant dense<0.000000e+00> : vector<2x16xf32>
    %203 = tpu.matmul %200, %202, %cst_82 {dimension_numbers = #tpu.dot_dimension_numbers<[1], [0], [0], [1], [0, 0, 1, 1], [], []>} : vector<2x16xf32>, vector<16x16xf32>, vector<2x16xf32> -> vector<2x16xf32>
    %c6_83 = arith.constant 6 : index
    %204 = memref.load %arg8[%c6_83] : memref<8xf32, #tpu.memory_space<smem>>
    %205 = vector.broadcast %204 : f32 to vector<2x16xf32>
    %206 = arith.addf %203, %205 : vector<2x16xf32>
    %cst_84 = arith.constant dense<0.000000e+00> : vector<2xf32>
    %207 = vector.multi_reduction <add>, %206, %cst_84 [1] : vector<2x16xf32> to vector<2xf32>
    %208 = vector.shape_cast %207 : vector<2xf32> to vector<2x1xf32>
    %cst_85 = arith.constant 1.600000e+01 : f32
    %209 = vector.broadcast %cst_85 : f32 to vector<2x1xf32>
    %210 = arith.divf %208, %209 : vector<2x1xf32>
    %211 = vector.broadcast %210 : vector<2x1xf32> to vector<2x16xf32>
    %212 = arith.subf %206, %211 : vector<2x16xf32>
    %213 = arith.mulf %212, %212 : vector<2x16xf32>
    %cst_86 = arith.constant dense<0.000000e+00> : vector<2xf32>
    %214 = vector.multi_reduction <add>, %213, %cst_86 [1] : vector<2x16xf32> to vector<2xf32>
    %215 = vector.shape_cast %214 : vector<2xf32> to vector<2x1xf32>
    %cst_87 = arith.constant 1.600000e+01 : f32
    %216 = vector.broadcast %cst_87 : f32 to vector<2x1xf32>
    %217 = arith.divf %215, %216 : vector<2x1xf32>
    %218 = vector.broadcast %210 : vector<2x1xf32> to vector<2x16xf32>
    %219 = arith.subf %206, %218 : vector<2x16xf32>
    %cst_88 = arith.constant 9.99999974E-6 : f32
    %220 = vector.broadcast %cst_88 : f32 to vector<2x1xf32>
    %221 = arith.addf %217, %220 : vector<2x1xf32>
    %222 = math.rsqrt %221 : vector<2x1xf32>
    %223 = vector.broadcast %222 : vector<2x1xf32> to vector<2x16xf32>
    %224 = arith.mulf %219, %223 : vector<2x16xf32>
    %cst_89 = arith.constant 0.000000e+00 : f32
    %225 = vector.broadcast %cst_89 : f32 to vector<2x16xf32>
    %226 = arith.maximumf %224, %225 : vector<2x16xf32>
    %c7 = arith.constant 7 : index
    %c0_90 = arith.constant 0 : index
    %c0_91 = arith.constant 0 : index
    %227 = vector.load %arg6[%c7, %c0_90, %c0_91] : memref<8x16x16xf32, #tpu.memory_space<vmem>>, vector<1x16x16xf32>
    %228 = vector.shape_cast %227 : vector<1x16x16xf32> to vector<16x16xf32>
    %cst_92 = arith.constant dense<0.000000e+00> : vector<2x16xf32>
    %229 = tpu.matmul %226, %228, %cst_92 {dimension_numbers = #tpu.dot_dimension_numbers<[1], [0], [0], [1], [0, 0, 1, 1], [], []>} : vector<2x16xf32>, vector<16x16xf32>, vector<2x16xf32> -> vector<2x16xf32>
    %c7_93 = arith.constant 7 : index
    %230 = memref.load %arg8[%c7_93] : memref<8xf32, #tpu.memory_space<smem>>
    %231 = vector.broadcast %230 : f32 to vector<2x16xf32>
    %232 = arith.addf %229, %231 : vector<2x16xf32>
    %cst_94 = arith.constant dense<0.000000e+00> : vector<2xf32>
    %233 = vector.multi_reduction <add>, %232, %cst_94 [1] : vector<2x16xf32> to vector<2xf32>
    %234 = vector.shape_cast %233 : vector<2xf32> to vector<2x1xf32>
    %cst_95 = arith.constant 1.600000e+01 : f32
    %235 = vector.broadcast %cst_95 : f32 to vector<2x1xf32>
    %236 = arith.divf %234, %235 : vector<2x1xf32>
    %237 = vector.broadcast %236 : vector<2x1xf32> to vector<2x16xf32>
    %238 = arith.subf %232, %237 : vector<2x16xf32>
    %239 = arith.mulf %238, %238 : vector<2x16xf32>
    %cst_96 = arith.constant dense<0.000000e+00> : vector<2xf32>
    %240 = vector.multi_reduction <add>, %239, %cst_96 [1] : vector<2x16xf32> to vector<2xf32>
    %241 = vector.shape_cast %240 : vector<2xf32> to vector<2x1xf32>
    %cst_97 = arith.constant 1.600000e+01 : f32
    %242 = vector.broadcast %cst_97 : f32 to vector<2x1xf32>
    %243 = arith.divf %241, %242 : vector<2x1xf32>
    %244 = vector.broadcast %236 : vector<2x1xf32> to vector<2x16xf32>
    %245 = arith.subf %232, %244 : vector<2x16xf32>
    %cst_98 = arith.constant 9.99999974E-6 : f32
    %246 = vector.broadcast %cst_98 : f32 to vector<2x1xf32>
    %247 = arith.addf %243, %246 : vector<2x1xf32>
    %248 = math.rsqrt %247 : vector<2x1xf32>
    %249 = vector.broadcast %248 : vector<2x1xf32> to vector<2x16xf32>
    %250 = arith.mulf %245, %249 : vector<2x16xf32>
    %251 = arith.addf %200, %250 : vector<2x16xf32>
    %c0_99 = arith.constant 0 : index
    %c0_100 = arith.constant 0 : index
    %252 = vector.load %arg9[%c0_99, %c0_100] : memref<2x16xf32, #tpu.memory_space<vmem>>, vector<2x16xf32>
    tpu.vector_store %arg9[%c0_99, %c0_100], %251 {strides = array<i32>} : memref<2x16xf32, #tpu.memory_space<vmem>>, vector<2x16xf32>,
    return
  }
}

</mosaic_0001>

<llo_original>
// kernel: tile.5
$region0: #{tile.5}
  %s0 = inlined_call_operand.vmem [shape: f32[64,3,3], index: 0, kind: input, shape index: {}]
  %s1 = inlined_call_operand.vmem [shape: f32[64,9], index: 1, kind: output, shape index: {}]
  $region1: #{tile.5} parent=0
    #allocation0 [shape = 'u8[12288]{0}', space=vmem, size = 0x3000, scoped, tag = 'scoped mem for input reshape']
    %s3 = sshllo.u32 0, 4
    %s4 = smul.addr 4, 2
    %s5 = scalar_lea.vmem %s0, %s4
    %v6 = vld [vmem:[%s5] sm:%s3]
    %s7 = scalar_lea.vmem [#allocation0], 16
    %8 = vst [vmem:[%s7] sm:%s3] %v6
    %s9 = scalar_lea.vmem %s0, 4
    %v10 = vld [vmem:[%s9] sm:%s3]
    %s11 = scalar_lea.vmem [#allocation0], 8
    %12 = vst [vmem:[%s11] sm:%s3] %v10
    %v13 = vld [vmem:[%s0] sm:%s3]
    %14 = vst [vmem:[#allocation0] sm:%s3] %v13
    %v15 = vld [vmem:[#allocation0] sm:$0x7]
    %vm16 = vcmask 523264
    %17 = vst.msk [vmem:[%s1] sm:$0x7] %vm16, %v15
    %s18 = scalar_lea.vmem [#allocation0], 8
    %v19 = vld [vmem:[%s18] sm:$0x7]
    %vm20 = vcmask 523264
    %s21 = scalar_lea.vmem %s1, 3
    %22 = vst.msk [vmem:[%s21] sm:$0x7] %vm20, %v19
    %s23 = scalar_lea.vmem [#allocation0], 16
    %v24 = vld [vmem:[%s23] sm:$0x7]
    %vm25 = vcmask 523264
    %s26 = scalar_lea.vmem %s1, 6
    %27 = vst.msk [vmem:[%s26] sm:$0x7] %vm25, %v24

// kernel: tile.6
$region0: #{tile.6}
  #allocation0 [shape = 's32[1]{0}', space=sflag, size = 0x4, scoped, tag = 'scoped memory for tile.6']
  %s0 = inlined_call_operand.vmem [shape: f32[64,9], index: 0, kind: input, shape index: {}]
  %s1 = inlined_call_operand.vmem [shape: f32[2,64,16,9], index: 1, kind: output, shape index: {}]
  // Predicated region
  $region2: #{tile.6} parent=0 // pred_check
    _
  $region3: #{tile.6} parent=0 // pred_check_branch
    %3 = sbr.rel (0) target = $region5
  $region4: #{tile.6} parent=0 // pred_region
    _
  $region5: #{tile.6} parent=0 // pred_fallthru
    _
  %v4 = vld [vmem:[%s0] ss:$0 sm:$0xff]
  %5 = vst [vmem:[%s1] sm:$0x3] %v4
  %s6 = scalar_lea.vmem %s1, 18
  %7 = vst [vmem:[%s6] sm:$0x3] %v4
  %s8 = scalar_lea.vmem %s1, 36
  %9 = vst [vmem:[%s8] sm:$0x3] %v4
  %s10 = scalar_lea.vmem %s1, 54
  %11 = vst [vmem:[%s10] sm:$0x3] %v4
  %s12 = scalar_lea.vmem %s1, 72
  %13 = vst [vmem:[%s12] sm:$0x3] %v4
  %s14 = scalar_lea.vmem %s1, 90
  %15 = vst [vmem:[%s14] sm:$0x3] %v4
  %s16 = scalar_lea.vmem %s1, 108
  %17 = vst [vmem:[%s16] sm:$0x3] %v4
  %s18 = scalar_lea.vmem %s1, 126
  %19 = vst [vmem:[%s18] sm:$0x3] %v4
  %s20 = scalar_lea.vmem %s1, 144
  %21 = vst [vmem:[%s20] sm:$0x3] %v4
  %s22 = scalar_lea.vmem %s1, 162
  %23 = vst [vmem:[%s22] sm:$0x3] %v4
  %s24 = scalar_lea.vmem %s1, 180
  %25 = vst [vmem:[%s24] sm:$0x3] %v4
  %s26 = scalar_lea.vmem %s1, 198
  %27 = vst [vmem:[%s26] sm:$0x3] %v4
  %s28 = scalar_lea.vmem %s1, 216
  %29 = vst [vmem:[%s28] sm:$0x3] %v4
  %s30 = scalar_lea.vmem %s1, 234
  %31 = vst [vmem:[%s30] sm:$0x3] %v4
  %s32 = scalar_lea.vmem %s1, 252
  %33 = vst [vmem:[%s32] sm:$0x3] %v4
  %s34 = scalar_lea.vmem %s1, 270
  %35 = vst [vmem:[%s34] sm:$0x3] %v4
  %s36 = scalar_lea.vmem %s0, 1
  %v37 = vld [vmem:[%s36] ss:$0 sm:$0xff]
  %s38 = scalar_lea.vmem %s1, 2
  %39 = vst [vmem:[%s38] sm:$0x3] %v37
  %s40 = scalar_lea.vmem %s1, 20
  %41 = vst [vmem:[%s40] sm:$0x3] %v37
  %s42 = scalar_lea.vmem %s1, 38
  %43 = vst [vmem:[%s42] sm:$0x3] %v37
  %s44 = scalar_lea.vmem %s1, 56
  %45 = vst [vmem:[%s44] sm:$0x3] %v37
  %s46 = scalar_lea.vmem %s1, 74
  %47 = vst [vmem:[%s46] sm:$0x3] %v37
  %s48 = scalar_lea.vmem %s1, 92
  %49 = vst [vmem:[%s48] sm:$0x3] %v37
  %s50 = scalar_lea.vmem %s1, 110
  %51 = vst [vmem:[%s50] sm:$0x3] %v37
  %s52 = scalar_lea.vmem %s1, 128
  %53 = vst [vmem:[%s52] sm:$0x3] %v37
  %s54 = scalar_lea.vmem %s1, 146
  %55 = vst [vmem:[%s54] sm:$0x3] %v37
  %s56 = scalar_lea.vmem %s1, 164
  %57 = vst [vmem:[%s56] sm:$0x3] %v37
  %s58 = scalar_lea.vmem %s1, 182
  %59 = vst [vmem:[%s58] sm:$0x3] %v37
  %s60 = scalar_lea.vmem %s1, 200
  %61 = vst [vmem:[%s60] sm:$0x3] %v37
  %s62 = scalar_lea.vmem %s1, 218
  %63 = vst [vmem:[%s62] sm:$0x3] %v37
  %s64 = scalar_lea.vmem %s1, 236
  %65 = vst [vmem:[%s64] sm:$0x3] %v37
  %s66 = scalar_lea.vmem %s1, 254
  %67 = vst [vmem:[%s66] sm:$0x3] %v37
  %s68 = scalar_lea.vmem %s1, 272
  %69 = vst [vmem:[%s68] sm:$0x3] %v37
  %s70 = scalar_lea.vmem %s0, 2
  %v71 = vld [vmem:[%s70] ss:$0 sm:$0xff]
  %s72 = scalar_lea.vmem %s1, 4
  %73 = vst [vmem:[%s72] sm:$0x3] %v71
  %s74 = scalar_lea.vmem %s1, 22
  %75 = vst [vmem:[%s74] sm:$0x3] %v71
  %s76 = scalar_lea.vmem %s1, 40
  %77 = vst [vmem:[%s76] sm:$0x3] %v71
  %s78 = scalar_lea.vmem %s1, 58
  %79 = vst [vmem:[%s78] sm:$0x3] %v71
  %s80 = scalar_lea.vmem %s1, 76
  %81 = vst [vmem:[%s80] sm:$0x3] %v71
  %s82 = scalar_lea.vmem %s1, 94
  %83 = vst [vmem:[%s82] sm:$0x3] %v71
  %s84 = scalar_lea.vmem %s1, 112
  %85 = vst [vmem:[%s84] sm:$0x3] %v71
  %s86 = scalar_lea.vmem %s1, 130
  %87 = vst [vmem:[%s86] sm:$0x3] %v71
  %s88 = scalar_lea.vmem %s1, 148
  %89 = vst [vmem:[%s88] sm:$0x3] %v71
  %s90 = scalar_lea.vmem %s1, 166
  %91 = vst [vmem:[%s90] sm:$0x3] %v71
  %s92 = scalar_lea.vmem %s1, 184
  %93 = vst [vmem:[%s92] sm:$0x3] %v71
  %s94 = scalar_lea.vmem %s1, 202
  %95 = vst [vmem:[%s94] sm:$0x3] %v71
  %s96 = scalar_lea.vmem %s1, 220
  %97 = vst [vmem:[%s96] sm:$0x3] %v71
  %s98 = scalar_lea.vmem %s1, 238
  %99 = vst [vmem:[%s98] sm:$0x3] %v71
  %s100 = scalar_lea.vmem %s1, 256
  %101 = vst [vmem:[%s100] sm:$0x3] %v71
  %s102 = scalar_lea.vmem %s1, 274
  %103 = vst [vmem:[%s102] sm:$0x3] %v71
  %s104 = scalar_lea.vmem %s0, 3
  %v105 = vld [vmem:[%s104] ss:$0 sm:$0xff]
  %s106 = scalar_lea.vmem %s1, 6
  %107 = vst [vmem:[%s106] sm:$0x3] %v105
  %s108 = scalar_lea.vmem %s1, 24
  %109 = vst [vmem:[%s108] sm:$0x3] %v105
  %s110 = scalar_lea.vmem %s1, 42
  %111 = vst [vmem:[%s110] sm:$0x3] %v105
  %s112 = scalar_lea.vmem %s1, 60
  %113 = vst [vmem:[%s112] sm:$0x3] %v105
  %s114 = scalar_lea.vmem %s1, 78
  %115 = vst [vmem:[%s114] sm:$0x3] %v105
  %s116 = scalar_lea.vmem %s1, 96
  %117 = vst [vmem:[%s116] sm:$0x3] %v105
  %s118 = scalar_lea.vmem %s1, 114
  %119 = vst [vmem:[%s118] sm:$0x3] %v105
  %s120 = scalar_lea.vmem %s1, 132
  %121 = vst [vmem:[%s120] sm:$0x3] %v105
  %s122 = scalar_lea.vmem %s1, 150
  %123 = vst [vmem:[%s122] sm:$0x3] %v105
  %s124 = scalar_lea.vmem %s1, 168
  %125 = vst [vmem:[%s124] sm:$0x3] %v105
  %s126 = scalar_lea.vmem %s1, 186
  %127 = vst [vmem:[%s126] sm:$0x3] %v105
  %s128 = scalar_lea.vmem %s1, 204
  %129 = vst [vmem:[%s128] sm:$0x3] %v105
  %s130 = scalar_lea.vmem %s1, 222
  %131 = vst [vmem:[%s130] sm:$0x3] %v105
  %s132 = scalar_lea.vmem %s1, 240
  %133 = vst [vmem:[%s132] sm:$0x3] %v105
  %s134 = scalar_lea.vmem %s1, 258
  %135 = vst [vmem:[%s134] sm:$0x3] %v105
  %s136 = scalar_lea.vmem %s1, 276
  %137 = vst [vmem:[%s136] sm:$0x3] %v105
  %s138 = scalar_lea.vmem %s0, 4
  %v139 = vld [vmem:[%s138] ss:$0 sm:$0xff]
  %s140 = scalar_lea.vmem %s1, 8
  %141 = vst [vmem:[%s140] sm:$0x3] %v139
  %s142 = scalar_lea.vmem %s1, 26
  %143 = vst [vmem:[%s142] sm:$0x3] %v139
  %s144 = scalar_lea.vmem %s1, 44
  %145 = vst [vmem:[%s144] sm:$0x3] %v139
  %s146 = scalar_lea.vmem %s1, 62
  %147 = vst [vmem:[%s146] sm:$0x3] %v139
  %s148 = scalar_lea.vmem %s1, 80
  %149 = vst [vmem:[%s148] sm:$0x3] %v139
  %s150 = scalar_lea.vmem %s1, 98
  %151 = vst [vmem:[%s150] sm:$0x3] %v139
  %s152 = scalar_lea.vmem %s1, 116
  %153 = vst [vmem:[%s152] sm:$0x3] %v139
  %s154 = scalar_lea.vmem %s1, 134
  %155 = vst [vmem:[%s154] sm:$0x3] %v139
  %s156 = scalar_lea.vmem %s1, 152
  %157 = vst [vmem:[%s156] sm:$0x3] %v139
  %s158 = scalar_lea.vmem %s1, 170
  %159 = vst [vmem:[%s158] sm:$0x3] %v139
  %s160 = scalar_lea.vmem %s1, 188
  %161 = vst [vmem:[%s160] sm:$0x3] %v139
  %s162 = scalar_lea.vmem %s1, 206
  %163 = vst [vmem:[%s162] sm:$0x3] %v139
  %s164 = scalar_lea.vmem %s1, 224
  %165 = vst [vmem:[%s164] sm:$0x3] %v139
  %s166 = scalar_lea.vmem %s1, 242
  %167 = vst [vmem:[%s166] sm:$0x3] %v139
  %s168 = scalar_lea.vmem %s1, 260
  %169 = vst [vmem:[%s168] sm:$0x3] %v139
  %s170 = scalar_lea.vmem %s1, 278
  %171 = vst [vmem:[%s170] sm:$0x3] %v139
  %s172 = scalar_lea.vmem %s0, 5
  %v173 = vld [vmem:[%s172] ss:$0 sm:$0xff]
  %s174 = scalar_lea.vmem %s1, 10
  %175 = vst [vmem:[%s174] sm:$0x3] %v173
  %s176 = scalar_lea.vmem %s1, 28
  %177 = vst [vmem:[%s176] sm:$0x3] %v173
  %s178 = scalar_lea.vmem %s1, 46
  %179 = vst [vmem:[%s178] sm:$0x3] %v173
  %s180 = scalar_lea.vmem %s1, 64
  %181 = vst [vmem:[%s180] sm:$0x3] %v173
  %s182 = scalar_lea.vmem %s1, 82
  %183 = vst [vmem:[%s182] sm:$0x3] %v173
  %s184 = scalar_lea.vmem %s1, 100
  %185 = vst [vmem:[%s184] sm:$0x3] %v173
  %s186 = scalar_lea.vmem %s1, 118
  %187 = vst [vmem:[%s186] sm:$0x3] %v173
  %s188 = scalar_lea.vmem %s1, 136
  %189 = vst [vmem:[%s188] sm:$0x3] %v173
  %s190 = scalar_lea.vmem %s1, 154
  %191 = vst [vmem:[%s190] sm:$0x3] %v173
  %s192 = scalar_lea.vmem %s1, 172
  %193 = vst [vmem:[%s192] sm:$0x3] %v173
  %s194 = scalar_lea.vmem %s1, 190
  %195 = vst [vmem:[%s194] sm:$0x3] %v173
  %s196 = scalar_lea.vmem %s1, 208
  %197 = vst [vmem:[%s196] sm:$0x3] %v173
  %s198 = scalar_lea.vmem %s1, 226
  %199 = vst [vmem:[%s198] sm:$0x3] %v173
  %s200 = scalar_lea.vmem %s1, 244
  %201 = vst [vmem:[%s200] sm:$0x3] %v173
  %s202 = scalar_lea.vmem %s1, 262
  %203 = vst [vmem:[%s202] sm:$0x3] %v173
  %s204 = scalar_lea.vmem %s1, 280
  %205 = vst [vmem:[%s204] sm:$0x3] %v173
  %s206 = scalar_lea.vmem %s0, 6
  %v207 = vld [vmem:[%s206] ss:$0 sm:$0xff]
  %s208 = scalar_lea.vmem %s1, 12
  %209 = vst [vmem:[%s208] sm:$0x3] %v207
  %s210 = scalar_lea.vmem %s1, 30
  %211 = vst [vmem:[%s210] sm:$0x3] %v207
  %s212 = scalar_lea.vmem %s1, 48
  %213 = vst [vmem:[%s212] sm:$0x3] %v207
  %s214 = scalar_lea.vmem %s1, 66
  %215 = vst [vmem:[%s214] sm:$0x3] %v207
  %s216 = scalar_lea.vmem %s1, 84
  %217 = vst [vmem:[%s216] sm:$0x3] %v207
  %s218 = scalar_lea.vmem %s1, 102
  %219 = vst [vmem:[%s218] sm:$0x3] %v207
  %s220 = scalar_lea.vmem %s1, 120
  %221 = vst [vmem:[%s220] sm:$0x3] %v207
  %s222 = scalar_lea.vmem %s1, 138
  %223 = vst [vmem:[%s222] sm:$0x3] %v207
  %s224 = scalar_lea.vmem %s1, 156
  %225 = vst [vmem:[%s224] sm:$0x3] %v207
  %s226 = scalar_lea.vmem %s1, 174
  %227 = vst [vmem:[%s226] sm:$0x3] %v207
  %s228 = scalar_lea.vmem %s1, 192
  %229 = vst [vmem:[%s228] sm:$0x3] %v207
  %s230 = scalar_lea.vmem %s1, 210
  %231 = vst [vmem:[%s230] sm:$0x3] %v207
  %s232 = scalar_lea.vmem %s1, 228
  %233 = vst [vmem:[%s232] sm:$0x3] %v207
  %s234 = scalar_lea.vmem %s1, 246
  %235 = vst [vmem:[%s234] sm:$0x3] %v207
  %s236 = scalar_lea.vmem %s1, 264
  %237 = vst [vmem:[%s236] sm:$0x3] %v207
  %s238 = scalar_lea.vmem %s1, 282
  %239 = vst [vmem:[%s238] sm:$0x3] %v207
  %s240 = scalar_lea.vmem %s0, 7
  %v241 = vld [vmem:[%s240] ss:$0 sm:$0xff]
  %s242 = scalar_lea.vmem %s1, 14
  %243 = vst [vmem:[%s242] sm:$0x3] %v241
  %s244 = scalar_lea.vmem %s1, 32
  %245 = vst [vmem:[%s244] sm:$0x3] %v241
  %s246 = scalar_lea.vmem %s1, 50
  %247 = vst [vmem:[%s246] sm:$0x3] %v241
  %s248 = scalar_lea.vmem %s1, 68
  %249 = vst [vmem:[%s248] sm:$0x3] %v241
  %s250 = scalar_lea.vmem %s1, 86
  %251 = vst [vmem:[%s250] sm:$0x3] %v241
  %s252 = scalar_lea.vmem %s1, 104
  %253 = vst [vmem:[%s252] sm:$0x3] %v241
  %s254 = scalar_lea.vmem %s1, 122
  %255 = vst [vmem:[%s254] sm:$0x3] %v241
  %s256 = scalar_lea.vmem %s1, 140
  %257 = vst [vmem:[%s256] sm:$0x3] %v241
  %s258 = scalar_lea.vmem %s1, 158
  %259 = vst [vmem:[%s258] sm:$0x3] %v241
  %s260 = scalar_lea.vmem %s1, 176
  %261 = vst [vmem:[%s260] sm:$0x3] %v241
  %s262 = scalar_lea.vmem %s1, 194
  %263 = vst [vmem:[%s262] sm:$0x3] %v241
  %s264 = scalar_lea.vmem %s1, 212
  %265 = vst [vmem:[%s264] sm:$0x3] %v241
  %s266 = scalar_lea.vmem %s1, 230
  %267 = vst [vmem:[%s266] sm:$0x3] %v241
  %s268 = scalar_lea.vmem %s1, 248
  %269 = vst [vmem:[%s268] sm:$0x3] %v241
  %s270 = scalar_lea.vmem %s1, 266
  %271 = vst [vmem:[%s270] sm:$0x3] %v241
  %s272 = scalar_lea.vmem %s1, 284
  %273 = vst [vmem:[%s272] sm:$0x3] %v241
  %s274 = scalar_lea.vmem %s0, 8
  %v275 = vld [vmem:[%s274] ss:$0 sm:$0xff]
  %s276 = scalar_lea.vmem %s1, 16
  %277 = vst [vmem:[%s276] sm:$0x3] %v275
  %s278 = scalar_lea.vmem %s1, 34
  %279 = vst [vmem:[%s278] sm:$0x3] %v275
  %s280 = scalar_lea.vmem %s1, 52
  %281 = vst [vmem:[%s280] sm:$0x3] %v275
  %s282 = scalar_lea.vmem %s1, 70
  %283 = vst [vmem:[%s282] sm:$0x3] %v275
  %s284 = scalar_lea.vmem %s1, 88
  %285 = vst [vmem:[%s284] sm:$0x3] %v275
  %s286 = scalar_lea.vmem %s1, 106
  %287 = vst [vmem:[%s286] sm:$0x3] %v275
  %s288 = scalar_lea.vmem %s1, 124
  %289 = vst [vmem:[%s288] sm:$0x3] %v275
  %s290 = scalar_lea.vmem %s1, 142
  %291 = vst [vmem:[%s290] sm:$0x3] %v275
  %s292 = scalar_lea.vmem %s1, 160
  %293 = vst [vmem:[%s292] sm:$0x3] %v275
  %s294 = scalar_lea.vmem %s1, 178
  %295 = vst [vmem:[%s294] sm:$0x3] %v275
  %s296 = scalar_lea.vmem %s1, 196
  %297 = vst [vmem:[%s296] sm:$0x3] %v275
  %s298 = scalar_lea.vmem %s1, 214
  %299 = vst [vmem:[%s298] sm:$0x3] %v275
  %s300 = scalar_lea.vmem %s1, 232
  %301 = vst [vmem:[%s300] sm:$0x3] %v275
  %s302 = scalar_lea.vmem %s1, 250
  %303 = vst [vmem:[%s302] sm:$0x3] %v275
  %s304 = scalar_lea.vmem %s1, 268
  %305 = vst [vmem:[%s304] sm:$0x3] %v275
  %s306 = scalar_lea.vmem %s1, 286
  %307 = vst [vmem:[%s306] sm:$0x3] %v275

// kernel: tile.7
$region0: #{tile.7}
  %s0 = inlined_call_operand.vmem [shape: f32[2,64,16,9], index: 0, kind: input, shape index: {}]
  %s1 = inlined_call_operand.vmem [shape: f32[128,144], index: 1, kind: output, shape index: {}]
  $region1: #{tile.7} parent=0
    #allocation0 [shape = 'u8[589824]{0}', space=vmem, size = 0x90000, scoped, tag = 'scoped mem for input reshape']
    %s3 = sshllo.u32 0, 2
    %s4 = smul.addr 2, 143
    %s5 = scalar_lea.vmem %s0, %s4
    %v6 = vld [vmem:[%s5] sm:%s3]
    %s7 = scalar_lea.vmem [#allocation0], 1144
    %8 = vst [vmem:[%s7] sm:%s3] %v6
    %s9 = smul.addr 2, 142
    %s10 = scalar_lea.vmem %s0, %s9
    %v11 = vld [vmem:[%s10] sm:%s3]
    %s12 = scalar_lea.vmem [#allocation0], 1136
    %13 = vst [vmem:[%s12] sm:%s3] %v11
    %s14 = smul.addr 2, 141
    %s15 = scalar_lea.vmem %s0, %s14
    %v16 = vld [vmem:[%s15] sm:%s3]
    %s17 = scalar_lea.vmem [#allocation0], 1128
    %18 = vst [vmem:[%s17] sm:%s3] %v16
    %s19 = smul.addr 2, 140
    %s20 = scalar_lea.vmem %s0, %s19
    %v21 = vld [vmem:[%s20] sm:%s3]
    %s22 = scalar_lea.vmem [#allocation0], 1120
    %23 = vst [vmem:[%s22] sm:%s3] %v21
    %s24 = smul.addr 2, 139
    %s25 = scalar_lea.vmem %s0, %s24
    %v26 = vld [vmem:[%s25] sm:%s3]
    %s27 = scalar_lea.vmem [#allocation0], 1112
    %28 = vst [vmem:[%s27] sm:%s3] %v26
    %s29 = smul.addr 2, 138
    %s30 = scalar_lea.vmem %s0, %s29
    %v31 = vld [vmem:[%s30] sm:%s3]
    %s32 = scalar_lea.vmem [#allocation0], 1104
    %33 = vst [vmem:[%s32] sm:%s3] %v31
    %s34 = smul.addr 2, 137
    %s35 = scalar_lea.vmem %s0, %s34
    %v36 = vld [vmem:[%s35] sm:%s3]
    %s37 = scalar_lea.vmem [#allocation0], 1096
    %38 = vst [vmem:[%s37] sm:%s3] %v36
    %s39 = smul.addr 2, 136
    %s40 = scalar_lea.vmem %s0, %s39
    %v41 = vld [vmem:[%s40] sm:%s3]
    %s42 = scalar_lea.vmem [#allocation0], 1088
    %43 = vst [vmem:[%s42] sm:%s3] %v41
    %s44 = smul.addr 2, 135
    %s45 = scalar_lea.vmem %s0, %s44
    %v46 = vld [vmem:[%s45] sm:%s3]
    %s47 = scalar_lea.vmem [#allocation0], 1080
    %48 = vst [vmem:[%s47] sm:%s3] %v46
    %s49 = smul.addr 2, 134
    %s50 = scalar_lea.vmem %s0, %s49
    %v51 = vld [vmem:[%s50] sm:%s3]
    %s52 = scalar_lea.vmem [#allocation0], 1072
    %53 = vst [vmem:[%s52] sm:%s3] %v51
    %s54 = smul.addr 2, 133
    %s55 = scalar_lea.vmem %s0, %s54
    %v56 = vld [vmem:[%s55] sm:%s3]
    %s57 = scalar_lea.vmem [#allocation0], 1064
    %58 = vst [vmem:[%s57] sm:%s3] %v56
    %s59 = smul.addr 2, 132
    %s60 = scalar_lea.vmem %s0, %s59
    %v61 = vld [vmem:[%s60] sm:%s3]
    %s62 = scalar_lea.vmem [#allocation0], 1056
    %63 = vst [vmem:[%s62] sm:%s3] %v61
    %s64 = smul.addr 2, 131
    %s65 = scalar_lea.vmem %s0, %s64
    %v66 = vld [vmem:[%s65] sm:%s3]
    %s67 = scalar_lea.vmem [#allocation0], 1048
    %68 = vst [vmem:[%s67] sm:%s3] %v66
    %s69 = smul.addr 2, 130
    %s70 = scalar_lea.vmem %s0, %s69
    %v71 = vld [vmem:[%s70] sm:%s3]
    %s72 = scalar_lea.vmem [#allocation0], 1040
    %73 = vst [vmem:[%s72] sm:%s3] %v71
    %s74 = smul.addr 2, 129
    %s75 = scalar_lea.vmem %s0, %s74
    %v76 = vld [vmem:[%s75] sm:%s3]
    %s77 = scalar_lea.vmem [#allocation0], 1032
    %78 = vst [vmem:[%s77] sm:%s3] %v76
    %s79 = smul.addr 2, 128
    %s80 = scalar_lea.vmem %s0, %s79
    %v81 = vld [vmem:[%s80] sm:%s3]
    %s82 = scalar_lea.vmem [#allocation0], 1024
    %83 = vst [vmem:[%s82] sm:%s3] %v81
    %s84 = smul.addr 2, 127
    %s85 = scalar_lea.vmem %s0, %s84
    %v86 = vld [vmem:[%s85] sm:%s3]
    %s87 = scalar_lea.vmem [#allocation0], 1016
    %88 = vst [vmem:[%s87] sm:%s3] %v86
    %s89 = smul.addr 2, 126
    %s90 = scalar_lea.vmem %s0, %s89
    %v91 = vld [vmem:[%s90] sm:%s3]
    %s92 = scalar_lea.vmem [#allocation0], 1008
    %93 = vst [vmem:[%s92] sm:%s3] %v91
    %s94 = smul.addr 2, 125
    %s95 = scalar_lea.vmem %s0, %s94
    %v96 = vld [vmem:[%s95] sm:%s3]
    %s97 = scalar_lea.vmem [#allocation0], 1000
    %98 = vst [vmem:[%s97] sm:%s3] %v96
    %s99 = smul.addr 2, 124
    %s100 = scalar_lea.vmem %s0, %s99
    %v101 = vld [vmem:[%s100] sm:%s3]
    %s102 = scalar_lea.vmem [#allocation0], 992
    %103 = vst [vmem:[%s102] sm:%s3] %v101
    %s104 = smul.addr 2, 123
    %s105 = scalar_lea.vmem %s0, %s104
    %v106 = vld [vmem:[%s105] sm:%s3]
    %s107 = scalar_lea.vmem [#allocation0], 984
    %108 = vst [vmem:[%s107] sm:%s3] %v106
    %s109 = smul.addr 2, 122
    %s110 = scalar_lea.vmem %s0, %s109
    %v111 = vld [vmem:[%s110] sm:%s3]
    %s112 = scalar_lea.vmem [#allocation0], 976
    %113 = vst [vmem:[%s112] sm:%s3] %v111
    %s114 = smul.addr 2, 121
    %s115 = scalar_lea.vmem %s0, %s114
    %v116 = vld [vmem:[%s115] sm:%s3]
    %s117 = scalar_lea.vmem [#allocation0], 968
    %118 = vst [vmem:[%s117] sm:%s3] %v116
    %s119 = smul.addr 2, 120
    %s120 = scalar_lea.vmem %s0, %s119
    %v121 = vld [vmem:[%s120] sm:%s3]
    %s122 = scalar_lea.vmem [#allocation0], 960
    %123 = vst [vmem:[%s122] sm:%s3] %v121
    %s124 = smul.addr 2, 119
    %s125 = scalar_lea.vmem %s0, %s124
    %v126 = vld [vmem:[%s125] sm:%s3]
    %s127 = scalar_lea.vmem [#allocation0], 952
    %128 = vst [vmem:[%s127] sm:%s3] %v126
    %s129 = smul.addr 2, 118
    %s130 = scalar_lea.vmem %s0, %s129
    %v131 = vld [vmem:[%s130] sm:%s3]
    %s132 = scalar_lea.vmem [#allocation0], 944
    %133 = vst [vmem:[%s132] sm:%s3] %v131
    %s134 = smul.addr 2, 117
    %s135 = scalar_lea.vmem %s0, %s134
    %v136 = vld [vmem:[%s135] sm:%s3]
    %s137 = scalar_lea.vmem [#allocation0], 936
    %138 = vst [vmem:[%s137] sm:%s3] %v136
    %s139 = smul.addr 2, 116
    %s140 = scalar_lea.vmem %s0, %s139
    %v141 = vld [vmem:[%s140] sm:%s3]
    %s142 = scalar_lea.vmem [#allocation0], 928
    %143 = vst [vmem:[%s142] sm:%s3] %v141
    %s144 = smul.addr 2, 115
    %s145 = scalar_lea.vmem %s0, %s144
    %v146 = vld [vmem:[%s145] sm:%s3]
    %s147 = scalar_lea.vmem [#allocation0], 920
    %148 = vst [vmem:[%s147] sm:%s3] %v146
    %s149 = smul.addr 2, 114
    %s150 = scalar_lea.vmem %s0, %s149
    %v151 = vld [vmem:[%s150] sm:%s3]
    %s152 = scalar_lea.vmem [#allocation0], 912
    %153 = vst [vmem:[%s152] sm:%s3] %v151
    %s154 = smul.addr 2, 113
    %s155 = scalar_lea.vmem %s0, %s154
    %v156 = vld [vmem:[%s155] sm:%s3]
    %s157 = scalar_lea.vmem [#allocation0], 904
    %158 = vst [vmem:[%s157] sm:%s3] %v156
    %s159 = smul.addr 2, 112
    %s160 = scalar_lea.vmem %s0, %s159
    %v161 = vld [vmem:[%s160] sm:%s3]
    %s162 = scalar_lea.vmem [#allocation0], 896
    %163 = vst [vmem:[%s162] sm:%s3] %v161
    %s164 = smul.addr 2, 111
    %s165 = scalar_lea.vmem %s0, %s164
    %v166 = vld [vmem:[%s165] sm:%s3]
    %s167 = scalar_lea.vmem [#allocation0], 888
    %168 = vst [vmem:[%s167] sm:%s3] %v166
    %s169 = smul.addr 2, 110
    %s170 = scalar_lea.vmem %s0, %s169
    %v171 = vld [vmem:[%s170] sm:%s3]
    %s172 = scalar_lea.vmem [#allocation0], 880
    %173 = vst [vmem:[%s172] sm:%s3] %v171
    %s174 = smul.addr 2, 109
    %s175 = scalar_lea.vmem %s0, %s174
    %v176 = vld [vmem:[%s175] sm:%s3]
    %s177 = scalar_lea.vmem [#allocation0], 872
    %178 = vst [vmem:[%s177] sm:%s3] %v176
    %s179 = smul.addr 2, 108
    %s180 = scalar_lea.vmem %s0, %s179
    %v181 = vld [vmem:[%s180] sm:%s3]
    %s182 = scalar_lea.vmem [#allocation0], 864
    %183 = vst [vmem:[%s182] sm:%s3] %v181
    %s184 = smul.addr 2, 107
    %s185 = scalar_lea.vmem %s0, %s184
    %v186 = vld [vmem:[%s185] sm:%s3]
    %s187 = scalar_lea.vmem [#allocation0], 856
    %188 = vst [vmem:[%s187] sm:%s3] %v186
    %s189 = smul.addr 2, 106
    %s190 = scalar_lea.vmem %s0, %s189
    %v191 = vld [vmem:[%s190] sm:%s3]
    %s192 = scalar_lea.vmem [#allocation0], 848
    %193 = vst [vmem:[%s192] sm:%s3] %v191
    %s194 = smul.addr 2, 105
    %s195 = scalar_lea.vmem %s0, %s194
    %v196 = vld [vmem:[%s195] sm:%s3]
    %s197 = scalar_lea.vmem [#allocation0], 840
    %198 = vst [vmem:[%s197] sm:%s3] %v196
    %s199 = smul.addr 2, 104
    %s200 = scalar_lea.vmem %s0, %s199
    %v201 = vld [vmem:[%s200] sm:%s3]
    %s202 = scalar_lea.vmem [#allocation0], 832
    %203 = vst [vmem:[%s202] sm:%s3] %v201
    %s204 = smul.addr 2, 103
    %s205 = scalar_lea.vmem %s0, %s204
    %v206 = vld [vmem:[%s205] sm:%s3]
    %s207 = scalar_lea.vmem [#allocation0], 824
    %208 = vst [vmem:[%s207] sm:%s3] %v206
    %s209 = smul.addr 2, 102
    %s210 = scalar_lea.vmem %s0, %s209
    %v211 = vld [vmem:[%s210] sm:%s3]
    %s212 = scalar_lea.vmem [#allocation0], 816
    %213 = vst [vmem:[%s212] sm:%s3] %v211
    %s214 = smul.addr 2, 101
    %s215 = scalar_lea.vmem %s0, %s214
    %v216 = vld [vmem:[%s215] sm:%s3]
    %s217 = scalar_lea.vmem [#allocation0], 808
    %218 = vst [vmem:[%s217] sm:%s3] %v216
    %s219 = smul.addr 2, 100
    %s220 = scalar_lea.vmem %s0, %s219
    %v221 = vld [vmem:[%s220] sm:%s3]
    %s222 = scalar_lea.vmem [#allocation0], 800
    %223 = vst [vmem:[%s222] sm:%s3] %v221
    %s224 = smul.addr 2, 99
    %s225 = scalar_lea.vmem %s0, %s224
    %v226 = vld [vmem:[%s225] sm:%s3]
    %s227 = scalar_lea.vmem [#allocation0], 792
    %228 = vst [vmem:[%s227] sm:%s3] %v226
    %s229 = smul.addr 2, 98
    %s230 = scalar_lea.vmem %s0, %s229
    %v231 = vld [vmem:[%s230] sm:%s3]
    %s232 = scalar_lea.vmem [#allocation0], 784
    %233 = vst [vmem:[%s232] sm:%s3] %v231
    %s234 = smul.addr 2, 97
    %s235 = scalar_lea.vmem %s0, %s234
    %v236 = vld [vmem:[%s235] sm:%s3]
    %s237 = scalar_lea.vmem [#allocation0], 776
    %238 = vst [vmem:[%s237] sm:%s3] %v236
    %s239 = smul.addr 2, 96
    %s240 = scalar_lea.vmem %s0, %s239
    %v241 = vld [vmem:[%s240] sm:%s3]
    %s242 = scalar_lea.vmem [#allocation0], 768
    %243 = vst [vmem:[%s242] sm:%s3] %v241
    %s244 = smul.addr 2, 95
    %s245 = scalar_lea.vmem %s0, %s244
    %v246 = vld [vmem:[%s245] sm:%s3]
    %s247 = scalar_lea.vmem [#allocation0], 760
    %248 = vst [vmem:[%s247] sm:%s3] %v246
    %s249 = smul.addr 2, 94
    %s250 = scalar_lea.vmem %s0, %s249
    %v251 = vld [vmem:[%s250] sm:%s3]
    %s252 = scalar_lea.vmem [#allocation0], 752
    %253 = vst [vmem:[%s252] sm:%s3] %v251
    %s254 = smul.addr 2, 93
    %s255 = scalar_lea.vmem %s0, %s254
    %v256 = vld [vmem:[%s255] sm:%s3]
    %s257 = scalar_lea.vmem [#allocation0], 744
    %258 = vst [vmem:[%s257] sm:%s3] %v256
    %s259 = smul.addr 2, 92
    %s260 = scalar_lea.vmem %s0, %s259
    %v261 = vld [vmem:[%s260] sm:%s3]
    %s262 = scalar_lea.vmem [#allocation0], 736
    %263 = vst [vmem:[%s262] sm:%s3] %v261
    %s264 = smul.addr 2, 91
    %s265 = scalar_lea.vmem %s0, %s264
    %v266 = vld [vmem:[%s265] sm:%s3]
    %s267 = scalar_lea.vmem [#allocation0], 728
    %268 = vst [vmem:[%s267] sm:%s3] %v266
    %s269 = smul.addr 2, 90
    %s270 = scalar_lea.vmem %s0, %s269
    %v271 = vld [vmem:[%s270] sm:%s3]
    %s272 = scalar_lea.vmem [#allocation0], 720
    %273 = vst [vmem:[%s272] sm:%s3] %v271
    %s274 = smul.addr 2, 89
    %s275 = scalar_lea.vmem %s0, %s274
    %v276 = vld [vmem:[%s275] sm:%s3]
    %s277 = scalar_lea.vmem [#allocation0], 712
    %278 = vst [vmem:[%s277] sm:%s3] %v276
    %s279 = smul.addr 2, 88
    %s280 = scalar_lea.vmem %s0, %s279
    %v281 = vld [vmem:[%s280] sm:%s3]
    %s282 = scalar_lea.vmem [#allocation0], 704
    %283 = vst [vmem:[%s282] sm:%s3] %v281
    %s284 = smul.addr 2, 87
    %s285 = scalar_lea.vmem %s0, %s284
    %v286 = vld [vmem:[%s285] sm:%s3]
    %s287 = scalar_lea.vmem [#allocation0], 696
    %288 = vst [vmem:[%s287] sm:%s3] %v286
    %s289 = smul.addr 2, 86
    %s290 = scalar_lea.vmem %s0, %s289
    %v291 = vld [vmem:[%s290] sm:%s3]
    %s292 = scalar_lea.vmem [#allocation0], 688
    %293 = vst [vmem:[%s292] sm:%s3] %v291
    %s294 = smul.addr 2, 85
    %s295 = scalar_lea.vmem %s0, %s294
    %v296 = vld [vmem:[%s295] sm:%s3]
    %s297 = scalar_lea.vmem [#allocation0], 680
    %298 = vst [vmem:[%s297] sm:%s3] %v296
    %s299 = smul.addr 2, 84
    %s300 = scalar_lea.vmem %s0, %s299
    %v301 = vld [vmem:[%s300] sm:%s3]
    %s302 = scalar_lea.vmem [#allocation0], 672
    %303 = vst [vmem:[%s302] sm:%s3] %v301
    %s304 = smul.addr 2, 83
    %s305 = scalar_lea.vmem %s0, %s304
    %v306 = vld [vmem:[%s305] sm:%s3]
    %s307 = scalar_lea.vmem [#allocation0], 664
    %308 = vst [vmem:[%s307] sm:%s3] %v306
    %s309 = smul.addr 2, 82
    %s310 = scalar_lea.vmem %s0, %s309
    %v311 = vld [vmem:[%s310] sm:%s3]
    %s312 = scalar_lea.vmem [#allocation0], 656
    %313 = vst [vmem:[%s312] sm:%s3] %v311
    %s314 = smul.addr 2, 81
    %s315 = scalar_lea.vmem %s0, %s314
    %v316 = vld [vmem:[%s315] sm:%s3]
    %s317 = scalar_lea.vmem [#allocation0], 648
    %318 = vst [vmem:[%s317] sm:%s3] %v316
    %s319 = smul.addr 2, 80
    %s320 = scalar_lea.vmem %s0, %s319
    %v321 = vld [vmem:[%s320] sm:%s3]
    %s322 = scalar_lea.vmem [#allocation0], 640
    %323 = vst [vmem:[%s322] sm:%s3] %v321
    %s324 = smul.addr 2, 79
    %s325 = scalar_lea.vmem %s0, %s324
    %v326 = vld [vmem:[%s325] sm:%s3]
    %s327 = scalar_lea.vmem [#allocation0], 632
    %328 = vst [vmem:[%s327] sm:%s3] %v326
    %s329 = smul.addr 2, 78
    %s330 = scalar_lea.vmem %s0, %s329
    %v331 = vld [vmem:[%s330] sm:%s3]
    %s332 = scalar_lea.vmem [#allocation0], 624
    %333 = vst [vmem:[%s332] sm:%s3] %v331
    %s334 = smul.addr 2, 77
    %s335 = scalar_lea.vmem %s0, %s334
    %v336 = vld [vmem:[%s335] sm:%s3]
    %s337 = scalar_lea.vmem [#allocation0], 616
    %338 = vst [vmem:[%s337] sm:%s3] %v336
    %s339 = smul.addr 2, 76
    %s340 = scalar_lea.vmem %s0, %s339
    %v341 = vld [vmem:[%s340] sm:%s3]
    %s342 = scalar_lea.vmem [#allocation0], 608
    %343 = vst [vmem:[%s342] sm:%s3] %v341
    %s344 = smul.addr 2, 75
    %s345 = scalar_lea.vmem %s0, %s344
    %v346 = vld [vmem:[%s345] sm:%s3]
    %s347 = scalar_lea.vmem [#allocation0], 600
    %348 = vst [vmem:[%s347] sm:%s3] %v346
    %s349 = smul.addr 2, 74
    %s350 = scalar_lea.vmem %s0, %s349
    %v351 = vld [vmem:[%s350] sm:%s3]
    %s352 = scalar_lea.vmem [#allocation0], 592
    %353 = vst [vmem:[%s352] sm:%s3] %v351
    %s354 = smul.addr 2, 73
    %s355 = scalar_lea.vmem %s0, %s354
    %v356 = vld [vmem:[%s355] sm:%s3]
    %s357 = scalar_lea.vmem [#allocation0], 584
    %358 = vst [vmem:[%s357] sm:%s3] %v356
    %s359 = smul.addr 2, 72
    %s360 = scalar_lea.vmem %s0, %s359
    %v361 = vld [vmem:[%s360] sm:%s3]
    %s362 = scalar_lea.vmem [#allocation0], 576
    %363 = vst [vmem:[%s362] sm:%s3] %v361
    %s364 = smul.addr 2, 71
    %s365 = scalar_lea.vmem %s0, %s364
    %v366 = vld [vmem:[%s365] sm:%s3]
    %s367 = scalar_lea.vmem [#allocation0], 568
    %368 = vst [vmem:[%s367] sm:%s3] %v366
    %s369 = smul.addr 2, 70
    %s370 = scalar_lea.vmem %s0, %s369
    %v371 = vld [vmem:[%s370] sm:%s3]
    %s372 = scalar_lea.vmem [#allocation0], 560
    %373 = vst [vmem:[%s372] sm:%s3] %v371
    %s374 = smul.addr 2, 69
    %s375 = scalar_lea.vmem %s0, %s374
    %v376 = vld [vmem:[%s375] sm:%s3]
    %s377 = scalar_lea.vmem [#allocation0], 552
    %378 = vst [vmem:[%s377] sm:%s3] %v376
    %s379 = smul.addr 2, 68
    %s380 = scalar_lea.vmem %s0, %s379
    %v381 = vld [vmem:[%s380] sm:%s3]
    %s382 = scalar_lea.vmem [#allocation0], 544
    %383 = vst [vmem:[%s382] sm:%s3] %v381
    %s384 = smul.addr 2, 67
    %s385 = scalar_lea.vmem %s0, %s384
    %v386 = vld [vmem:[%s385] sm:%s3]
    %s387 = scalar_lea.vmem [#allocation0], 536
    %388 = vst [vmem:[%s387] sm:%s3] %v386
    %s389 = smul.addr 2, 66
    %s390 = scalar_lea.vmem %s0, %s389
    %v391 = vld [vmem:[%s390] sm:%s3]
    %s392 = scalar_lea.vmem [#allocation0], 528
    %393 = vst [vmem:[%s392] sm:%s3] %v391
    %s394 = smul.addr 2, 65
    %s395 = scalar_lea.vmem %s0, %s394
    %v396 = vld [vmem:[%s395] sm:%s3]
    %s397 = scalar_lea.vmem [#allocation0], 520
    %398 = vst [vmem:[%s397] sm:%s3] %v396
    %s399 = smul.addr 2, 64
    %s400 = scalar_lea.vmem %s0, %s399
    %v401 = vld [vmem:[%s400] sm:%s3]
    %s402 = scalar_lea.vmem [#allocation0], 512
    %403 = vst [vmem:[%s402] sm:%s3] %v401
    %s404 = smul.addr 2, 63
    %s405 = scalar_lea.vmem %s0, %s404
    %v406 = vld [vmem:[%s405] sm:%s3]
    %s407 = scalar_lea.vmem [#allocation0], 504
    %408 = vst [vmem:[%s407] sm:%s3] %v406
    %s409 = smul.addr 2, 62
    %s410 = scalar_lea.vmem %s0, %s409
    %v411 = vld [vmem:[%s410] sm:%s3]
    %s412 = scalar_lea.vmem [#allocation0], 496
    %413 = vst [vmem:[%s412] sm:%s3] %v411
    %s414 = smul.addr 2, 61
    %s415 = scalar_lea.vmem %s0, %s414
    %v416 = vld [vmem:[%s415] sm:%s3]
    %s417 = scalar_lea.vmem [#allocation0], 488
    %418 = vst [vmem:[%s417] sm:%s3] %v416
    %s419 = smul.addr 2, 60
    %s420 = scalar_lea.vmem %s0, %s419
    %v421 = vld [vmem:[%s420] sm:%s3]
    %s422 = scalar_lea.vmem [#allocation0], 480
    %423 = vst [vmem:[%s422] sm:%s3] %v421
    %s424 = smul.addr 2, 59
    %s425 = scalar_lea.vmem %s0, %s424
    %v426 = vld [vmem:[%s425] sm:%s3]
    %s427 = scalar_lea.vmem [#allocation0], 472
    %428 = vst [vmem:[%s427] sm:%s3] %v426
    %s429 = smul.addr 2, 58
    %s430 = scalar_lea.vmem %s0, %s429
    %v431 = vld [vmem:[%s430] sm:%s3]
    %s432 = scalar_lea.vmem [#allocation0], 464
    %433 = vst [vmem:[%s432] sm:%s3] %v431
    %s434 = smul.addr 2, 57
    %s435 = scalar_lea.vmem %s0, %s434
    %v436 = vld [vmem:[%s435] sm:%s3]
    %s437 = scalar_lea.vmem [#allocation0], 456
    %438 = vst [vmem:[%s437] sm:%s3] %v436
    %s439 = smul.addr 2, 56
    %s440 = scalar_lea.vmem %s0, %s439
    %v441 = vld [vmem:[%s440] sm:%s3]
    %s442 = scalar_lea.vmem [#allocation0], 448
    %443 = vst [vmem:[%s442] sm:%s3] %v441
    %s444 = smul.addr 2, 55
    %s445 = scalar_lea.vmem %s0, %s444
    %v446 = vld [vmem:[%s445] sm:%s3]
    %s447 = scalar_lea.vmem [#allocation0], 440
    %448 = vst [vmem:[%s447] sm:%s3] %v446
    %s449 = smul.addr 2, 54
    %s450 = scalar_lea.vmem %s0, %s449
    %v451 = vld [vmem:[%s450] sm:%s3]
    %s452 = scalar_lea.vmem [#allocation0], 432
    %453 = vst [vmem:[%s452] sm:%s3] %v451
    %s454 = smul.addr 2, 53
    %s455 = scalar_lea.vmem %s0, %s454
    %v456 = vld [vmem:[%s455] sm:%s3]
    %s457 = scalar_lea.vmem [#allocation0], 424
    %458 = vst [vmem:[%s457] sm:%s3] %v456
    %s459 = smul.addr 2, 52
    %s460 = scalar_lea.vmem %s0, %s459
    %v461 = vld [vmem:[%s460] sm:%s3]
    %s462 = scalar_lea.vmem [#allocation0], 416
    %463 = vst [vmem:[%s462] sm:%s3] %v461
    %s464 = smul.addr 2, 51
    %s465 = scalar_lea.vmem %s0, %s464
    %v466 = vld [vmem:[%s465] sm:%s3]
    %s467 = scalar_lea.vmem [#allocation0], 408
    %468 = vst [vmem:[%s467] sm:%s3] %v466
    %s469 = smul.addr 2, 50
    %s470 = scalar_lea.vmem %s0, %s469
    %v471 = vld [vmem:[%s470] sm:%s3]
    %s472 = scalar_lea.vmem [#allocation0], 400
    %473 = vst [vmem:[%s472] sm:%s3] %v471
    %s474 = smul.addr 2, 49
    %s475 = scalar_lea.vmem %s0, %s474
    %v476 = vld [vmem:[%s475] sm:%s3]
    %s477 = scalar_lea.vmem [#allocation0], 392
    %478 = vst [vmem:[%s477] sm:%s3] %v476
    %s479 = smul.addr 2, 48
    %s480 = scalar_lea.vmem %s0, %s479
    %v481 = vld [vmem:[%s480] sm:%s3]
    %s482 = scalar_lea.vmem [#allocation0], 384
    %483 = vst [vmem:[%s482] sm:%s3] %v481
    %s484 = smul.addr 2, 47
    %s485 = scalar_lea.vmem %s0, %s484
    %v486 = vld [vmem:[%s485] sm:%s3]
    %s487 = scalar_lea.vmem [#allocation0], 376
    %488 = vst [vmem:[%s487] sm:%s3] %v486
    %s489 = smul.addr 2, 46
    %s490 = scalar_lea.vmem %s0, %s489
    %v491 = vld [vmem:[%s490] sm:%s3]
    %s492 = scalar_lea.vmem [#allocation0], 368
    %493 = vst [vmem:[%s492] sm:%s3] %v491
    %s494 = smul.addr 2, 45
    %s495 = scalar_lea.vmem %s0, %s494
    %v496 = vld [vmem:[%s495] sm:%s3]
    %s497 = scalar_lea.vmem [#allocation0], 360
    %498 = vst [vmem:[%s497] sm:%s3] %v496
    %s499 = smul.addr 2, 44
    %s500 = scalar_lea.vmem %s0, %s499
    %v501 = vld [vmem:[%s500] sm:%s3]
    %s502 = scalar_lea.vmem [#allocation0], 352
    %503 = vst [vmem:[%s502] sm:%s3] %v501
    %s504 = smul.addr 2, 43
    %s505 = scalar_lea.vmem %s0, %s504
    %v506 = vld [vmem:[%s505] sm:%s3]
    %s507 = scalar_lea.vmem [#allocation0], 344
    %508 = vst [vmem:[%s507] sm:%s3] %v506
    %s509 = smul.addr 2, 42
    %s510 = scalar_lea.vmem %s0, %s509
    %v511 = vld [vmem:[%s510] sm:%s3]
    %s512 = scalar_lea.vmem [#allocation0], 336
    %513 = vst [vmem:[%s512] sm:%s3] %v511
    %s514 = smul.addr 2, 41
    %s515 = scalar_lea.vmem %s0, %s514
    %v516 = vld [vmem:[%s515] sm:%s3]
    %s517 = scalar_lea.vmem [#allocation0], 328
    %518 = vst [vmem:[%s517] sm:%s3] %v516
    %s519 = smul.addr 2, 40
    %s520 = scalar_lea.vmem %s0, %s519
    %v521 = vld [vmem:[%s520] sm:%s3]
    %s522 = scalar_lea.vmem [#allocation0], 320
    %523 = vst [vmem:[%s522] sm:%s3] %v521
    %s524 = smul.addr 2, 39
    %s525 = scalar_lea.vmem %s0, %s524
    %v526 = vld [vmem:[%s525] sm:%s3]
    %s527 = scalar_lea.vmem [#allocation0], 312
    %528 = vst [vmem:[%s527] sm:%s3] %v526
    %s529 = smul.addr 2, 38
    %s530 = scalar_lea.vmem %s0, %s529
    %v531 = vld [vmem:[%s530] sm:%s3]
    %s532 = scalar_lea.vmem [#allocation0], 304
    %533 = vst [vmem:[%s532] sm:%s3] %v531
    %s534 = smul.addr 2, 37
    %s535 = scalar_lea.vmem %s0, %s534
    %v536 = vld [vmem:[%s535] sm:%s3]
    %s537 = scalar_lea.vmem [#allocation0], 296
    %538 = vst [vmem:[%s537] sm:%s3] %v536
    %s539 = smul.addr 2, 36
    %s540 = scalar_lea.vmem %s0, %s539
    %v541 = vld [vmem:[%s540] sm:%s3]
    %s542 = scalar_lea.vmem [#allocation0], 288
    %543 = vst [vmem:[%s542] sm:%s3] %v541
    %s544 = smul.addr 2, 35
    %s545 = scalar_lea.vmem %s0, %s544
    %v546 = vld [vmem:[%s545] sm:%s3]
    %s547 = scalar_lea.vmem [#allocation0], 280
    %548 = vst [vmem:[%s547] sm:%s3] %v546
    %s549 = smul.addr 2, 34
    %s550 = scalar_lea.vmem %s0, %s549
    %v551 = vld [vmem:[%s550] sm:%s3]
    %s552 = scalar_lea.vmem [#allocation0], 272
    %553 = vst [vmem:[%s552] sm:%s3] %v551
    %s554 = smul.addr 2, 33
    %s555 = scalar_lea.vmem %s0, %s554
    %v556 = vld [vmem:[%s555] sm:%s3]
    %s557 = scalar_lea.vmem [#allocation0], 264
    %558 = vst [vmem:[%s557] sm:%s3] %v556
    %s559 = smul.addr 2, 32
    %s560 = scalar_lea.vmem %s0, %s559
    %v561 = vld [vmem:[%s560] sm:%s3]
    %s562 = scalar_lea.vmem [#allocation0], 256
    %563 = vst [vmem:[%s562] sm:%s3] %v561
    %s564 = smul.addr 2, 31
    %s565 = scalar_lea.vmem %s0, %s564
    %v566 = vld [vmem:[%s565] sm:%s3]
    %s567 = scalar_lea.vmem [#allocation0], 248
    %568 = vst [vmem:[%s567] sm:%s3] %v566
    %s569 = smul.addr 2, 30
    %s570 = scalar_lea.vmem %s0, %s569
    %v571 = vld [vmem:[%s570] sm:%s3]
    %s572 = scalar_lea.vmem [#allocation0], 240
    %573 = vst [vmem:[%s572] sm:%s3] %v571
    %s574 = smul.addr 2, 29
    %s575 = scalar_lea.vmem %s0, %s574
    %v576 = vld [vmem:[%s575] sm:%s3]
    %s577 = scalar_lea.vmem [#allocation0], 232
    %578 = vst [vmem:[%s577] sm:%s3] %v576
    %s579 = smul.addr 2, 28
    %s580 = scalar_lea.vmem %s0, %s579
    %v581 = vld [vmem:[%s580] sm:%s3]
    %s582 = scalar_lea.vmem [#allocation0], 224
    %583 = vst [vmem:[%s582] sm:%s3] %v581
    %s584 = smul.addr 2, 27
    %s585 = scalar_lea.vmem %s0, %s584
    %v586 = vld [vmem:[%s585] sm:%s3]
    %s587 = scalar_lea.vmem [#allocation0], 216
    %588 = vst [vmem:[%s587] sm:%s3] %v586
    %s589 = smul.addr 2, 26
    %s590 = scalar_lea.vmem %s0, %s589
    %v591 = vld [vmem:[%s590] sm:%s3]
    %s592 = scalar_lea.vmem [#allocation0], 208
    %593 = vst [vmem:[%s592] sm:%s3] %v591
    %s594 = smul.addr 2, 25
    %s595 = scalar_lea.vmem %s0, %s594
    %v596 = vld [vmem:[%s595] sm:%s3]
    %s597 = scalar_lea.vmem [#allocation0], 200
    %598 = vst [vmem:[%s597] sm:%s3] %v596
    %s599 = smul.addr 2, 24
    %s600 = scalar_lea.vmem %s0, %s599
    %v601 = vld [vmem:[%s600] sm:%s3]
    %s602 = scalar_lea.vmem [#allocation0], 192
    %603 = vst [vmem:[%s602] sm:%s3] %v601
    %s604 = smul.addr 2, 23
    %s605 = scalar_lea.vmem %s0, %s604
    %v606 = vld [vmem:[%s605] sm:%s3]
    %s607 = scalar_lea.vmem [#allocation0], 184
    %608 = vst [vmem:[%s607] sm:%s3] %v606
    %s609 = smul.addr 2, 22
    %s610 = scalar_lea.vmem %s0, %s609
    %v611 = vld [vmem:[%s610] sm:%s3]
    %s612 = scalar_lea.vmem [#allocation0], 176
    %613 = vst [vmem:[%s612] sm:%s3] %v611
    %s614 = smul.addr 2, 21
    %s615 = scalar_lea.vmem %s0, %s614
    %v616 = vld [vmem:[%s615] sm:%s3]
    %s617 = scalar_lea.vmem [#allocation0], 168
    %618 = vst [vmem:[%s617] sm:%s3] %v616
    %s619 = smul.addr 2, 20
    %s620 = scalar_lea.vmem %s0, %s619
    %v621 = vld [vmem:[%s620] sm:%s3]
    %s622 = scalar_lea.vmem [#allocation0], 160
    %623 = vst [vmem:[%s622] sm:%s3] %v621
    %s624 = smul.addr 2, 19
    %s625 = scalar_lea.vmem %s0, %s624
    %v626 = vld [vmem:[%s625] sm:%s3]
    %s627 = scalar_lea.vmem [#allocation0], 152
    %628 = vst [vmem:[%s627] sm:%s3] %v626
    %s629 = smul.addr 2, 18
    %s630 = scalar_lea.vmem %s0, %s629
    %v631 = vld [vmem:[%s630] sm:%s3]
    %s632 = scalar_lea.vmem [#allocation0], 144
    %633 = vst [vmem:[%s632] sm:%s3] %v631
    %s634 = smul.addr 2, 17
    %s635 = scalar_lea.vmem %s0, %s634
    %v636 = vld [vmem:[%s635] sm:%s3]
    %s637 = scalar_lea.vmem [#allocation0], 136
    %638 = vst [vmem:[%s637] sm:%s3] %v636
    %s639 = smul.addr 2, 16
    %s640 = scalar_lea.vmem %s0, %s639
    %v641 = vld [vmem:[%s640] sm:%s3]
    %s642 = scalar_lea.vmem [#allocation0], 128
    %643 = vst [vmem:[%s642] sm:%s3] %v641
    %s644 = smul.addr 2, 15
    %s645 = scalar_lea.vmem %s0, %s644
    %v646 = vld [vmem:[%s645] sm:%s3]
    %s647 = scalar_lea.vmem [#allocation0], 120
    %648 = vst [vmem:[%s647] sm:%s3] %v646
    %s649 = smul.addr 2, 14
    %s650 = scalar_lea.vmem %s0, %s649
    %v651 = vld [vmem:[%s650] sm:%s3]
    %s652 = scalar_lea.vmem [#allocation0], 112
    %653 = vst [vmem:[%s652] sm:%s3] %v651
    %s654 = smul.addr 2, 13
    %s655 = scalar_lea.vmem %s0, %s654
    %v656 = vld [vmem:[%s655] sm:%s3]
    %s657 = scalar_lea.vmem [#allocation0], 104
    %658 = vst [vmem:[%s657] sm:%s3] %v656
    %s659 = smul.addr 2, 12
    %s660 = scalar_lea.vmem %s0, %s659
    %v661 = vld [vmem:[%s660] sm:%s3]
    %s662 = scalar_lea.vmem [#allocation0], 96
    %663 = vst [vmem:[%s662] sm:%s3] %v661
    %s664 = smul.addr 2, 11
    %s665 = scalar_lea.vmem %s0, %s664
    %v666 = vld [vmem:[%s665] sm:%s3]
    %s667 = scalar_lea.vmem [#allocation0], 88
    %668 = vst [vmem:[%s667] sm:%s3] %v666
    %s669 = smul.addr 2, 10
    %s670 = scalar_lea.vmem %s0, %s669
    %v671 = vld [vmem:[%s670] sm:%s3]
    %s672 = scalar_lea.vmem [#allocation0], 80
    %673 = vst [vmem:[%s672] sm:%s3] %v671
    %s674 = smul.addr 2, 9
    %s675 = scalar_lea.vmem %s0, %s674
    %v676 = vld [vmem:[%s675] sm:%s3]
    %s677 = scalar_lea.vmem [#allocation0], 72
    %678 = vst [vmem:[%s677] sm:%s3] %v676
    %s679 = smul.addr 2, 8
    %s680 = scalar_lea.vmem %s0, %s679
    %v681 = vld [vmem:[%s680] sm:%s3]
    %s682 = scalar_lea.vmem [#allocation0], 64
    %683 = vst [vmem:[%s682] sm:%s3] %v681
    %s684 = smul.addr 2, 7
    %s685 = scalar_lea.vmem %s0, %s684
    %v686 = vld [vmem:[%s685] sm:%s3]
    %s687 = scalar_lea.vmem [#allocation0], 56
    %688 = vst [vmem:[%s687] sm:%s3] %v686
    %s689 = smul.addr 2, 6
    %s690 = scalar_lea.vmem %s0, %s689
    %v691 = vld [vmem:[%s690] sm:%s3]
    %s692 = scalar_lea.vmem [#allocation0], 48
    %693 = vst [vmem:[%s692] sm:%s3] %v691
    %s694 = smul.addr 2, 5
    %s695 = scalar_lea.vmem %s0, %s694
    %v696 = vld [vmem:[%s695] sm:%s3]
    %s697 = scalar_lea.vmem [#allocation0], 40
    %698 = vst [vmem:[%s697] sm:%s3] %v696
    %s699 = smul.addr 2, 4
    %s700 = scalar_lea.vmem %s0, %s699
    %v701 = vld [vmem:[%s700] sm:%s3]
    %s702 = scalar_lea.vmem [#allocation0], 32
    %703 = vst [vmem:[%s702] sm:%s3] %v701
    %s704 = smul.addr 2, 3
    %s705 = scalar_lea.vmem %s0, %s704
    %v706 = vld [vmem:[%s705] sm:%s3]
    %s707 = scalar_lea.vmem [#allocation0], 24
    %708 = vst [vmem:[%s707] sm:%s3] %v706
    %s709 = smul.addr 2, 2
    %s710 = scalar_lea.vmem %s0, %s709
    %v711 = vld [vmem:[%s710] sm:%s3]
    %s712 = scalar_lea.vmem [#allocation0], 16
    %713 = vst [vmem:[%s712] sm:%s3] %v711
    %s714 = scalar_lea.vmem %s0, 2
    %v715 = vld [vmem:[%s714] sm:%s3]
    %s716 = scalar_lea.vmem [#allocation0], 8
    %717 = vst [vmem:[%s716] sm:%s3] %v715
    %v718 = vld [vmem:[%s0] sm:%s3]
    %719 = vst [vmem:[#allocation0] sm:%s3] %v718
    %v720 = vld [vmem:[#allocation0] ss:$8 sm:$0xf]
    %v721 = vld [vmem:[#allocation0] ss:$8 sm:$0xf0]
    %vm722 = vcmask 1047556
    %v723 = vsel %vm722, %v721, %v720
    %vm724 = vcmask 523264
    %725 = vst.msk [vmem:[%s1] sm:$0xff] %vm724, %v723
    %s726 = scalar_lea.vmem [#allocation0], 64
    %v727 = vld [vmem:[%s726] ss:$8 sm:$0xf]
    %s728 = scalar_lea.vmem [#allocation0], 64
    %v729 = vld [vmem:[%s728] ss:$8 sm:$0xf0]
    %vm730 = vcmask 1047556
    %v731 = vsel %vm730, %v729, %v727
    %vm732 = vcmask 523264
    %s733 = scalar_lea.vmem %s1, 8
    %734 = vst.msk [vmem:[%s733] sm:$0xff] %vm732, %v731
    %s735 = scalar_lea.vmem [#allocation0], 128
    %v736 = vld [vmem:[%s735] ss:$8 sm:$0xf]
    %s737 = scalar_lea.vmem [#allocation0], 128
    %v738 = vld [vmem:[%s737] ss:$8 sm:$0xf0]
    %vm739 = vcmask 1047556
    %v740 = vsel %vm739, %v738, %v736
    %vm741 = vcmask 523264
    %s742 = scalar_lea.vmem %s1, 16
    %743 = vst.msk [vmem:[%s742] sm:$0xff] %vm741, %v740
    %s744 = scalar_lea.vmem [#allocation0], 192
    %v745 = vld [vmem:[%s744] ss:$8 sm:$0xf]
    %s746 = scalar_lea.vmem [#allocation0], 192
    %v747 = vld [vmem:[%s746] ss:$8 sm:$0xf0]
    %vm748 = vcmask 1047556
    %v749 = vsel %vm748, %v747, %v745
    %vm750 = vcmask 523264
    %s751 = scalar_lea.vmem %s1, 24
    %752 = vst.msk [vmem:[%s751] sm:$0xff] %vm750, %v749
    %s753 = scalar_lea.vmem [#allocation0], 256
    %v754 = vld [vmem:[%s753] ss:$8 sm:$0xf]
    %s755 = scalar_lea.vmem [#allocation0], 256
    %v756 = vld [vmem:[%s755] ss:$8 sm:$0xf0]
    %vm757 = vcmask 1047556
    %v758 = vsel %vm757, %v756, %v754
    %vm759 = vcmask 523264
    %s760 = scalar_lea.vmem %s1, 32
    %761 = vst.msk [vmem:[%s760] sm:$0xff] %vm759, %v758
    %s762 = scalar_lea.vmem [#allocation0], 320
    %v763 = vld [vmem:[%s762] ss:$8 sm:$0xf]
    %s764 = scalar_lea.vmem [#allocation0], 320
    %v765 = vld [vmem:[%s764] ss:$8 sm:$0xf0]
    %vm766 = vcmask 1047556
    %v767 = vsel %vm766, %v765, %v763
    %vm768 = vcmask 523264
    %s769 = scalar_lea.vmem %s1, 40
    %770 = vst.msk [vmem:[%s769] sm:$0xff] %vm768, %v767
    %s771 = scalar_lea.vmem [#allocation0], 384
    %v772 = vld [vmem:[%s771] ss:$8 sm:$0xf]
    %s773 = scalar_lea.vmem [#allocation0], 384
    %v774 = vld [vmem:[%s773] ss:$8 sm:$0xf0]
    %vm775 = vcmask 1047556
    %v776 = vsel %vm775, %v774, %v772
    %vm777 = vcmask 523264
    %s778 = scalar_lea.vmem %s1, 48
    %779 = vst.msk [vmem:[%s778] sm:$0xff] %vm777, %v776
    %s780 = scalar_lea.vmem [#allocation0], 448
    %v781 = vld [vmem:[%s780] ss:$8 sm:$0xf]
    %s782 = scalar_lea.vmem [#allocation0], 448
    %v783 = vld [vmem:[%s782] ss:$8 sm:$0xf0]
    %vm784 = vcmask 1047556
    %v785 = vsel %vm784, %v783, %v781
    %vm786 = vcmask 523264
    %s787 = scalar_lea.vmem %s1, 56
    %788 = vst.msk [vmem:[%s787] sm:$0xff] %vm786, %v785
    %s789 = scalar_lea.vmem [#allocation0], 512
    %v790 = vld [vmem:[%s789] ss:$8 sm:$0xf]
    %s791 = scalar_lea.vmem [#allocation0], 512
    %v792 = vld [vmem:[%s791] ss:$8 sm:$0xf0]
    %vm793 = vcmask 1047556
    %v794 = vsel %vm793, %v792, %v790
    %vm795 = vcmask 523264
    %s796 = scalar_lea.vmem %s1, 64
    %797 = vst.msk [vmem:[%s796] sm:$0xff] %vm795, %v794
    %s798 = scalar_lea.vmem [#allocation0], 576
    %v799 = vld [vmem:[%s798] ss:$8 sm:$0xf]
    %s800 = scalar_lea.vmem [#allocation0], 576
    %v801 = vld [vmem:[%s800] ss:$8 sm:$0xf0]
    %vm802 = vcmask 1047556
    %v803 = vsel %vm802, %v801, %v799
    %vm804 = vcmask 523264
    %s805 = scalar_lea.vmem %s1, 72
    %806 = vst.msk [vmem:[%s805] sm:$0xff] %vm804, %v803
    %s807 = scalar_lea.vmem [#allocation0], 640
    %v808 = vld [vmem:[%s807] ss:$8 sm:$0xf]
    %s809 = scalar_lea.vmem [#allocation0], 640
    %v810 = vld [vmem:[%s809] ss:$8 sm:$0xf0]
    %vm811 = vcmask 1047556
    %v812 = vsel %vm811, %v810, %v808
    %vm813 = vcmask 523264
    %s814 = scalar_lea.vmem %s1, 80
    %815 = vst.msk [vmem:[%s814] sm:$0xff] %vm813, %v812
    %s816 = scalar_lea.vmem [#allocation0], 704
    %v817 = vld [vmem:[%s816] ss:$8 sm:$0xf]
    %s818 = scalar_lea.vmem [#allocation0], 704
    %v819 = vld [vmem:[%s818] ss:$8 sm:$0xf0]
    %vm820 = vcmask 1047556
    %v821 = vsel %vm820, %v819, %v817
    %vm822 = vcmask 523264
    %s823 = scalar_lea.vmem %s1, 88
    %824 = vst.msk [vmem:[%s823] sm:$0xff] %vm822, %v821
    %s825 = scalar_lea.vmem [#allocation0], 768
    %v826 = vld [vmem:[%s825] ss:$8 sm:$0xf]
    %s827 = scalar_lea.vmem [#allocation0], 768
    %v828 = vld [vmem:[%s827] ss:$8 sm:$0xf0]
    %vm829 = vcmask 1047556
    %v830 = vsel %vm829, %v828, %v826
    %vm831 = vcmask 523264
    %s832 = scalar_lea.vmem %s1, 96
    %833 = vst.msk [vmem:[%s832] sm:$0xff] %vm831, %v830
    %s834 = scalar_lea.vmem [#allocation0], 832
    %v835 = vld [vmem:[%s834] ss:$8 sm:$0xf]
    %s836 = scalar_lea.vmem [#allocation0], 832
    %v837 = vld [vmem:[%s836] ss:$8 sm:$0xf0]
    %vm838 = vcmask 1047556
    %v839 = vsel %vm838, %v837, %v835
    %vm840 = vcmask 523264
    %s841 = scalar_lea.vmem %s1, 104
    %842 = vst.msk [vmem:[%s841] sm:$0xff] %vm840, %v839
    %s843 = scalar_lea.vmem [#allocation0], 896
    %v844 = vld [vmem:[%s843] ss:$8 sm:$0xf]
    %s845 = scalar_lea.vmem [#allocation0], 896
    %v846 = vld [vmem:[%s845] ss:$8 sm:$0xf0]
    %vm847 = vcmask 1047556
    %v848 = vsel %vm847, %v846, %v844
    %vm849 = vcmask 523264
    %s850 = scalar_lea.vmem %s1, 112
    %851 = vst.msk [vmem:[%s850] sm:$0xff] %vm849, %v848
    %s852 = scalar_lea.vmem [#allocation0], 960
    %v853 = vld [vmem:[%s852] ss:$8 sm:$0xf]
    %s854 = scalar_lea.vmem [#allocation0], 960
    %v855 = vld [vmem:[%s854] ss:$8 sm:$0xf0]
    %vm856 = vcmask 1047556
    %v857 = vsel %vm856, %v855, %v853
    %vm858 = vcmask 523264
    %s859 = scalar_lea.vmem %s1, 120
    %860 = vst.msk [vmem:[%s859] sm:$0xff] %vm858, %v857
    %s861 = scalar_lea.vmem [#allocation0], 1024
    %v862 = vld [vmem:[%s861] ss:$8 sm:$0xf]
    %s863 = scalar_lea.vmem [#allocation0], 1024
    %v864 = vld [vmem:[%s863] ss:$8 sm:$0xf0]
    %vm865 = vcmask 1047556
    %v866 = vsel %vm865, %v864, %v862
    %vm867 = vcmask 523264
    %s868 = scalar_lea.vmem %s1, 128
    %869 = vst.msk [vmem:[%s868] sm:$0xff] %vm867, %v866
    %s870 = scalar_lea.vmem [#allocation0], 1088
    %v871 = vld [vmem:[%s870] ss:$8 sm:$0xf]
    %s872 = scalar_lea.vmem [#allocation0], 1088
    %v873 = vld [vmem:[%s872] ss:$8 sm:$0xf0]
    %vm874 = vcmask 1047556
    %v875 = vsel %vm874, %v873, %v871
    %vm876 = vcmask 523264
    %s877 = scalar_lea.vmem %s1, 136
    %878 = vst.msk [vmem:[%s877] sm:$0xff] %vm876, %v875
    %s879 = scalar_lea.vmem [#allocation0], 1
    %v880 = vld [vmem:[%s879] ss:$8 sm:$0xf]
    %s881 = scalar_lea.vmem [#allocation0], 1
    %v882 = vld [vmem:[%s881] ss:$8 sm:$0xf0]
    %vm883 = vcmask 1047556
    %v884 = vsel %vm883, %v882, %v880
    %885 = vrot.lane.b32.xlu0 %v884, 64
    %v886 = vpop.permute.xlu0 %885
    %vm887 = vcmask 1048064
    %888 = vst.msk [vmem:[%s1] sm:$0xff] %vm887, %v886
    %s889 = scalar_lea.vmem [#allocation0], 257
    %v890 = vld [vmem:[%s889] ss:$8 sm:$0xf]
    %s891 = scalar_lea.vmem [#allocation0], 257
    %v892 = vld [vmem:[%s891] ss:$8 sm:$0xf0]
    %vm893 = vcmask 1047556
    %v894 = vsel %vm893, %v892, %v890
    %895 = vrot.lane.b32.xlu0 %v894, 64
    %v896 = vpop.permute.xlu0 %895
    %vm897 = vcmask 1048064
    %s898 = scalar_lea.vmem %s1, 32
    %899 = vst.msk [vmem:[%s898] sm:$0xff] %vm897, %v896
    %s900 = scalar_lea.vmem [#allocation0], 513
    %v901 = vld [vmem:[%s900] ss:$8 sm:$0xf]
    %s902 = scalar_lea.vmem [#allocation0], 513
    %v903 = vld [vmem:[%s902] ss:$8 sm:$0xf0]
    %vm904 = vcmask 1047556
    %v905 = vsel %vm904, %v903, %v901
    %906 = vrot.lane.b32.xlu0 %v905, 64
    %v907 = vpop.permute.xlu0 %906
    %vm908 = vcmask 1048064
    %s909 = scalar_lea.vmem %s1, 64
    %910 = vst.msk [vmem:[%s909] sm:$0xff] %vm908, %v907
    %s911 = scalar_lea.vmem [#allocation0], 769
    %v912 = vld [vmem:[%s911] ss:$8 sm:$0xf]
    %s913 = scalar_lea.vmem [#allocation0], 769
    %v914 = vld [vmem:[%s913] ss:$8 sm:$0xf0]
    %vm915 = vcmask 1047556
    %v916 = vsel %vm915, %v914, %v912
    %917 = vrot.lane.b32.xlu0 %v916, 64
    %v918 = vpop.permute.xlu0 %917
    %vm919 = vcmask 1048064
    %s920 = scalar_lea.vmem %s1, 96
    %921 = vst.msk [vmem:[%s920] sm:$0xff] %vm919, %v918
    %s922 = scalar_lea.vmem [#allocation0], 1025
    %v923 = vld [vmem:[%s922] ss:$8 sm:$0xf]
    %s924 = scalar_lea.vmem [#allocation0], 1025
    %v925 = vld [vmem:[%s924] ss:$8 sm:$0xf0]
    %vm926 = vcmask 1047556
    %v927 = vsel %vm926, %v925, %v923
    %928 = vrot.lane.b32.xlu0 %v927, 64
    %v929 = vpop.permute.xlu0 %928
    %vm930 = vcmask 1048064
    %s931 = scalar_lea.vmem %s1, 128
    %932 = vst.msk [vmem:[%s931] sm:$0xff] %vm930, %v929
    %s933 = scalar_lea.vmem [#allocation0], 65
    %v934 = vld [vmem:[%s933] ss:$8 sm:$0xf]
    %s935 = scalar_lea.vmem [#allocation0], 65
    %v936 = vld [vmem:[%s935] ss:$8 sm:$0xf0]
    %vm937 = vcmask 1047556
    %v938 = vsel %vm937, %v936, %v934
    %939 = vrot.lane.b32.xlu0 %v938, 64
    %v940 = vpop.permute.xlu0 %939
    %vm941 = vcmask 1048064
    %s942 = scalar_lea.vmem %s1, 8
    %943 = vst.msk [vmem:[%s942] sm:$0xff] %vm941, %v940
    %s944 = scalar_lea.vmem [#allocation0], 321
    %v945 = vld [vmem:[%s944] ss:$8 sm:$0xf]
    %s946 = scalar_lea.vmem [#allocation0], 321
    %v947 = vld [vmem:[%s946] ss:$8 sm:$0xf0]
    %vm948 = vcmask 1047556
    %v949 = vsel %vm948, %v947, %v945
    %950 = vrot.lane.b32.xlu0 %v949, 64
    %v951 = vpop.permute.xlu0 %950
    %vm952 = vcmask 1048064
    %s953 = scalar_lea.vmem %s1, 40
    %954 = vst.msk [vmem:[%s953] sm:$0xff] %vm952, %v951
    %s955 = scalar_lea.vmem [#allocation0], 577
    %v956 = vld [vmem:[%s955] ss:$8 sm:$0xf]
    %s957 = scalar_lea.vmem [#allocation0], 577
    %v958 = vld [vmem:[%s957] ss:$8 sm:$0xf0]
    %vm959 = vcmask 1047556
    %v960 = vsel %vm959, %v958, %v956
    %961 = vrot.lane.b32.xlu0 %v960, 64
    %v962 = vpop.permute.xlu0 %961
    %vm963 = vcmask 1048064
    %s964 = scalar_lea.vmem %s1, 72
    %965 = vst.msk [vmem:[%s964] sm:$0xff] %vm963, %v962
    %s966 = scalar_lea.vmem [#allocation0], 833
    %v967 = vld [vmem:[%s966] ss:$8 sm:$0xf]
    %s968 = scalar_lea.vmem [#allocation0], 833
    %v969 = vld [vmem:[%s968] ss:$8 sm:$0xf0]
    %vm970 = vcmask 1047556
    %v971 = vsel %vm970, %v969, %v967
    %972 = vrot.lane.b32.xlu0 %v971, 64
    %v973 = vpop.permute.xlu0 %972
    %vm974 = vcmask 1048064
    %s975 = scalar_lea.vmem %s1, 104
    %976 = vst.msk [vmem:[%s975] sm:$0xff] %vm974, %v973
    %s977 = scalar_lea.vmem [#allocation0], 1089
    %v978 = vld [vmem:[%s977] ss:$8 sm:$0xf]
    %s979 = scalar_lea.vmem [#allocation0], 1089
    %v980 = vld [vmem:[%s979] ss:$8 sm:$0xf0]
    %vm981 = vcmask 1047556
    %v982 = vsel %vm981, %v980, %v978
    %983 = vrot.lane.b32.xlu0 %v982, 64
    %v984 = vpop.permute.xlu0 %983
    %vm985 = vcmask 1048064
    %s986 = scalar_lea.vmem %s1, 136
    %987 = vst.msk [vmem:[%s986] sm:$0xff] %vm985, %v984
    %s988 = scalar_lea.vmem [#allocation0], 129
    %v989 = vld [vmem:[%s988] ss:$8 sm:$0xf]
    %s990 = scalar_lea.vmem [#allocation0], 129
    %v991 = vld [vmem:[%s990] ss:$8 sm:$0xf0]
    %vm992 = vcmask 1047556
    %v993 = vsel %vm992, %v991, %v989
    %994 = vrot.lane.b32.xlu0 %v993, 64
    %v995 = vpop.permute.xlu0 %994
    %vm996 = vcmask 1048064
    %s997 = scalar_lea.vmem %s1, 16
    %998 = vst.msk [vmem:[%s997] sm:$0xff] %vm996, %v995
    %s999 = scalar_lea.vmem [#allocation0], 385
    %v1000 = vld [vmem:[%s999] ss:$8 sm:$0xf]
    %s1001 = scalar_lea.vmem [#allocation0], 385
    %v1002 = vld [vmem:[%s1001] ss:$8 sm:$0xf0]
    %vm1003 = vcmask 1047556
    %v1004 = vsel %vm1003, %v1002, %v1000
    %1005 = vrot.lane.b32.xlu0 %v1004, 64
    %v1006 = vpop.permute.xlu0 %1005
    %vm1007 = vcmask 1048064
    %s1008 = scalar_lea.vmem %s1, 48
    %1009 = vst.msk [vmem:[%s1008] sm:$0xff] %vm1007, %v1006
    %s1010 = scalar_lea.vmem [#allocation0], 641
    %v1011 = vld [vmem:[%s1010] ss:$8 sm:$0xf]
    %s1012 = scalar_lea.vmem [#allocation0], 641
    %v1013 = vld [vmem:[%s1012] ss:$8 sm:$0xf0]
    %vm1014 = vcmask 1047556
    %v1015 = vsel %vm1014, %v1013, %v1011
    %1016 = vrot.lane.b32.xlu0 %v1015, 64
    %v1017 = vpop.permute.xlu0 %1016
    %vm1018 = vcmask 1048064
    %s1019 = scalar_lea.vmem %s1, 80
    %1020 = vst.msk [vmem:[%s1019] sm:$0xff] %vm1018, %v1017
    %s1021 = scalar_lea.vmem [#allocation0], 897
    %v1022 = vld [vmem:[%s1021] ss:$8 sm:$0xf]
    %s1023 = scalar_lea.vmem [#allocation0], 897
    %v1024 = vld [vmem:[%s1023] ss:$8 sm:$0xf0]
    %vm1025 = vcmask 1047556
    %v1026 = vsel %vm1025, %v1024, %v1022
    %1027 = vrot.lane.b32.xlu0 %v1026, 64
    %v1028 = vpop.permute.xlu0 %1027
    %vm1029 = vcmask 1048064
    %s1030 = scalar_lea.vmem %s1, 112
    %1031 = vst.msk [vmem:[%s1030] sm:$0xff] %vm1029, %v1028
    %s1032 = scalar_lea.vmem [#allocation0], 193
    %v1033 = vld [vmem:[%s1032] ss:$8 sm:$0xf]
    %s1034 = scalar_lea.vmem [#allocation0], 193
    %v1035 = vld [vmem:[%s1034] ss:$8 sm:$0xf0]
    %vm1036 = vcmask 1047556
    %v1037 = vsel %vm1036, %v1035, %v1033
    %1038 = vrot.lane.b32.xlu0 %v1037, 64
    %v1039 = vpop.permute.xlu0 %1038
    %vm1040 = vcmask 1048064
    %s1041 = scalar_lea.vmem %s1, 24
    %1042 = vst.msk [vmem:[%s1041] sm:$0xff] %vm1040, %v1039
    %s1043 = scalar_lea.vmem [#allocation0], 449
    %v1044 = vld [vmem:[%s1043] ss:$8 sm:$0xf]
    %s1045 = scalar_lea.vmem [#allocation0], 449
    %v1046 = vld [vmem:[%s1045] ss:$8 sm:$0xf0]
    %vm1047 = vcmask 1047556
    %v1048 = vsel %vm1047, %v1046, %v1044
    %1049 = vrot.lane.b32.xlu0 %v1048, 64
    %v1050 = vpop.permute.xlu0 %1049
    %vm1051 = vcmask 1048064
    %s1052 = scalar_lea.vmem %s1, 56
    %1053 = vst.msk [vmem:[%s1052] sm:$0xff] %vm1051, %v1050
    %s1054 = scalar_lea.vmem [#allocation0], 705
    %v1055 = vld [vmem:[%s1054] ss:$8 sm:$0xf]
    %s1056 = scalar_lea.vmem [#allocation0], 705
    %v1057 = vld [vmem:[%s1056] ss:$8 sm:$0xf0]
    %vm1058 = vcmask 1047556
    %v1059 = vsel %vm1058, %v1057, %v1055
    %1060 = vrot.lane.b32.xlu0 %v1059, 64
    %v1061 = vpop.permute.xlu0 %1060
    %vm1062 = vcmask 1048064
    %s1063 = scalar_lea.vmem %s1, 88
    %1064 = vst.msk [vmem:[%s1063] sm:$0xff] %vm1062, %v1061
    %s1065 = scalar_lea.vmem [#allocation0], 961
    %v1066 = vld [vmem:[%s1065] ss:$8 sm:$0xf]
    %s1067 = scalar_lea.vmem [#allocation0], 961
    %v1068 = vld [vmem:[%s1067] ss:$8 sm:$0xf0]
    %vm1069 = vcmask 1047556
    %v1070 = vsel %vm1069, %v1068, %v1066
    %1071 = vrot.lane.b32.xlu0 %v1070, 64
    %v1072 = vpop.permute.xlu0 %1071
    %vm1073 = vcmask 1048064
    %s1074 = scalar_lea.vmem %s1, 120
    %1075 = vst.msk [vmem:[%s1074] sm:$0xff] %vm1073, %v1072

// kernel: discriminator_forward.1
$region0: #{discriminator_forward.1}
  #allocation0 [shape = 'u32[]', space=smem, size = 0x4, offset = 0x4, fixed_abs, tag = 'smem constant byte address 0x4 - core index']
  #allocation1 [shape = 'u32[144,128]{1,0:T(1,128)}', space=vmem, size = 0x12000, scoped, tag = 'internal scratch']
  #allocation2 [shape = 'f32[1]{0:T(128)S(6)}', space=smem, size = 0x200, scoped, tag = 'scoped memory for discriminator_forward.1']
  %s0 = inlined_call_operand.vmem [shape: f32[128,27], index: 0, kind: input, shape index: {}]
  %s1 = inlined_call_operand.vmem [shape: f32[27,64], index: 1, kind: input, shape index: {}]
  %s2 = inlined_call_operand.vmem [shape: f32[1,64], index: 2, kind: input, shape index: {}]
  %s3 = inlined_call_operand.vmem [shape: f32[64,144], index: 3, kind: input, shape index: {}]
  %s4 = inlined_call_operand.vmem [shape: f32[128,144], index: 4, kind: input, shape index: {}]
  %s5 = inlined_call_operand.vmem [shape: f32[144,16], index: 5, kind: input, shape index: {}]
  %s6 = inlined_call_operand.vmem [shape: f32[8,16,16], index: 6, kind: input, shape index: {}]
  %s7 = inlined_call_operand.<no memory space> [shape: f32[1], index: 7, kind: input, shape index: {}]
  %s8 = inlined_call_operand.vmem [shape: f32[8], index: 8, kind: input, shape index: {}]
  %s9 = inlined_call_operand.vmem [shape: f32[2,16], index: 9, kind: output, shape index: {}]
  %s10 = sld [smem:[#allocation0]]
  $region50: #{discriminator_forward.1} parent=0
    _
  %s12 = ssub.s32 1, %s10
  %s13 = scalar_select 0, %s12, %s10
  %14 = sst [smem:[#allocation2]] %s7
  $region1: #{discriminator_forward.1} parent=0
    #allocation3 [shape = 'u8[512]{0}', space=smem, size = 0x200, scoped, tag = 'input window, operand 8, single buffered']
    #allocation4 [shape = 's32[1]{0}', space=sflag, size = 0x4, scoped, tag = 'scoped memory for discriminator_forward.1']
    %15 = vsyncpa [#allocation4], 0
    // Predicated region
    $region2: #{discriminator_forward.1} parent=1 // pred_check
      _
    $region3: #{discriminator_forward.1} parent=1 // pred_check_branch
      %17 = sbr.rel (0) target = $region5
    $region4: #{discriminator_forward.1} parent=1 // pred_region
      _
    $region5: #{discriminator_forward.1} parent=1 // pred_fallthru
      _
    // Predicated region
    $region6: #{discriminator_forward.1} parent=1 // pred_check
      _
    $region7: #{discriminator_forward.1} parent=1 // pred_check_branch
      %19 = sbr.rel (0) target = $region9
    $region8: #{discriminator_forward.1} parent=1 // pred_region
      _
    $region9: #{discriminator_forward.1} parent=1 // pred_fallthru
      _
    // Predicated region
    $region10: #{discriminator_forward.1} parent=1 // pred_check
      _
    $region11: #{discriminator_forward.1} parent=1 // pred_check_branch
      %21 = sbr.rel (0) target = $region13
    $region12: #{discriminator_forward.1} parent=1 // pred_region
      _
    $region13: #{discriminator_forward.1} parent=1 // pred_fallthru
      _
    // Predicated region
    $region14: #{discriminator_forward.1} parent=1 // pred_check
      _
    $region15: #{discriminator_forward.1} parent=1 // pred_check_branch
      %23 = sbr.rel (0) target = $region17
    $region16: #{discriminator_forward.1} parent=1 // pred_region
      _
    $region17: #{discriminator_forward.1} parent=1 // pred_fallthru
      _
    // Predicated region
    $region18: #{discriminator_forward.1} parent=1 // pred_check
      _
    $region19: #{discriminator_forward.1} parent=1 // pred_check_branch
      %25 = sbr.rel (0) target = $region21
    $region20: #{discriminator_forward.1} parent=1 // pred_region
      _
    $region21: #{discriminator_forward.1} parent=1 // pred_fallthru
      _
    // Predicated region
    $region22: #{discriminator_forward.1} parent=1 // pred_check
      _
    $region23: #{discriminator_forward.1} parent=1 // pred_check_branch
      %27 = sbr.rel (0) target = $region25
    $region24: #{discriminator_forward.1} parent=1 // pred_region
      _
    $region25: #{discriminator_forward.1} parent=1 // pred_fallthru
      _
    // Predicated region
    $region26: #{discriminator_forward.1} parent=1 // pred_check
      _
    $region27: #{discriminator_forward.1} parent=1 // pred_check_branch
      %29 = sbr.rel (0) target = $region29
    $region28: #{discriminator_forward.1} parent=1 // pred_region
      _
    $region29: #{discriminator_forward.1} parent=1 // pred_fallthru
      _
    // Predicated region
    $region30: #{discriminator_forward.1} parent=1 // pred_check
      _
    $region31: #{discriminator_forward.1} parent=1 // pred_check_branch
      %31 = sbr.rel (0) target = $region33
    $region32: #{discriminator_forward.1} parent=1 // pred_region
      _
    $region33: #{discriminator_forward.1} parent=1 // pred_fallthru
      _
    // Predicated region
    $region34: #{discriminator_forward.1} parent=1 // pred_check
      _
    $region35: #{discriminator_forward.1} parent=1 // pred_check_branch
      %33 = sbr.rel (0) target = $region37
    $region36: #{discriminator_forward.1} parent=1 // pred_region
      %s35 = ssub.s32 16, 16
      %36 = vsyncadd [#allocation4], %s35
      %s38 = sshll.u32 %s8, 4
      %s39 = int_to_ptr.vmem [resolvable:$true] %s38
      %41 = dma.vmem_to_smem %s39, 16, [#allocation3], [#allocation4]
    $region37: #{discriminator_forward.1} parent=1 // pred_fallthru
      _
    // Predicated region
    $region38: #{discriminator_forward.1} parent=1 // pred_check
      _
    $region39: #{discriminator_forward.1} parent=1 // pred_check_branch
      %43 = sbr.rel (0) target = $region41
    $region40: #{discriminator_forward.1} parent=1 // pred_region
      %44 = dma.done [#allocation4], 16
    $region41: #{discriminator_forward.1} parent=1 // pred_fallthru
      _
    %45 = sfence
    %v46 = vld [vmem:[%s0] sm:$0xff]
    %v47 = vld [vmem:[%s0 + $0x8] sm:$0xff]
    %v48 = vld [vmem:[%s0 + $0x10] sm:$0xff]
    %v49 = vld [vmem:[%s0 + $0x18] sm:$0xff]
    %v50 = vld [vmem:[%s0 + $0x20] sm:$0xff]
    %v51 = vld [vmem:[%s0 + $0x28] sm:$0xff]
    %v52 = vld [vmem:[%s0 + $0x30] sm:$0xff]
    %v53 = vld [vmem:[%s0 + $0x38] sm:$0xff]
    %v54 = vld [vmem:[%s0 + $0x40] sm:$0xff]
    %v55 = vld [vmem:[%s0 + $0x48] sm:$0xff]
    %v56 = vld [vmem:[%s0 + $0x50] sm:$0xff]
    %v57 = vld [vmem:[%s0 + $0x58] sm:$0xff]
    %v58 = vld [vmem:[%s0 + $0x60] sm:$0xff]
    %v59 = vld [vmem:[%s0 + $0x68] sm:$0xff]
    %v60 = vld [vmem:[%s0 + $0x70] sm:$0xff]
    %v61 = vld [vmem:[%s0 + $0x78] sm:$0xff]
    %v62 = vld [vmem:[%s1] sm:$0xff]
    %v63 = vld [vmem:[%s1 + $0x8] sm:$0xff]
    %v64 = vld [vmem:[%s1 + $0x10] sm:$0xff]
    %v65 = vld [vmem:[%s1 + $0x18] sm:$0x7]
    %v66 = vld [vmem:[%s2] sm:$0x1]
    %v68 = vlaneseq
    %v69 = vshrl.u32 %v68, 7
    %v70 = vsub.s32 0, %v69
    %v71 = vrot.slane %v66, %v70
    %vm73 = vcmask 220160
    %v75 = vsel %vm73, %v46, 0
    %v78 = vsel %vm73, %v47, 0
    %v81 = vsel %vm73, %v48, 0
    %v84 = vsel %vm73, %v49, 0
    %v87 = vsel %vm73, %v50, 0
    %v90 = vsel %vm73, %v51, 0
    %v93 = vsel %vm73, %v52, 0
    %v96 = vsel %vm73, %v53, 0
    %v99 = vsel %vm73, %v54, 0
    %v102 = vsel %vm73, %v55, 0
    %v105 = vsel %vm73, %v56, 0
    %v108 = vsel %vm73, %v57, 0
    %v111 = vsel %vm73, %v58, 0
    %v114 = vsel %vm73, %v59, 0
    %v117 = vsel %vm73, %v60, 0
    %v120 = vsel %vm73, %v61, 0
    %vm122 = vcmask 1042432
    %v124 = vsel %vm122, %v65, 0
    %126 = vmatprep.subr.mxu0 0.0
    %127 = vmatpush1.msra.mxu0 %v62
    %128 = vmatprep.subr.mxu0 0.0
    %129 = vmatpush1.msra.mxu0 %v63
    %130 = vmatprep.subr.mxu0 0.0
    %131 = vmatpush1.msra.mxu0 %v64
    %132 = vmatprep.subr.mxu0 0.0
    %133 = vmatpush1.msra.mxu0 %v124
    %134 = vmatprep.subr.mxu0 0.0
    %135 = vmatpush1.msra.mxu0 0.0
    %136 = vmatprep.subr.mxu0 0.0
    %137 = vmatpush1.msra.mxu0 0.0
    %138 = vmatprep.subr.mxu0 0.0
    %139 = vmatpush1.msra.mxu0 0.0
    %140 = vmatprep.subr.mxu0 0.0
    %141 = vmatpush1.msra.mxu0 0.0
    %142 = vmatprep.subr.mxu0 0.0
    %143 = vmatpush1.msra.mxu0 0.0
    %144 = vmatprep.subr.mxu0 0.0
    %145 = vmatpush1.msra.mxu0 0.0
    %146 = vmatprep.subr.mxu0 0.0
    %147 = vmatpush1.msra.mxu0 0.0
    %148 = vmatprep.subr.mxu0 0.0
    %149 = vmatpush1.msra.mxu0 0.0
    %150 = vmatprep.subr.mxu0 0.0
    %151 = vmatpush1.msra.mxu0 0.0
    %152 = vmatprep.subr.mxu0 0.0
    %153 = vmatpush1.msra.mxu0 0.0
    %154 = vmatprep.subr.mxu0 0.0
    %155 = vmatpush1.msra.mxu0 0.0
    %156 = vmatprep.subr.mxu0 0.0
    %157 = vmatpush1.msra.mxu0 0.0
    %158 = vmatprep.subr.mxu0 0.0
    %159 = vmatpush1.msra.mxu0 0.0
    %160 = vmatprep.subr.mxu0 0.0
    %161 = vmatpush1.msra.mxu0 0.0
    %162 = vmatprep.subr.mxu0 0.0
    %163 = vmatpush1.msra.mxu0 0.0
    %164 = vmatprep.subr.mxu0 0.0
    %165 = vmatpush1.msra.mxu0 0.0
    %166 = vmatprep.subr.mxu0 0.0
    %167 = vmatpush1.msra.mxu0 0.0
    %168 = vmatprep.subr.mxu0 0.0
    %169 = vmatpush1.msra.mxu0 0.0
    %170 = vmatprep.subr.mxu0 0.0
    %171 = vmatpush1.msra.mxu0 0.0
    %172 = vmatprep.subr.mxu0 0.0
    %173 = vmatpush1.msra.mxu0 0.0
    %174 = vmatprep.subr.mxu0 0.0
    %175 = vmatpush1.msra.mxu0 0.0
    %176 = vmatprep.subr.mxu0 0.0
    %177 = vmatpush1.msra.mxu0 0.0
    %178 = vmatprep.subr.mxu0 0.0
    %179 = vmatpush1.msra.mxu0 0.0
    %180 = vmatprep.subr.mxu0 0.0
    %181 = vmatpush1.msra.mxu0 0.0
    %182 = vmatprep.subr.mxu0 0.0
    %183 = vmatpush1.msra.mxu0 0.0
    %184 = vmatprep.subr.mxu0 0.0
    %185 = vmatpush1.msra.mxu0 0.0
    %186 = vmatprep.subr.mxu0 0.0
    %187 = vmatpush1.msra.mxu0 0.0
    %188 = vmatprep.subr.mxu0 0.0
    %189 = vmatpush1.msra.mxu0 0.0
    %190 = vmatprep.mubr.f32.mxu0 0.0
    %191 = vmatmul.mubr.f32.gmra.mrb[0].mxu0 %v75
    %v192 = vpop.f32.mrb[0].mxu0
    %v193 = vadd.f32 %v71, %v192
    %v194 = vpop.f32.mrb[0].mxu0
    %195 = vmatprep.mubr.f32.mxu0 0.0
    %196 = vmatmul.mubr.f32.gmra.mrb[0].mxu0 %v78
    %v197 = vpop.f32.mrb[0].mxu0
    %v198 = vadd.f32 %v71, %v197
    %v199 = vpop.f32.mrb[0].mxu0
    %200 = vmatprep.mubr.f32.mxu0 0.0
    %201 = vmatmul.mubr.f32.gmra.mrb[0].mxu0 %v81
    %v202 = vpop.f32.mrb[0].mxu0
    %v203 = vadd.f32 %v71, %v202
    %v204 = vpop.f32.mrb[0].mxu0
    %205 = vmatprep.mubr.f32.mxu0 0.0
    %206 = vmatmul.mubr.f32.gmra.mrb[0].mxu0 %v84
    %v207 = vpop.f32.mrb[0].mxu0
    %v208 = vadd.f32 %v71, %v207
    %v209 = vpop.f32.mrb[0].mxu0
    %210 = vmatprep.mubr.f32.mxu0 0.0
    %211 = vmatmul.mubr.f32.gmra.mrb[0].mxu0 %v87
    %v212 = vpop.f32.mrb[0].mxu0
    %v213 = vadd.f32 %v71, %v212
    %v214 = vpop.f32.mrb[0].mxu0
    %215 = vmatprep.mubr.f32.mxu0 0.0
    %216 = vmatmul.mubr.f32.gmra.mrb[0].mxu0 %v90
    %v217 = vpop.f32.mrb[0].mxu0
    %v218 = vadd.f32 %v71, %v217
    %v219 = vpop.f32.mrb[0].mxu0
    %220 = vmatprep.mubr.f32.mxu0 0.0
    %221 = vmatmul.mubr.f32.gmra.mrb[0].mxu0 %v93
    %v222 = vpop.f32.mrb[0].mxu0
    %v223 = vadd.f32 %v71, %v222
    %v224 = vpop.f32.mrb[0].mxu0
    %225 = vmatprep.mubr.f32.mxu0 0.0
    %226 = vmatmul.mubr.f32.gmra.mrb[0].mxu0 %v96
    %v227 = vpop.f32.mrb[0].mxu0
    %v228 = vadd.f32 %v71, %v227
    %v229 = vpop.f32.mrb[0].mxu0
    %230 = vmatprep.mubr.f32.mxu0 0.0
    %231 = vmatmul.mubr.f32.gmra.mrb[0].mxu0 %v99
    %v232 = vpop.f32.mrb[0].mxu0
    %v233 = vadd.f32 %v71, %v232
    %v234 = vpop.f32.mrb[0].mxu0
    %235 = vmatprep.mubr.f32.mxu0 0.0
    %236 = vmatmul.mubr.f32.gmra.mrb[0].mxu0 %v102
    %v237 = vpop.f32.mrb[0].mxu0
    %v238 = vadd.f32 %v71, %v237
    %v239 = vpop.f32.mrb[0].mxu0
    %240 = vmatprep.mubr.f32.mxu0 0.0
    %241 = vmatmul.mubr.f32.gmra.mrb[0].mxu0 %v105
    %v242 = vpop.f32.mrb[0].mxu0
    %v243 = vadd.f32 %v71, %v242
    %v244 = vpop.f32.mrb[0].mxu0
    %245 = vmatprep.mubr.f32.mxu0 0.0
    %246 = vmatmul.mubr.f32.gmra.mrb[0].mxu0 %v108
    %v247 = vpop.f32.mrb[0].mxu0
    %v248 = vadd.f32 %v71, %v247
    %v249 = vpop.f32.mrb[0].mxu0
    %250 = vmatprep.mubr.f32.mxu0 0.0
    %251 = vmatmul.mubr.f32.gmra.mrb[0].mxu0 %v111
    %v252 = vpop.f32.mrb[0].mxu0
    %v253 = vadd.f32 %v71, %v252
    %v254 = vpop.f32.mrb[0].mxu0
    %255 = vmatprep.mubr.f32.mxu0 0.0
    %256 = vmatmul.mubr.f32.gmra.mrb[0].mxu0 %v114
    %v257 = vpop.f32.mrb[0].mxu0
    %v258 = vadd.f32 %v71, %v257
    %v259 = vpop.f32.mrb[0].mxu0
    %260 = vmatprep.mubr.f32.mxu0 0.0
    %261 = vmatmul.mubr.f32.gmra.mrb[0].mxu0 %v117
    %v262 = vpop.f32.mrb[0].mxu0
    %v263 = vadd.f32 %v71, %v262
    %v264 = vpop.f32.mrb[0].mxu0
    %265 = vmatprep.mubr.f32.mxu0 0.0
    %266 = vmatmul.mubr.f32.gmra.mrb[0].mxu0 %v120
    %v267 = vpop.f32.mrb[0].mxu0
    %v268 = vadd.f32 %v71, %v267
    %v269 = vpop.f32.mrb[0].mxu0
    %270 = vdwg.mxu0
    %vm271 = vcmask 523264
    %v272 = vsel %vm271, %v193, 0.0
    %v273 = vsel %vm271, %v198, 0.0
    %v274 = vadd.f32 %v272, %v273
    %v275 = vsel %vm271, %v203, 0.0
    %v276 = vadd.f32 %v274, %v275
    %v277 = vsel %vm271, %v208, 0.0
    %v278 = vadd.f32 %v276, %v277
    %v279 = vsel %vm271, %v213, 0.0
    %v280 = vadd.f32 %v278, %v279
    %v281 = vsel %vm271, %v218, 0.0
    %v282 = vadd.f32 %v280, %v281
    %v283 = vsel %vm271, %v223, 0.0
    %v284 = vadd.f32 %v282, %v283
    %v285 = vsel %vm271, %v228, 0.0
    %v286 = vadd.f32 %v284, %v285
    %v287 = vrot.slane %v286, 4
    %v288 = vadd.f32 %v286, %v287
    %v289 = vrot.slane %v288, 2
    %v290 = vadd.f32 %v288, %v289
    %v291 = vrot.slane %v290, 1
    %v292 = vadd.f32 %v290, %v291
    %v293 = vsel %vm271, %v233, 0.0
    %v294 = vsel %vm271, %v238, 0.0
    %v295 = vadd.f32 %v293, %v294
    %v296 = vsel %vm271, %v243, 0.0
    %v297 = vadd.f32 %v295, %v296
    %v298 = vsel %vm271, %v248, 0.0
    %v299 = vadd.f32 %v297, %v298
    %v300 = vsel %vm271, %v253, 0.0
    %v301 = vadd.f32 %v299, %v300
    %v302 = vsel %vm271, %v258, 0.0
    %v303 = vadd.f32 %v301, %v302
    %v304 = vsel %vm271, %v263, 0.0
    %v305 = vadd.f32 %v303, %v304
    %v306 = vsel %vm271, %v268, 0.0
    %v307 = vadd.f32 %v305, %v306
    %v308 = vrot.slane %v307, 4
    %v309 = vadd.f32 %v307, %v308
    %v310 = vrot.slane %v309, 2
    %v311 = vadd.f32 %v309, %v310
    %v312 = vrot.slane %v311, 1
    %v313 = vadd.f32 %v311, %v312
    %v314 = vrcp.pop 64.0
    %v315 = vmul.f32 %v292, %v314
    %v316 = vmul.f32 %v313, %v314
    %v317 = vsub.f32 %v193, %v315
    %v318 = vsub.f32 %v198, %v315
    %v319 = vsub.f32 %v203, %v315
    %v320 = vsub.f32 %v208, %v315
    %v321 = vsub.f32 %v213, %v315
    %v322 = vsub.f32 %v218, %v315
    %v323 = vsub.f32 %v223, %v315
    %v324 = vsub.f32 %v228, %v315
    %v325 = vsub.f32 %v233, %v316
    %v326 = vsub.f32 %v238, %v316
    %v327 = vsub.f32 %v243, %v316
    %v328 = vsub.f32 %v248, %v316
    %v329 = vsub.f32 %v253, %v316
    %v330 = vsub.f32 %v258, %v316
    %v331 = vsub.f32 %v263, %v316
    %v332 = vsub.f32 %v268, %v316
    %v333 = vmul.f32 %v317, %v317
    %v334 = vmul.f32 %v318, %v318
    %v335 = vmul.f32 %v319, %v319
    %v336 = vmul.f32 %v320, %v320
    %v337 = vmul.f32 %v321, %v321
    %v338 = vmul.f32 %v322, %v322
    %v339 = vmul.f32 %v323, %v323
    %v340 = vmul.f32 %v324, %v324
    %v341 = vmul.f32 %v325, %v325
    %v342 = vmul.f32 %v326, %v326
    %v343 = vmul.f32 %v327, %v327
    %v344 = vmul.f32 %v328, %v328
    %v345 = vmul.f32 %v329, %v329
    %v346 = vmul.f32 %v330, %v330
    %v347 = vmul.f32 %v331, %v331
    %v348 = vmul.f32 %v332, %v332
    %v349 = vsel %vm271, %v333, 0.0
    %v350 = vsel %vm271, %v334, 0.0
    %v351 = vadd.f32 %v349, %v350
    %v352 = vsel %vm271, %v335, 0.0
    %v353 = vadd.f32 %v351, %v352
    %v354 = vsel %vm271, %v336, 0.0
    %v355 = vadd.f32 %v353, %v354
    %v356 = vsel %vm271, %v337, 0.0
    %v357 = vadd.f32 %v355, %v356
    %v358 = vsel %vm271, %v338, 0.0
    %v359 = vadd.f32 %v357, %v358
    %v360 = vsel %vm271, %v339, 0.0
    %v361 = vadd.f32 %v359, %v360
    %v362 = vsel %vm271, %v340, 0.0
    %v363 = vadd.f32 %v361, %v362
    %v364 = vrot.slane %v363, 4
    %v365 = vadd.f32 %v363, %v364
    %v366 = vrot.slane %v365, 2
    %v367 = vadd.f32 %v365, %v366
    %v368 = vrot.slane %v367, 1
    %v369 = vadd.f32 %v367, %v368
    %v370 = vsel %vm271, %v341, 0.0
    %v371 = vsel %vm271, %v342, 0.0
    %v372 = vadd.f32 %v370, %v371
    %v373 = vsel %vm271, %v343, 0.0
    %v374 = vadd.f32 %v372, %v373
    %v375 = vsel %vm271, %v344, 0.0
    %v376 = vadd.f32 %v374, %v375
    %v377 = vsel %vm271, %v345, 0.0
    %v378 = vadd.f32 %v376, %v377
    %v379 = vsel %vm271, %v346, 0.0
    %v380 = vadd.f32 %v378, %v379
    %v381 = vsel %vm271, %v347, 0.0
    %v382 = vadd.f32 %v380, %v381
    %v383 = vsel %vm271, %v348, 0.0
    %v384 = vadd.f32 %v382, %v383
    %v385 = vrot.slane %v384, 4
    %v386 = vadd.f32 %v384, %v385
    %v387 = vrot.slane %v386, 2
    %v388 = vadd.f32 %v386, %v387
    %v389 = vrot.slane %v388, 1
    %v390 = vadd.f32 %v388, %v389
    %v391 = vmul.f32 %v369, %v314
    %v392 = vmul.f32 %v390, %v314
    %v393 = vadd.f32 %v391, 1e-05
    %v394 = vadd.f32 %v392, 1e-05
    %v395 = vrsqrt.pop %v393
    %v396 = vrsqrt.pop %v394
    %v397 = vmul.f32 %v317, %v395
    %v398 = vmul.f32 %v318, %v395
    %v399 = vmul.f32 %v319, %v395
    %v400 = vmul.f32 %v320, %v395
    %v401 = vmul.f32 %v321, %v395
    %v402 = vmul.f32 %v322, %v395
    %v403 = vmul.f32 %v323, %v395
    %v404 = vmul.f32 %v324, %v395
    %v405 = vmul.f32 %v325, %v396
    %v406 = vmul.f32 %v326, %v396
    %v407 = vmul.f32 %v327, %v396
    %v408 = vmul.f32 %v328, %v396
    %v409 = vmul.f32 %v329, %v396
    %v410 = vmul.f32 %v330, %v396
    %v411 = vmul.f32 %v331, %v396
    %v412 = vmul.f32 %v332, %v396
    %vm413 = vcmp.gt.f32.partialorder %v397, 0.0
    %vm414 = vcmp.gt.f32.partialorder %v398, 0.0
    %vm415 = vcmp.gt.f32.partialorder %v399, 0.0
    %vm416 = vcmp.gt.f32.partialorder %v400, 0.0
    %vm417 = vcmp.gt.f32.partialorder %v401, 0.0
    %vm418 = vcmp.gt.f32.partialorder %v402, 0.0
    %vm419 = vcmp.gt.f32.partialorder %v403, 0.0
    %vm420 = vcmp.gt.f32.partialorder %v404, 0.0
    %vm421 = vcmp.gt.f32.partialorder %v405, 0.0
    %vm422 = vcmp.gt.f32.partialorder %v406, 0.0
    %vm423 = vcmp.gt.f32.partialorder %v407, 0.0
    %vm424 = vcmp.gt.f32.partialorder %v408, 0.0
    %vm425 = vcmp.gt.f32.partialorder %v409, 0.0
    %vm426 = vcmp.gt.f32.partialorder %v410, 0.0
    %vm427 = vcmp.gt.f32.partialorder %v411, 0.0
    %vm428 = vcmp.gt.f32.partialorder %v412, 0.0
    %v429 = vmul.f32 %v397, 0.2
    %v430 = vmul.f32 %v398, 0.2
    %v431 = vmul.f32 %v399, 0.2
    %v432 = vmul.f32 %v400, 0.2
    %v433 = vmul.f32 %v401, 0.2
    %v434 = vmul.f32 %v402, 0.2
    %v435 = vmul.f32 %v403, 0.2
    %v436 = vmul.f32 %v404, 0.2
    %v437 = vmul.f32 %v405, 0.2
    %v438 = vmul.f32 %v406, 0.2
    %v439 = vmul.f32 %v407, 0.2
    %v440 = vmul.f32 %v408, 0.2
    %v441 = vmul.f32 %v409, 0.2
    %v442 = vmul.f32 %v410, 0.2
    %v443 = vmul.f32 %v411, 0.2
    %v444 = vmul.f32 %v412, 0.2
    %v445 = vsel %vm413, %v397, %v429
    %v446 = vsel %vm414, %v398, %v430
    %v447 = vsel %vm415, %v399, %v431
    %v448 = vsel %vm416, %v400, %v432
    %v449 = vsel %vm417, %v401, %v433
    %v450 = vsel %vm418, %v402, %v434
    %v451 = vsel %vm419, %v403, %v435
    %v452 = vsel %vm420, %v404, %v436
    %v453 = vsel %vm421, %v405, %v437
    %v454 = vsel %vm422, %v406, %v438
    %v455 = vsel %vm423, %v407, %v439
    %v456 = vsel %vm424, %v408, %v440
    %v457 = vsel %vm425, %v409, %v441
    %v458 = vsel %vm426, %v410, %v442
    %v459 = vsel %vm427, %v411, %v443
    %v460 = vsel %vm428, %v412, %v444
    %461 = vxpose.xlu0.b32.start [1/16] %v445, 128
    %462 = vxpose.xlu0.b32.cont [2/16] %v446, 128
    %463 = vxpose.xlu0.b32.cont [3/16] %v447, 128
    %464 = vxpose.xlu0.b32.cont [4/16] %v448, 128
    %465 = vxpose.xlu0.b32.cont [5/16] %v449, 128
    %466 = vxpose.xlu0.b32.cont [6/16] %v450, 128
    %467 = vxpose.xlu0.b32.cont [7/16] %v451, 128
    %468 = vxpose.xlu0.b32.cont [8/16] %v452, 128
    %469 = vxpose.xlu0.b32.cont [9/16] 0.0, 128
    %470 = vxpose.xlu0.b32.cont [10/16] 0.0, 128
    %471 = vxpose.xlu0.b32.cont [11/16] 0.0, 128
    %472 = vxpose.xlu0.b32.cont [12/16] 0.0, 128
    %473 = vxpose.xlu0.b32.cont [13/16] 0.0, 128
    %474 = vxpose.xlu0.b32.cont [14/16] 0.0, 128
    %475 = vxpose.xlu0.b32.cont [15/16] 0.0, 128
    %476 = vxpose.xlu0.b32.end [16/16] 0.0, 128
    %v477 = vpop.trf.xlu0
    %v478 = vpop.trf.xlu0
    %v479 = vpop.trf.xlu0
    %v480 = vpop.trf.xlu0
    %v481 = vpop.trf.xlu0
    %v482 = vpop.trf.xlu0
    %v483 = vpop.trf.xlu0
    %v484 = vpop.trf.xlu0
    %v485 = vpop.trf.xlu0
    %v486 = vpop.trf.xlu0
    %v487 = vpop.trf.xlu0
    %v488 = vpop.trf.xlu0
    %v489 = vpop.trf.xlu0
    %v490 = vpop.trf.xlu0
    %v491 = vpop.trf.xlu0
    %v492 = vpop.trf.xlu0
    %493 = vxpose.xlu0.b32.start [1/16] %v453, 128
    %494 = vxpose.xlu0.b32.cont [2/16] %v454, 128
    %495 = vxpose.xlu0.b32.cont [3/16] %v455, 128
    %496 = vxpose.xlu0.b32.cont [4/16] %v456, 128
    %497 = vxpose.xlu0.b32.cont [5/16] %v457, 128
    %498 = vxpose.xlu0.b32.cont [6/16] %v458, 128
    %499 = vxpose.xlu0.b32.cont [7/16] %v459, 128
    %500 = vxpose.xlu0.b32.cont [8/16] %v460, 128
    %501 = vxpose.xlu0.b32.cont [9/16] 0.0, 128
    %502 = vxpose.xlu0.b32.cont [10/16] 0.0, 128
    %503 = vxpose.xlu0.b32.cont [11/16] 0.0, 128
    %504 = vxpose.xlu0.b32.cont [12/16] 0.0, 128
    %505 = vxpose.xlu0.b32.cont [13/16] 0.0, 128
    %506 = vxpose.xlu0.b32.cont [14/16] 0.0, 128
    %507 = vxpose.xlu0.b32.cont [15/16] 0.0, 128
    %508 = vxpose.xlu0.b32.end [16/16] 0.0, 128
    %v509 = vpop.trf.xlu0
    %v510 = vpop.trf.xlu0
    %v511 = vpop.trf.xlu0
    %v512 = vpop.trf.xlu0
    %v513 = vpop.trf.xlu0
    %v514 = vpop.trf.xlu0
    %v515 = vpop.trf.xlu0
    %v516 = vpop.trf.xlu0
    %v517 = vpop.trf.xlu0
    %v518 = vpop.trf.xlu0
    %v519 = vpop.trf.xlu0
    %v520 = vpop.trf.xlu0
    %v521 = vpop.trf.xlu0
    %v522 = vpop.trf.xlu0
    %v523 = vpop.trf.xlu0
    %v524 = vpop.trf.xlu0
    %v525 = vld [vmem:[%s3] sm:$0xff]
    %v526 = vld [vmem:[%s3 + $0x8] sm:$0xff]
    %v527 = vld [vmem:[%s3 + $0x10] sm:$0xff]
    %v528 = vld [vmem:[%s3 + $0x18] sm:$0xff]
    %v529 = vld [vmem:[%s3 + $0x20] sm:$0xff]
    %v530 = vld [vmem:[%s3 + $0x28] sm:$0xff]
    %v531 = vld [vmem:[%s3 + $0x30] sm:$0xff]
    %v532 = vld [vmem:[%s3 + $0x38] sm:$0xff]
    %v533 = vld [vmem:[%s3 + $0x40] sm:$0xff]
    %v534 = vld [vmem:[%s3 + $0x48] sm:$0xff]
    %v535 = vld [vmem:[%s3 + $0x50] sm:$0xff]
    %v536 = vld [vmem:[%s3 + $0x58] sm:$0xff]
    %v537 = vld [vmem:[%s3 + $0x60] sm:$0xff]
    %v538 = vld [vmem:[%s3 + $0x68] sm:$0xff]
    %v539 = vld [vmem:[%s3 + $0x70] sm:$0xff]
    %v540 = vld [vmem:[%s3 + $0x78] sm:$0xff]
    %v542 = vsel %vm271, %v477, 0
    %v545 = vsel %vm271, %v478, 0
    %v548 = vsel %vm271, %v479, 0
    %v551 = vsel %vm271, %v480, 0
    %v554 = vsel %vm271, %v481, 0
    %v557 = vsel %vm271, %v482, 0
    %v560 = vsel %vm271, %v483, 0
    %v563 = vsel %vm271, %v484, 0
    %v566 = vsel %vm271, %v509, 0
    %v569 = vsel %vm271, %v510, 0
    %v572 = vsel %vm271, %v511, 0
    %v575 = vsel %vm271, %v512, 0
    %v578 = vsel %vm271, %v513, 0
    %v581 = vsel %vm271, %v514, 0
    %v584 = vsel %vm271, %v515, 0
    %v587 = vsel %vm271, %v516, 0
    %589 = vmatprep.subr.mxu0 %v526
    %590 = vmatpush1.msra.mxu0 %v525
    %591 = vmatprep.subr.mxu0 %v528
    %592 = vmatpush1.msra.mxu0 %v527
    %593 = vmatprep.subr.mxu0 %v530
    %594 = vmatpush1.msra.mxu0 %v529
    %595 = vmatprep.subr.mxu0 %v532
    %596 = vmatpush1.msra.mxu0 %v531
    %597 = vmatprep.subr.mxu0 %v534
    %598 = vmatpush1.msra.mxu0 %v533
    %599 = vmatprep.subr.mxu0 %v536
    %600 = vmatpush1.msra.mxu0 %v535
    %601 = vmatprep.subr.mxu0 %v538
    %602 = vmatpush1.msra.mxu0 %v537
    %603 = vmatprep.subr.mxu0 %v540
    %604 = vmatpush1.msra.mxu0 %v539
    %605 = vmatprep.subr.mxu0 0.0
    %606 = vmatpush1.msra.mxu0 0.0
    %607 = vmatprep.subr.mxu0 0.0
    %608 = vmatpush1.msra.mxu0 0.0
    %609 = vmatprep.subr.mxu0 0.0
    %610 = vmatpush1.msra.mxu0 0.0
    %611 = vmatprep.subr.mxu0 0.0
    %612 = vmatpush1.msra.mxu0 0.0
    %613 = vmatprep.subr.mxu0 0.0
    %614 = vmatpush1.msra.mxu0 0.0
    %615 = vmatprep.subr.mxu0 0.0
    %616 = vmatpush1.msra.mxu0 0.0
    %617 = vmatprep.subr.mxu0 0.0
    %618 = vmatpush1.msra.mxu0 0.0
    %619 = vmatprep.subr.mxu0 0.0
    %620 = vmatpush1.msra.mxu0 0.0
    %621 = vmatprep.subr.mxu0 0.0
    %622 = vmatpush1.msra.mxu0 0.0
    %623 = vmatprep.subr.mxu0 0.0
    %624 = vmatpush1.msra.mxu0 0.0
    %625 = vmatprep.subr.mxu0 0.0
    %626 = vmatpush1.msra.mxu0 0.0
    %627 = vmatprep.subr.mxu0 0.0
    %628 = vmatpush1.msra.mxu0 0.0
    %629 = vmatprep.subr.mxu0 0.0
    %630 = vmatpush1.msra.mxu0 0.0
    %631 = vmatprep.subr.mxu0 0.0
    %632 = vmatpush1.msra.mxu0 0.0
    %633 = vmatprep.subr.mxu0 0.0
    %634 = vmatpush1.msra.mxu0 0.0
    %635 = vmatprep.subr.mxu0 0.0
    %636 = vmatpush1.msra.mxu0 0.0
    %637 = vmatprep.subr.mxu0 0.0
    %638 = vmatpush1.msra.mxu0 0.0
    %639 = vmatprep.subr.mxu0 0.0
    %640 = vmatpush1.msra.mxu0 0.0
    %641 = vmatprep.subr.mxu0 0.0
    %642 = vmatpush1.msra.mxu0 0.0
    %643 = vmatprep.subr.mxu0 0.0
    %644 = vmatpush1.msra.mxu0 0.0
    %645 = vmatprep.subr.mxu0 0.0
    %646 = vmatpush1.msra.mxu0 0.0
    %647 = vmatprep.subr.mxu0 0.0
    %648 = vmatpush1.msra.mxu0 0.0
    %649 = vmatprep.subr.mxu0 0.0
    %650 = vmatpush1.msra.mxu0 0.0
    %651 = vmatprep.subr.mxu0 0.0
    %652 = vmatpush1.msra.mxu0 0.0
    %653 = vmatprep.mubr.f32.mxu0 0.0
    %654 = vmatmul.mubr.f32.gmra.mrb[0].mxu0 %v542
    %v655 = vpop.f32.mrb[0].mxu0
    %v656 = vadd.f32 0.0, %v655
    %v657 = vpop.f32.mrb[0].mxu0
    %v658 = vadd.f32 0.0, %v657
    %659 = vmatprep.mubr.f32.mxu0 0.0
    %660 = vmatmul.mubr.f32.gmra.mrb[0].mxu0 %v545
    %v661 = vpop.f32.mrb[0].mxu0
    %v662 = vadd.f32 0.0, %v661
    %v663 = vpop.f32.mrb[0].mxu0
    %v664 = vadd.f32 0.0, %v663
    %665 = vmatprep.mubr.f32.mxu0 0.0
    %666 = vmatmul.mubr.f32.gmra.mrb[0].mxu0 %v548
    %v667 = vpop.f32.mrb[0].mxu0
    %v668 = vadd.f32 0.0, %v667
    %v669 = vpop.f32.mrb[0].mxu0
    %v670 = vadd.f32 0.0, %v669
    %671 = vmatprep.mubr.f32.mxu0 0.0
    %672 = vmatmul.mubr.f32.gmra.mrb[0].mxu0 %v551
    %v673 = vpop.f32.mrb[0].mxu0
    %v674 = vadd.f32 0.0, %v673
    %v675 = vpop.f32.mrb[0].mxu0
    %v676 = vadd.f32 0.0, %v675
    %677 = vmatprep.mubr.f32.mxu0 0.0
    %678 = vmatmul.mubr.f32.gmra.mrb[0].mxu0 %v554
    %v679 = vpop.f32.mrb[0].mxu0
    %v680 = vadd.f32 0.0, %v679
    %v681 = vpop.f32.mrb[0].mxu0
    %v682 = vadd.f32 0.0, %v681
    %683 = vmatprep.mubr.f32.mxu0 0.0
    %684 = vmatmul.mubr.f32.gmra.mrb[0].mxu0 %v557
    %v685 = vpop.f32.mrb[0].mxu0
    %v686 = vadd.f32 0.0, %v685
    %v687 = vpop.f32.mrb[0].mxu0
    %v688 = vadd.f32 0.0, %v687
    %689 = vmatprep.mubr.f32.mxu0 0.0
    %690 = vmatmul.mubr.f32.gmra.mrb[0].mxu0 %v560
    %v691 = vpop.f32.mrb[0].mxu0
    %v692 = vadd.f32 0.0, %v691
    %v693 = vpop.f32.mrb[0].mxu0
    %v694 = vadd.f32 0.0, %v693
    %695 = vmatprep.mubr.f32.mxu0 0.0
    %696 = vmatmul.mubr.f32.gmra.mrb[0].mxu0 %v563
    %v697 = vpop.f32.mrb[0].mxu0
    %v698 = vadd.f32 0.0, %v697
    %v699 = vpop.f32.mrb[0].mxu0
    %v700 = vadd.f32 0.0, %v699
    %701 = vmatprep.mubr.f32.mxu0 0.0
    %702 = vmatmul.mubr.f32.gmra.mrb[0].mxu0 %v566
    %v703 = vpop.f32.mrb[0].mxu0
    %v704 = vadd.f32 0.0, %v703
    %v705 = vpop.f32.mrb[0].mxu0
    %v706 = vadd.f32 0.0, %v705
    %707 = vmatprep.mubr.f32.mxu0 0.0
    %708 = vmatmul.mubr.f32.gmra.mrb[0].mxu0 %v569
    %v709 = vpop.f32.mrb[0].mxu0
    %v710 = vadd.f32 0.0, %v709
    %v711 = vpop.f32.mrb[0].mxu0
    %v712 = vadd.f32 0.0, %v711
    %713 = vmatprep.mubr.f32.mxu0 0.0
    %714 = vmatmul.mubr.f32.gmra.mrb[0].mxu0 %v572
    %v715 = vpop.f32.mrb[0].mxu0
    %v716 = vadd.f32 0.0, %v715
    %v717 = vpop.f32.mrb[0].mxu0
    %v718 = vadd.f32 0.0, %v717
    %719 = vmatprep.mubr.f32.mxu0 0.0
    %720 = vmatmul.mubr.f32.gmra.mrb[0].mxu0 %v575
    %v721 = vpop.f32.mrb[0].mxu0
    %v722 = vadd.f32 0.0, %v721
    %v723 = vpop.f32.mrb[0].mxu0
    %v724 = vadd.f32 0.0, %v723
    %725 = vmatprep.mubr.f32.mxu0 0.0
    %726 = vmatmul.mubr.f32.gmra.mrb[0].mxu0 %v578
    %v727 = vpop.f32.mrb[0].mxu0
    %v728 = vadd.f32 0.0, %v727
    %v729 = vpop.f32.mrb[0].mxu0
    %v730 = vadd.f32 0.0, %v729
    %731 = vmatprep.mubr.f32.mxu0 0.0
    %732 = vmatmul.mubr.f32.gmra.mrb[0].mxu0 %v581
    %v733 = vpop.f32.mrb[0].mxu0
    %v734 = vadd.f32 0.0, %v733
    %v735 = vpop.f32.mrb[0].mxu0
    %v736 = vadd.f32 0.0, %v735
    %737 = vmatprep.mubr.f32.mxu0 0.0
    %738 = vmatmul.mubr.f32.gmra.mrb[0].mxu0 %v584
    %v739 = vpop.f32.mrb[0].mxu0
    %v740 = vadd.f32 0.0, %v739
    %v741 = vpop.f32.mrb[0].mxu0
    %v742 = vadd.f32 0.0, %v741
    %743 = vmatprep.mubr.f32.mxu0 0.0
    %744 = vmatmul.mubr.f32.gmra.mrb[0].mxu0 %v587
    %v745 = vpop.f32.mrb[0].mxu0
    %v746 = vadd.f32 0.0, %v745
    %v747 = vpop.f32.mrb[0].mxu0
    %v748 = vadd.f32 0.0, %v747
    %749 = vdwg.mxu0
    %v750 = vld [vmem:[%s4] sm:$0xff]
    %v751 = vld [vmem:[%s4 + $0x8] sm:$0xff]
    %v752 = vld [vmem:[%s4 + $0x10] sm:$0xff]
    %v753 = vld [vmem:[%s4 + $0x18] sm:$0xff]
    %v754 = vld [vmem:[%s4 + $0x20] sm:$0xff]
    %v755 = vld [vmem:[%s4 + $0x28] sm:$0xff]
    %v756 = vld [vmem:[%s4 + $0x30] sm:$0xff]
    %v757 = vld [vmem:[%s4 + $0x38] sm:$0xff]
    %v758 = vld [vmem:[%s4 + $0x40] sm:$0xff]
    %v759 = vld [vmem:[%s4 + $0x48] sm:$0xff]
    %v760 = vld [vmem:[%s4 + $0x50] sm:$0xff]
    %v761 = vld [vmem:[%s4 + $0x58] sm:$0xff]
    %v762 = vld [vmem:[%s4 + $0x60] sm:$0xff]
    %v763 = vld [vmem:[%s4 + $0x68] sm:$0xff]
    %v764 = vld [vmem:[%s4 + $0x70] sm:$0xff]
    %v765 = vld [vmem:[%s4 + $0x78] sm:$0xff]
    %v766 = vld [vmem:[%s4 + $0x80] sm:$0xff]
    %v767 = vld [vmem:[%s4 + $0x88] sm:$0xff]
    %v768 = vld [vmem:[%s4 + $0x90] sm:$0xff]
    %v769 = vld [vmem:[%s4 + $0x98] sm:$0xff]
    %v770 = vld [vmem:[%s4 + $0xa0] sm:$0xff]
    %v771 = vld [vmem:[%s4 + $0xa8] sm:$0xff]
    %v772 = vld [vmem:[%s4 + $0xb0] sm:$0xff]
    %v773 = vld [vmem:[%s4 + $0xb8] sm:$0xff]
    %v774 = vld [vmem:[%s4 + $0xc0] sm:$0xff]
    %v775 = vld [vmem:[%s4 + $0xc8] sm:$0xff]
    %v776 = vld [vmem:[%s4 + $0xd0] sm:$0xff]
    %v777 = vld [vmem:[%s4 + $0xd8] sm:$0xff]
    %v778 = vld [vmem:[%s4 + $0xe0] sm:$0xff]
    %v779 = vld [vmem:[%s4 + $0xe8] sm:$0xff]
    %v780 = vld [vmem:[%s4 + $0xf0] sm:$0xff]
    %v781 = vld [vmem:[%s4 + $0xf8] sm:$0xff]
    %v782 = vmul.f32 %v656, %v750
    %v783 = vmul.f32 %v658, %v751
    %v784 = vmul.f32 %v662, %v752
    %v785 = vmul.f32 %v664, %v753
    %v786 = vmul.f32 %v668, %v754
    %v787 = vmul.f32 %v670, %v755
    %v788 = vmul.f32 %v674, %v756
    %v789 = vmul.f32 %v676, %v757
    %v790 = vmul.f32 %v680, %v758
    %v791 = vmul.f32 %v682, %v759
    %v792 = vmul.f32 %v686, %v760
    %v793 = vmul.f32 %v688, %v761
    %v794 = vmul.f32 %v692, %v762
    %v795 = vmul.f32 %v694, %v763
    %v796 = vmul.f32 %v698, %v764
    %v797 = vmul.f32 %v700, %v765
    %v798 = vmul.f32 %v704, %v766
    %v799 = vmul.f32 %v706, %v767
    %v800 = vmul.f32 %v710, %v768
    %v801 = vmul.f32 %v712, %v769
    %v802 = vmul.f32 %v716, %v770
    %v803 = vmul.f32 %v718, %v771
    %v804 = vmul.f32 %v722, %v772
    %v805 = vmul.f32 %v724, %v773
    %v806 = vmul.f32 %v728, %v774
    %v807 = vmul.f32 %v730, %v775
    %v808 = vmul.f32 %v734, %v776
    %v809 = vmul.f32 %v736, %v777
    %v810 = vmul.f32 %v740, %v778
    %v811 = vmul.f32 %v742, %v779
    %v812 = vmul.f32 %v746, %v780
    %v813 = vmul.f32 %v748, %v781
    %v814 = vld [vmem:[%s5] sm:$0xff]
    %v815 = vld [vmem:[%s5 + $0x8] sm:$0xff]
    %v816 = vld [vmem:[%s5 + $0x10] sm:$0xff]
    %v817 = vld [vmem:[%s5 + $0x18] sm:$0xff]
    %v818 = vld [vmem:[%s5 + $0x20] sm:$0xff]
    %v819 = vld [vmem:[%s5 + $0x28] sm:$0xff]
    %v820 = vld [vmem:[%s5 + $0x30] sm:$0xff]
    %v821 = vld [vmem:[%s5 + $0x38] sm:$0xff]
    %v822 = vld [vmem:[%s5 + $0x40] sm:$0xff]
    %v823 = vld [vmem:[%s5 + $0x48] sm:$0xff]
    %v824 = vld [vmem:[%s5 + $0x50] sm:$0xff]
    %v825 = vld [vmem:[%s5 + $0x58] sm:$0xff]
    %v826 = vld [vmem:[%s5 + $0x60] sm:$0xff]
    %v827 = vld [vmem:[%s5 + $0x68] sm:$0xff]
    %v828 = vld [vmem:[%s5 + $0x70] sm:$0xff]
    %v829 = vld [vmem:[%s5 + $0x78] sm:$0xff]
    %v830 = vld [vmem:[%s5 + $0x80] sm:$0xff]
    %v831 = vld [vmem:[%s5 + $0x88] sm:$0xff]
    %vm832 = vcmask 130048
    %v834 = vsel %vm832, %v783, 0
    %v837 = vsel %vm832, %v785, 0
    %v840 = vsel %vm832, %v787, 0
    %v843 = vsel %vm832, %v789, 0
    %v846 = vsel %vm832, %v791, 0
    %v849 = vsel %vm832, %v793, 0
    %v852 = vsel %vm832, %v795, 0
    %v855 = vsel %vm832, %v797, 0
    %v858 = vsel %vm832, %v799, 0
    %v861 = vsel %vm832, %v801, 0
    %v864 = vsel %vm832, %v803, 0
    %v867 = vsel %vm832, %v805, 0
    %v870 = vsel %vm832, %v807, 0
    %v873 = vsel %vm832, %v809, 0
    %v876 = vsel %vm832, %v811, 0
    %v879 = vsel %vm832, %v813, 0
    %881 = vmatprep.subr.mxu0 0.0
    %882 = vmatpush1.msra.mxu0 %v814
    %883 = vmatprep.subr.mxu0 0.0
    %884 = vmatpush1.msra.mxu0 %v815
    %885 = vmatprep.subr.mxu0 0.0
    %886 = vmatpush1.msra.mxu0 %v816
    %887 = vmatprep.subr.mxu0 0.0
    %888 = vmatpush1.msra.mxu0 %v817
    %889 = vmatprep.subr.mxu0 0.0
    %890 = vmatpush1.msra.mxu0 %v818
    %891 = vmatprep.subr.mxu0 0.0
    %892 = vmatpush1.msra.mxu0 %v819
    %893 = vmatprep.subr.mxu0 0.0
    %894 = vmatpush1.msra.mxu0 %v820
    %895 = vmatprep.subr.mxu0 0.0
    %896 = vmatpush1.msra.mxu0 %v821
    %897 = vmatprep.subr.mxu0 0.0
    %898 = vmatpush1.msra.mxu0 %v822
    %899 = vmatprep.subr.mxu0 0.0
    %900 = vmatpush1.msra.mxu0 %v823
    %901 = vmatprep.subr.mxu0 0.0
    %902 = vmatpush1.msra.mxu0 %v824
    %903 = vmatprep.subr.mxu0 0.0
    %904 = vmatpush1.msra.mxu0 %v825
    %905 = vmatprep.subr.mxu0 0.0
    %906 = vmatpush1.msra.mxu0 %v826
    %907 = vmatprep.subr.mxu0 0.0
    %908 = vmatpush1.msra.mxu0 %v827
    %909 = vmatprep.subr.mxu0 0.0
    %910 = vmatpush1.msra.mxu0 %v828
    %911 = vmatprep.subr.mxu0 0.0
    %912 = vmatpush1.msra.mxu0 %v829
    %913 = vmatprep.subr.mxu0 0.0
    %914 = vmatpush1.msra.mxu0 %v830
    %915 = vmatprep.subr.mxu0 0.0
    %916 = vmatpush1.msra.mxu0 %v831
    %917 = vmatprep.subr.mxu0 0.0
    %918 = vmatpush1.msra.mxu0 0.0
    %919 = vmatprep.subr.mxu0 0.0
    %920 = vmatpush1.msra.mxu0 0.0
    %921 = vmatprep.subr.mxu0 0.0
    %922 = vmatpush1.msra.mxu0 0.0
    %923 = vmatprep.subr.mxu0 0.0
    %924 = vmatpush1.msra.mxu0 0.0
    %925 = vmatprep.subr.mxu0 0.0
    %926 = vmatpush1.msra.mxu0 0.0
    %927 = vmatprep.subr.mxu0 0.0
    %928 = vmatpush1.msra.mxu0 0.0
    %929 = vmatprep.subr.mxu0 0.0
    %930 = vmatpush1.msra.mxu0 0.0
    %931 = vmatprep.subr.mxu0 0.0
    %932 = vmatpush1.msra.mxu0 0.0
    %933 = vmatprep.subr.mxu0 0.0
    %934 = vmatpush1.msra.mxu0 0.0
    %935 = vmatprep.subr.mxu0 0.0
    %936 = vmatpush1.msra.mxu0 0.0
    %937 = vmatprep.subr.mxu0 0.0
    %938 = vmatpush1.msra.mxu0 0.0
    %939 = vmatprep.subr.mxu0 0.0
    %940 = vmatpush1.msra.mxu0 0.0
    %941 = vmatprep.subr.mxu0 0.0
    %942 = vmatpush1.msra.mxu0 0.0
    %943 = vmatprep.subr.mxu0 0.0
    %944 = vmatpush1.msra.mxu0 0.0
    %945 = vmatprep.mubr.f32.mxu0 %v834
    %946 = vmatmul.mubr.f32.gmra.mrb[0].mxu0 %v782
    %v947 = vpop.f32.mrb[0].mxu0
    %v948 = vadd.f32 0.0, %v947
    %v949 = vpop.f32.mrb[0].mxu0
    %950 = vmatprep.mubr.f32.mxu0 %v837
    %951 = vmatmul.mubr.f32.gmra.mrb[0].mxu0 %v784
    %v952 = vpop.f32.mrb[0].mxu0
    %v953 = vadd.f32 0.0, %v952
    %v954 = vpop.f32.mrb[0].mxu0
    %955 = vmatprep.mubr.f32.mxu0 %v840
    %956 = vmatmul.mubr.f32.gmra.mrb[0].mxu0 %v786
    %v957 = vpop.f32.mrb[0].mxu0
    %v958 = vadd.f32 0.0, %v957
    %v959 = vpop.f32.mrb[0].mxu0
    %960 = vmatprep.mubr.f32.mxu0 %v843
    %961 = vmatmul.mubr.f32.gmra.mrb[0].mxu0 %v788
    %v962 = vpop.f32.mrb[0].mxu0
    %v963 = vadd.f32 0.0, %v962
    %v964 = vpop.f32.mrb[0].mxu0
    %965 = vmatprep.mubr.f32.mxu0 %v846
    %966 = vmatmul.mubr.f32.gmra.mrb[0].mxu0 %v790
    %v967 = vpop.f32.mrb[0].mxu0
    %v968 = vadd.f32 0.0, %v967
    %v969 = vpop.f32.mrb[0].mxu0
    %970 = vmatprep.mubr.f32.mxu0 %v849
    %971 = vmatmul.mubr.f32.gmra.mrb[0].mxu0 %v792
    %v972 = vpop.f32.mrb[0].mxu0
    %v973 = vadd.f32 0.0, %v972
    %v974 = vpop.f32.mrb[0].mxu0
    %975 = vmatprep.mubr.f32.mxu0 %v852
    %976 = vmatmul.mubr.f32.gmra.mrb[0].mxu0 %v794
    %v977 = vpop.f32.mrb[0].mxu0
    %v978 = vadd.f32 0.0, %v977
    %v979 = vpop.f32.mrb[0].mxu0
    %980 = vmatprep.mubr.f32.mxu0 %v855
    %981 = vmatmul.mubr.f32.gmra.mrb[0].mxu0 %v796
    %v982 = vpop.f32.mrb[0].mxu0
    %v983 = vadd.f32 0.0, %v982
    %v984 = vpop.f32.mrb[0].mxu0
    %985 = vmatprep.mubr.f32.mxu0 %v858
    %986 = vmatmul.mubr.f32.gmra.mrb[0].mxu0 %v798
    %v987 = vpop.f32.mrb[0].mxu0
    %v988 = vadd.f32 0.0, %v987
    %v989 = vpop.f32.mrb[0].mxu0
    %990 = vmatprep.mubr.f32.mxu0 %v861
    %991 = vmatmul.mubr.f32.gmra.mrb[0].mxu0 %v800
    %v992 = vpop.f32.mrb[0].mxu0
    %v993 = vadd.f32 0.0, %v992
    %v994 = vpop.f32.mrb[0].mxu0
    %995 = vmatprep.mubr.f32.mxu0 %v864
    %996 = vmatmul.mubr.f32.gmra.mrb[0].mxu0 %v802
    %v997 = vpop.f32.mrb[0].mxu0
    %v998 = vadd.f32 0.0, %v997
    %v999 = vpop.f32.mrb[0].mxu0
    %1000 = vmatprep.mubr.f32.mxu0 %v867
    %1001 = vmatmul.mubr.f32.gmra.mrb[0].mxu0 %v804
    %v1002 = vpop.f32.mrb[0].mxu0
    %v1003 = vadd.f32 0.0, %v1002
    %v1004 = vpop.f32.mrb[0].mxu0
    %1005 = vmatprep.mubr.f32.mxu0 %v870
    %1006 = vmatmul.mubr.f32.gmra.mrb[0].mxu0 %v806
    %v1007 = vpop.f32.mrb[0].mxu0
    %v1008 = vadd.f32 0.0, %v1007
    %v1009 = vpop.f32.mrb[0].mxu0
    %1010 = vmatprep.mubr.f32.mxu0 %v873
    %1011 = vmatmul.mubr.f32.gmra.mrb[0].mxu0 %v808
    %v1012 = vpop.f32.mrb[0].mxu0
    %v1013 = vadd.f32 0.0, %v1012
    %v1014 = vpop.f32.mrb[0].mxu0
    %1015 = vmatprep.mubr.f32.mxu0 %v876
    %1016 = vmatmul.mubr.f32.gmra.mrb[0].mxu0 %v810
    %v1017 = vpop.f32.mrb[0].mxu0
    %v1018 = vadd.f32 0.0, %v1017
    %v1019 = vpop.f32.mrb[0].mxu0
    %1020 = vmatprep.mubr.f32.mxu0 %v879
    %1021 = vmatmul.mubr.f32.gmra.mrb[0].mxu0 %v812
    %v1022 = vpop.f32.mrb[0].mxu0
    %v1023 = vadd.f32 0.0, %v1022
    %v1024 = vpop.f32.mrb[0].mxu0
    %1025 = vdwg.mxu0
    %v1026 = vsel %vm832, %v948, 0.0
    %v1027 = vsel %vm832, %v953, 0.0
    %v1028 = vadd.f32 %v1026, %v1027
    %v1029 = vsel %vm832, %v958, 0.0
    %v1030 = vadd.f32 %v1028, %v1029
    %v1031 = vsel %vm832, %v963, 0.0
    %v1032 = vadd.f32 %v1030, %v1031
    %v1033 = vsel %vm832, %v968, 0.0
    %v1034 = vadd.f32 %v1032, %v1033
    %v1035 = vsel %vm832, %v973, 0.0
    %v1036 = vadd.f32 %v1034, %v1035
    %v1037 = vsel %vm832, %v978, 0.0
    %v1038 = vadd.f32 %v1036, %v1037
    %v1039 = vsel %vm832, %v983, 0.0
    %v1040 = vadd.f32 %v1038, %v1039
    %v1041 = vrot.slane %v1040, 4
    %v1042 = vadd.f32 %v1040, %v1041
    %v1043 = vrot.slane %v1042, 2
    %v1044 = vadd.f32 %v1042, %v1043
    %v1045 = vrot.slane %v1044, 1
    %v1046 = vadd.f32 %v1044, %v1045
    %v1047 = vsel %vm832, %v988, 0.0
    %v1048 = vsel %vm832, %v993, 0.0
    %v1049 = vadd.f32 %v1047, %v1048
    %v1050 = vsel %vm832, %v998, 0.0
    %v1051 = vadd.f32 %v1049, %v1050
    %v1052 = vsel %vm832, %v1003, 0.0
    %v1053 = vadd.f32 %v1051, %v1052
    %v1054 = vsel %vm832, %v1008, 0.0
    %v1055 = vadd.f32 %v1053, %v1054
    %v1056 = vsel %vm832, %v1013, 0.0
    %v1057 = vadd.f32 %v1055, %v1056
    %v1058 = vsel %vm832, %v1018, 0.0
    %v1059 = vadd.f32 %v1057, %v1058
    %v1060 = vsel %vm832, %v1023, 0.0
    %v1061 = vadd.f32 %v1059, %v1060
    %v1062 = vrot.slane %v1061, 4
    %v1063 = vadd.f32 %v1061, %v1062
    %v1064 = vrot.slane %v1063, 2
    %v1065 = vadd.f32 %v1063, %v1064
    %v1066 = vrot.slane %v1065, 1
    %v1067 = vadd.f32 %v1065, %v1066
    %s1068 = sld [smem:[#allocation2]]
    %v1069 = vstv %s1068
    %v1070 = vadd.f32 %v1046, %v1069
    %v1071 = vadd.f32 %v1067, %v1069
    %v1072 = vld [vmem:[%s6] sm:$0xff]
    %v1073 = vld [vmem:[%s6 + $0x8] sm:$0xff]
    %s1074 = sld [smem:[#allocation3]]
    %v1075 = vstv %s1074
    %vm1078 = vcmask 1041409
    %v1079 = vsel %vm1078, %v1071, %v1070
    %v1080 = vsel %vm832, %v1079, 0
    %1082 = vmatprep.subr.mxu0 0.0
    %1083 = vmatpush1.msra.mxu0 %v1072
    %1084 = vmatprep.subr.mxu0 0.0
    %1085 = vmatpush1.msra.mxu0 %v1073
    %1086 = vmatprep.subr.mxu0 0.0
    %1087 = vmatpush1.msra.mxu0 0.0
    %1088 = vmatprep.subr.mxu0 0.0
    %1089 = vmatpush1.msra.mxu0 0.0
    %1090 = vmatprep.subr.mxu0 0.0
    %1091 = vmatpush1.msra.mxu0 0.0
    %1092 = vmatprep.subr.mxu0 0.0
    %1093 = vmatpush1.msra.mxu0 0.0
    %1094 = vmatprep.subr.mxu0 0.0
    %1095 = vmatpush1.msra.mxu0 0.0
    %1096 = vmatprep.subr.mxu0 0.0
    %1097 = vmatpush1.msra.mxu0 0.0
    %1098 = vmatprep.subr.mxu0 0.0
    %1099 = vmatpush1.msra.mxu0 0.0
    %1100 = vmatprep.subr.mxu0 0.0
    %1101 = vmatpush1.msra.mxu0 0.0
    %1102 = vmatprep.subr.mxu0 0.0
    %1103 = vmatpush1.msra.mxu0 0.0
    %1104 = vmatprep.subr.mxu0 0.0
    %1105 = vmatpush1.msra.mxu0 0.0
    %1106 = vmatprep.subr.mxu0 0.0
    %1107 = vmatpush1.msra.mxu0 0.0
    %1108 = vmatprep.subr.mxu0 0.0
    %1109 = vmatpush1.msra.mxu0 0.0
    %1110 = vmatprep.subr.mxu0 0.0
    %1111 = vmatpush1.msra.mxu0 0.0
    %1112 = vmatprep.subr.mxu0 0.0
    %1113 = vmatpush1.msra.mxu0 0.0
    %1114 = vmatprep.subr.mxu0 0.0
    %1115 = vmatpush1.msra.mxu0 0.0
    %1116 = vmatprep.subr.mxu0 0.0
    %1117 = vmatpush1.msra.mxu0 0.0
    %1118 = vmatprep.subr.mxu0 0.0
    %1119 = vmatpush1.msra.mxu0 0.0
    %1120 = vmatprep.subr.mxu0 0.0
    %1121 = vmatpush1.msra.mxu0 0.0
    %1122 = vmatprep.subr.mxu0 0.0
    %1123 = vmatpush1.msra.mxu0 0.0
    %1124 = vmatprep.subr.mxu0 0.0
    %1125 = vmatpush1.msra.mxu0 0.0
    %1126 = vmatprep.subr.mxu0 0.0
    %1127 = vmatpush1.msra.mxu0 0.0
    %1128 = vmatprep.subr.mxu0 0.0
    %1129 = vmatpush1.msra.mxu0 0.0
    %1130 = vmatprep.subr.mxu0 0.0
    %1131 = vmatpush1.msra.mxu0 0.0
    %1132 = vmatprep.subr.mxu0 0.0
    %1133 = vmatpush1.msra.mxu0 0.0
    %1134 = vmatprep.subr.mxu0 0.0
    %1135 = vmatpush1.msra.mxu0 0.0
    %1136 = vmatprep.subr.mxu0 0.0
    %1137 = vmatpush1.msra.mxu0 0.0
    %1138 = vmatprep.subr.mxu0 0.0
    %1139 = vmatpush1.msra.mxu0 0.0
    %1140 = vmatprep.subr.mxu0 0.0
    %1141 = vmatpush1.msra.mxu0 0.0
    %1142 = vmatprep.subr.mxu0 0.0
    %1143 = vmatpush1.msra.mxu0 0.0
    %1144 = vmatprep.subr.mxu0 0.0
    %1145 = vmatpush1.msra.mxu0 0.0
    %1146 = vmatprep.mubr.f32.mxu0 0.0
    %1147 = vmatmul.mubr.f32.gmra.mrb[0].mxu0 %v1080
    %v1148 = vpop.f32.mrb[0].mxu0
    %v1149 = vadd.f32 %v1075, %v1148
    %v1150 = vpop.f32.mrb[0].mxu0
    %1151 = vdwg.mxu0
    %vm1152 = vcmask 123904
    %v1153 = vsel %vm1152, %v1149, 0.0
    %1154 = vadd.xlane.f32.xlu0 %v1153
    %v1155 = vpop.xlane.xlu0 %1154
    %v1156 = vrcp.pop 16.0
    %v1157 = vmul.f32 %v1155, %v1156
    %v1158 = vsub.f32 %v1149, %v1157
    %v1159 = vmul.f32 %v1158, %v1158
    %v1160 = vsel %vm1152, %v1159, 0.0
    %1161 = vadd.xlane.f32.xlu0 %v1160
    %v1162 = vpop.xlane.xlu0 %1161
    %v1163 = vmul.f32 %v1162, %v1156
    %v1164 = vadd.f32 %v1163, 1e-05
    %v1165 = vrsqrt.pop %v1164
    %v1166 = vmul.f32 %v1158, %v1165
    %v1167 = vmax.f32 %v1166, 0.0
    %s1168 = scalar_lea.vmem %s6, 16
    %v1169 = vld [vmem:[%s1168] sm:$0xff]
    %v1170 = vld [vmem:[%s1168 + $0x8] sm:$0xff]
    %s1171 = sld [smem:[#allocation3 + $0x1]]
    %v1172 = vstv %s1171
    %v1174 = vsel %vm832, %v1167, 0
    %1176 = vmatprep.subr.mxu0 0.0
    %1177 = vmatpush1.msra.mxu0 %v1169
    %1178 = vmatprep.subr.mxu0 0.0
    %1179 = vmatpush1.msra.mxu0 %v1170
    %1180 = vmatprep.subr.mxu0 0.0
    %1181 = vmatpush1.msra.mxu0 0.0
    %1182 = vmatprep.subr.mxu0 0.0
    %1183 = vmatpush1.msra.mxu0 0.0
    %1184 = vmatprep.subr.mxu0 0.0
    %1185 = vmatpush1.msra.mxu0 0.0
    %1186 = vmatprep.subr.mxu0 0.0
    %1187 = vmatpush1.msra.mxu0 0.0
    %1188 = vmatprep.subr.mxu0 0.0
    %1189 = vmatpush1.msra.mxu0 0.0
    %1190 = vmatprep.subr.mxu0 0.0
    %1191 = vmatpush1.msra.mxu0 0.0
    %1192 = vmatprep.subr.mxu0 0.0
    %1193 = vmatpush1.msra.mxu0 0.0
    %1194 = vmatprep.subr.mxu0 0.0
    %1195 = vmatpush1.msra.mxu0 0.0
    %1196 = vmatprep.subr.mxu0 0.0
    %1197 = vmatpush1.msra.mxu0 0.0
    %1198 = vmatprep.subr.mxu0 0.0
    %1199 = vmatpush1.msra.mxu0 0.0
    %1200 = vmatprep.subr.mxu0 0.0
    %1201 = vmatpush1.msra.mxu0 0.0
    %1202 = vmatprep.subr.mxu0 0.0
    %1203 = vmatpush1.msra.mxu0 0.0
    %1204 = vmatprep.subr.mxu0 0.0
    %1205 = vmatpush1.msra.mxu0 0.0
    %1206 = vmatprep.subr.mxu0 0.0
    %1207 = vmatpush1.msra.mxu0 0.0
    %1208 = vmatprep.subr.mxu0 0.0
    %1209 = vmatpush1.msra.mxu0 0.0
    %1210 = vmatprep.subr.mxu0 0.0
    %1211 = vmatpush1.msra.mxu0 0.0
    %1212 = vmatprep.subr.mxu0 0.0
    %1213 = vmatpush1.msra.mxu0 0.0
    %1214 = vmatprep.subr.mxu0 0.0
    %1215 = vmatpush1.msra.mxu0 0.0
    %1216 = vmatprep.subr.mxu0 0.0
    %1217 = vmatpush1.msra.mxu0 0.0
    %1218 = vmatprep.subr.mxu0 0.0
    %1219 = vmatpush1.msra.mxu0 0.0
    %1220 = vmatprep.subr.mxu0 0.0
    %1221 = vmatpush1.msra.mxu0 0.0
    %1222 = vmatprep.subr.mxu0 0.0
    %1223 = vmatpush1.msra.mxu0 0.0
    %1224 = vmatprep.subr.mxu0 0.0
    %1225 = vmatpush1.msra.mxu0 0.0
    %1226 = vmatprep.subr.mxu0 0.0
    %1227 = vmatpush1.msra.mxu0 0.0
    %1228 = vmatprep.subr.mxu0 0.0
    %1229 = vmatpush1.msra.mxu0 0.0
    %1230 = vmatprep.subr.mxu0 0.0
    %1231 = vmatpush1.msra.mxu0 0.0
    %1232 = vmatprep.subr.mxu0 0.0
    %1233 = vmatpush1.msra.mxu0 0.0
    %1234 = vmatprep.subr.mxu0 0.0
    %1235 = vmatpush1.msra.mxu0 0.0
    %1236 = vmatprep.subr.mxu0 0.0
    %1237 = vmatpush1.msra.mxu0 0.0
    %1238 = vmatprep.subr.mxu0 0.0
    %1239 = vmatpush1.msra.mxu0 0.0
    %1240 = vmatprep.mubr.f32.mxu0 0.0
    %1241 = vmatmul.mubr.f32.gmra.mrb[0].mxu0 %v1174
    %v1242 = vpop.f32.mrb[0].mxu0
    %v1243 = vadd.f32 %v1172, %v1242
    %v1244 = vpop.f32.mrb[0].mxu0
    %1245 = vdwg.mxu0
    %v1246 = vsel %vm1152, %v1243, 0.0
    %1247 = vadd.xlane.f32.xlu0 %v1246
    %v1248 = vpop.xlane.xlu0 %1247
    %v1249 = vmul.f32 %v1248, %v1156
    %v1250 = vsub.f32 %v1243, %v1249
    %v1251 = vmul.f32 %v1250, %v1250
    %v1252 = vsel %vm1152, %v1251, 0.0
    %1253 = vadd.xlane.f32.xlu0 %v1252
    %v1254 = vpop.xlane.xlu0 %1253
    %v1255 = vmul.f32 %v1254, %v1156
    %v1256 = vadd.f32 %v1255, 1e-05
    %v1257 = vrsqrt.pop %v1256
    %v1258 = vmul.f32 %v1250, %v1257
    %v1260 = vrot.slane %v1258, 1
    %v1263 = vadd.f32 %v1070, %v1258
    %v1264 = vadd.f32 %v1071, %v1260
    %s1265 = scalar_lea.vmem %s6, 32
    %v1266 = vld [vmem:[%s1265] sm:$0xff]
    %v1267 = vld [vmem:[%s1265 + $0x8] sm:$0xff]
    %s1268 = sld [smem:[#allocation3 + $0x2]]
    %v1269 = vstv %s1268
    %v1272 = vrot.slane %v1264, 7
    %v1273 = vsel %vm1078, %v1272, %v1263
    %v1274 = vsel %vm832, %v1273, 0
    %1276 = vmatprep.subr.mxu0 0.0
    %1277 = vmatpush1.msra.mxu0 %v1266
    %1278 = vmatprep.subr.mxu0 0.0
    %1279 = vmatpush1.msra.mxu0 %v1267
    %1280 = vmatprep.subr.mxu0 0.0
    %1281 = vmatpush1.msra.mxu0 0.0
    %1282 = vmatprep.subr.mxu0 0.0
    %1283 = vmatpush1.msra.mxu0 0.0
    %1284 = vmatprep.subr.mxu0 0.0
    %1285 = vmatpush1.msra.mxu0 0.0
    %1286 = vmatprep.subr.mxu0 0.0
    %1287 = vmatpush1.msra.mxu0 0.0
    %1288 = vmatprep.subr.mxu0 0.0
    %1289 = vmatpush1.msra.mxu0 0.0
    %1290 = vmatprep.subr.mxu0 0.0
    %1291 = vmatpush1.msra.mxu0 0.0
    %1292 = vmatprep.subr.mxu0 0.0
    %1293 = vmatpush1.msra.mxu0 0.0
    %1294 = vmatprep.subr.mxu0 0.0
    %1295 = vmatpush1.msra.mxu0 0.0
    %1296 = vmatprep.subr.mxu0 0.0
    %1297 = vmatpush1.msra.mxu0 0.0
    %1298 = vmatprep.subr.mxu0 0.0
    %1299 = vmatpush1.msra.mxu0 0.0
    %1300 = vmatprep.subr.mxu0 0.0
    %1301 = vmatpush1.msra.mxu0 0.0
    %1302 = vmatprep.subr.mxu0 0.0
    %1303 = vmatpush1.msra.mxu0 0.0
    %1304 = vmatprep.subr.mxu0 0.0
    %1305 = vmatpush1.msra.mxu0 0.0
    %1306 = vmatprep.subr.mxu0 0.0
    %1307 = vmatpush1.msra.mxu0 0.0
    %1308 = vmatprep.subr.mxu0 0.0
    %1309 = vmatpush1.msra.mxu0 0.0
    %1310 = vmatprep.subr.mxu0 0.0
    %1311 = vmatpush1.msra.mxu0 0.0
    %1312 = vmatprep.subr.mxu0 0.0
    %1313 = vmatpush1.msra.mxu0 0.0
    %1314 = vmatprep.subr.mxu0 0.0
    %1315 = vmatpush1.msra.mxu0 0.0
    %1316 = vmatprep.subr.mxu0 0.0
    %1317 = vmatpush1.msra.mxu0 0.0
    %1318 = vmatprep.subr.mxu0 0.0
    %1319 = vmatpush1.msra.mxu0 0.0
    %1320 = vmatprep.subr.mxu0 0.0
    %1321 = vmatpush1.msra.mxu0 0.0
    %1322 = vmatprep.subr.mxu0 0.0
    %1323 = vmatpush1.msra.mxu0 0.0
    %1324 = vmatprep.subr.mxu0 0.0
    %1325 = vmatpush1.msra.mxu0 0.0
    %1326 = vmatprep.subr.mxu0 0.0
    %1327 = vmatpush1.msra.mxu0 0.0
    %1328 = vmatprep.subr.mxu0 0.0
    %1329 = vmatpush1.msra.mxu0 0.0
    %1330 = vmatprep.subr.mxu0 0.0
    %1331 = vmatpush1.msra.mxu0 0.0
    %1332 = vmatprep.subr.mxu0 0.0
    %1333 = vmatpush1.msra.mxu0 0.0
    %1334 = vmatprep.subr.mxu0 0.0
    %1335 = vmatpush1.msra.mxu0 0.0
    %1336 = vmatprep.subr.mxu0 0.0
    %1337 = vmatpush1.msra.mxu0 0.0
    %1338 = vmatprep.subr.mxu0 0.0
    %1339 = vmatpush1.msra.mxu0 0.0
    %1340 = vmatprep.mubr.f32.mxu0 0.0
    %1341 = vmatmul.mubr.f32.gmra.mrb[0].mxu0 %v1274
    %v1342 = vpop.f32.mrb[0].mxu0
    %v1343 = vadd.f32 %v1269, %v1342
    %v1344 = vpop.f32.mrb[0].mxu0
    %1345 = vdwg.mxu0
    %v1346 = vsel %vm1152, %v1343, 0.0
    %1347 = vadd.xlane.f32.xlu0 %v1346
    %v1348 = vpop.xlane.xlu0 %1347
    %v1349 = vmul.f32 %v1348, %v1156
    %v1350 = vsub.f32 %v1343, %v1349
    %v1351 = vmul.f32 %v1350, %v1350
    %v1352 = vsel %vm1152, %v1351, 0.0
    %1353 = vadd.xlane.f32.xlu0 %v1352
    %v1354 = vpop.xlane.xlu0 %1353
    %v1355 = vmul.f32 %v1354, %v1156
    %v1356 = vadd.f32 %v1355, 1e-05
    %v1357 = vrsqrt.pop %v1356
    %v1358 = vmul.f32 %v1350, %v1357
    %v1359 = vmax.f32 %v1358, 0.0
    %s1360 = scalar_lea.vmem %s6, 48
    %v1361 = vld [vmem:[%s1360] sm:$0xff]
    %v1362 = vld [vmem:[%s1360 + $0x8] sm:$0xff]
    %s1363 = sld [smem:[#allocation3 + $0x3]]
    %v1364 = vstv %s1363
    %v1366 = vsel %vm832, %v1359, 0
    %1368 = vmatprep.subr.mxu0 0.0
    %1369 = vmatpush1.msra.mxu0 %v1361
    %1370 = vmatprep.subr.mxu0 0.0
    %1371 = vmatpush1.msra.mxu0 %v1362
    %1372 = vmatprep.subr.mxu0 0.0
    %1373 = vmatpush1.msra.mxu0 0.0
    %1374 = vmatprep.subr.mxu0 0.0
    %1375 = vmatpush1.msra.mxu0 0.0
    %1376 = vmatprep.subr.mxu0 0.0
    %1377 = vmatpush1.msra.mxu0 0.0
    %1378 = vmatprep.subr.mxu0 0.0
    %1379 = vmatpush1.msra.mxu0 0.0
    %1380 = vmatprep.subr.mxu0 0.0
    %1381 = vmatpush1.msra.mxu0 0.0
    %1382 = vmatprep.subr.mxu0 0.0
    %1383 = vmatpush1.msra.mxu0 0.0
    %1384 = vmatprep.subr.mxu0 0.0
    %1385 = vmatpush1.msra.mxu0 0.0
    %1386 = vmatprep.subr.mxu0 0.0
    %1387 = vmatpush1.msra.mxu0 0.0
    %1388 = vmatprep.subr.mxu0 0.0
    %1389 = vmatpush1.msra.mxu0 0.0
    %1390 = vmatprep.subr.mxu0 0.0
    %1391 = vmatpush1.msra.mxu0 0.0
    %1392 = vmatprep.subr.mxu0 0.0
    %1393 = vmatpush1.msra.mxu0 0.0
    %1394 = vmatprep.subr.mxu0 0.0
    %1395 = vmatpush1.msra.mxu0 0.0
    %1396 = vmatprep.subr.mxu0 0.0
    %1397 = vmatpush1.msra.mxu0 0.0
    %1398 = vmatprep.subr.mxu0 0.0
    %1399 = vmatpush1.msra.mxu0 0.0
    %1400 = vmatprep.subr.mxu0 0.0
    %1401 = vmatpush1.msra.mxu0 0.0
    %1402 = vmatprep.subr.mxu0 0.0
    %1403 = vmatpush1.msra.mxu0 0.0
    %1404 = vmatprep.subr.mxu0 0.0
    %1405 = vmatpush1.msra.mxu0 0.0
    %1406 = vmatprep.subr.mxu0 0.0
    %1407 = vmatpush1.msra.mxu0 0.0
    %1408 = vmatprep.subr.mxu0 0.0
    %1409 = vmatpush1.msra.mxu0 0.0
    %1410 = vmatprep.subr.mxu0 0.0
    %1411 = vmatpush1.msra.mxu0 0.0
    %1412 = vmatprep.subr.mxu0 0.0
    %1413 = vmatpush1.msra.mxu0 0.0
    %1414 = vmatprep.subr.mxu0 0.0
    %1415 = vmatpush1.msra.mxu0 0.0
    %1416 = vmatprep.subr.mxu0 0.0
    %1417 = vmatpush1.msra.mxu0 0.0
    %1418 = vmatprep.subr.mxu0 0.0
    %1419 = vmatpush1.msra.mxu0 0.0
    %1420 = vmatprep.subr.mxu0 0.0
    %1421 = vmatpush1.msra.mxu0 0.0
    %1422 = vmatprep.subr.mxu0 0.0
    %1423 = vmatpush1.msra.mxu0 0.0
    %1424 = vmatprep.subr.mxu0 0.0
    %1425 = vmatpush1.msra.mxu0 0.0
    %1426 = vmatprep.subr.mxu0 0.0
    %1427 = vmatpush1.msra.mxu0 0.0
    %1428 = vmatprep.subr.mxu0 0.0
    %1429 = vmatpush1.msra.mxu0 0.0
    %1430 = vmatprep.subr.mxu0 0.0
    %1431 = vmatpush1.msra.mxu0 0.0
    %1432 = vmatprep.mubr.f32.mxu0 0.0
    %1433 = vmatmul.mubr.f32.gmra.mrb[0].mxu0 %v1366
    %v1434 = vpop.f32.mrb[0].mxu0
    %v1435 = vadd.f32 %v1364, %v1434
    %v1436 = vpop.f32.mrb[0].mxu0
    %1437 = vdwg.mxu0
    %v1438 = vsel %vm1152, %v1435, 0.0
    %1439 = vadd.xlane.f32.xlu0 %v1438
    %v1440 = vpop.xlane.xlu0 %1439
    %v1441 = vmul.f32 %v1440, %v1156
    %v1442 = vsub.f32 %v1435, %v1441
    %v1443 = vmul.f32 %v1442, %v1442
    %v1444 = vsel %vm1152, %v1443, 0.0
    %1445 = vadd.xlane.f32.xlu0 %v1444
    %v1446 = vpop.xlane.xlu0 %1445
    %v1447 = vmul.f32 %v1446, %v1156
    %v1448 = vadd.f32 %v1447, 1e-05
    %v1449 = vrsqrt.pop %v1448
    %v1450 = vmul.f32 %v1442, %v1449
    %v1452 = vrot.slane %v1450, 1
    %v1455 = vadd.f32 %v1263, %v1450
    %v1456 = vadd.f32 %v1264, %v1452
    %s1457 = scalar_lea.vmem %s6, 64
    %v1458 = vld [vmem:[%s1457] sm:$0xff]
    %v1459 = vld [vmem:[%s1457 + $0x8] sm:$0xff]
    %s1460 = sld [smem:[#allocation3 + $0x4]]
    %v1461 = vstv %s1460
    %v1464 = vrot.slane %v1456, 7
    %v1465 = vsel %vm1078, %v1464, %v1455
    %v1466 = vsel %vm832, %v1465, 0
    %1468 = vmatprep.subr.mxu0 0.0
    %1469 = vmatpush1.msra.mxu0 %v1458
    %1470 = vmatprep.subr.mxu0 0.0
    %1471 = vmatpush1.msra.mxu0 %v1459
    %1472 = vmatprep.subr.mxu0 0.0
    %1473 = vmatpush1.msra.mxu0 0.0
    %1474 = vmatprep.subr.mxu0 0.0
    %1475 = vmatpush1.msra.mxu0 0.0
    %1476 = vmatprep.subr.mxu0 0.0
    %1477 = vmatpush1.msra.mxu0 0.0
    %1478 = vmatprep.subr.mxu0 0.0
    %1479 = vmatpush1.msra.mxu0 0.0
    %1480 = vmatprep.subr.mxu0 0.0
    %1481 = vmatpush1.msra.mxu0 0.0
    %1482 = vmatprep.subr.mxu0 0.0
    %1483 = vmatpush1.msra.mxu0 0.0
    %1484 = vmatprep.subr.mxu0 0.0
    %1485 = vmatpush1.msra.mxu0 0.0
    %1486 = vmatprep.subr.mxu0 0.0
    %1487 = vmatpush1.msra.mxu0 0.0
    %1488 = vmatprep.subr.mxu0 0.0
    %1489 = vmatpush1.msra.mxu0 0.0
    %1490 = vmatprep.subr.mxu0 0.0
    %1491 = vmatpush1.msra.mxu0 0.0
    %1492 = vmatprep.subr.mxu0 0.0
    %1493 = vmatpush1.msra.mxu0 0.0
    %1494 = vmatprep.subr.mxu0 0.0
    %1495 = vmatpush1.msra.mxu0 0.0
    %1496 = vmatprep.subr.mxu0 0.0
    %1497 = vmatpush1.msra.mxu0 0.0
    %1498 = vmatprep.subr.mxu0 0.0
    %1499 = vmatpush1.msra.mxu0 0.0
    %1500 = vmatprep.subr.mxu0 0.0
    %1501 = vmatpush1.msra.mxu0 0.0
    %1502 = vmatprep.subr.mxu0 0.0
    %1503 = vmatpush1.msra.mxu0 0.0
    %1504 = vmatprep.subr.mxu0 0.0
    %1505 = vmatpush1.msra.mxu0 0.0
    %1506 = vmatprep.subr.mxu0 0.0
    %1507 = vmatpush1.msra.mxu0 0.0
    %1508 = vmatprep.subr.mxu0 0.0
    %1509 = vmatpush1.msra.mxu0 0.0
    %1510 = vmatprep.subr.mxu0 0.0
    %1511 = vmatpush1.msra.mxu0 0.0
    %1512 = vmatprep.subr.mxu0 0.0
    %1513 = vmatpush1.msra.mxu0 0.0
    %1514 = vmatprep.subr.mxu0 0.0
    %1515 = vmatpush1.msra.mxu0 0.0
    %1516 = vmatprep.subr.mxu0 0.0
    %1517 = vmatpush1.msra.mxu0 0.0
    %1518 = vmatprep.subr.mxu0 0.0
    %1519 = vmatpush1.msra.mxu0 0.0
    %1520 = vmatprep.subr.mxu0 0.0
    %1521 = vmatpush1.msra.mxu0 0.0
    %1522 = vmatprep.subr.mxu0 0.0
    %1523 = vmatpush1.msra.mxu0 0.0
    %1524 = vmatprep.subr.mxu0 0.0
    %1525 = vmatpush1.msra.mxu0 0.0
    %1526 = vmatprep.subr.mxu0 0.0
    %1527 = vmatpush1.msra.mxu0 0.0
    %1528 = vmatprep.subr.mxu0 0.0
    %1529 = vmatpush1.msra.mxu0 0.0
    %1530 = vmatprep.subr.mxu0 0.0
    %1531 = vmatpush1.msra.mxu0 0.0
    %1532 = vmatprep.mubr.f32.mxu0 0.0
    %1533 = vmatmul.mubr.f32.gmra.mrb[0].mxu0 %v1466
    %v1534 = vpop.f32.mrb[0].mxu0
    %v1535 = vadd.f32 %v1461, %v1534
    %v1536 = vpop.f32.mrb[0].mxu0
    %1537 = vdwg.mxu0
    %v1538 = vsel %vm1152, %v1535, 0.0
    %1539 = vadd.xlane.f32.xlu0 %v1538
    %v1540 = vpop.xlane.xlu0 %1539
    %v1541 = vmul.f32 %v1540, %v1156
    %v1542 = vsub.f32 %v1535, %v1541
    %v1543 = vmul.f32 %v1542, %v1542
    %v1544 = vsel %vm1152, %v1543, 0.0
    %1545 = vadd.xlane.f32.xlu0 %v1544
    %v1546 = vpop.xlane.xlu0 %1545
    %v1547 = vmul.f32 %v1546, %v1156
    %v1548 = vadd.f32 %v1547, 1e-05
    %v1549 = vrsqrt.pop %v1548
    %v1550 = vmul.f32 %v1542, %v1549
    %v1551 = vmax.f32 %v1550, 0.0
    %s1552 = scalar_lea.vmem %s6, 80
    %v1553 = vld [vmem:[%s1552] sm:$0xff]
    %v1554 = vld [vmem:[%s1552 + $0x8] sm:$0xff]
    %s1555 = sld [smem:[#allocation3 + $0x5]]
    %v1556 = vstv %s1555
    %v1558 = vsel %vm832, %v1551, 0
    %1560 = vmatprep.subr.mxu0 0.0
    %1561 = vmatpush1.msra.mxu0 %v1553
    %1562 = vmatprep.subr.mxu0 0.0
    %1563 = vmatpush1.msra.mxu0 %v1554
    %1564 = vmatprep.subr.mxu0 0.0
    %1565 = vmatpush1.msra.mxu0 0.0
    %1566 = vmatprep.subr.mxu0 0.0
    %1567 = vmatpush1.msra.mxu0 0.0
    %1568 = vmatprep.subr.mxu0 0.0
    %1569 = vmatpush1.msra.mxu0 0.0
    %1570 = vmatprep.subr.mxu0 0.0
    %1571 = vmatpush1.msra.mxu0 0.0
    %1572 = vmatprep.subr.mxu0 0.0
    %1573 = vmatpush1.msra.mxu0 0.0
    %1574 = vmatprep.subr.mxu0 0.0
    %1575 = vmatpush1.msra.mxu0 0.0
    %1576 = vmatprep.subr.mxu0 0.0
    %1577 = vmatpush1.msra.mxu0 0.0
    %1578 = vmatprep.subr.mxu0 0.0
    %1579 = vmatpush1.msra.mxu0 0.0
    %1580 = vmatprep.subr.mxu0 0.0
    %1581 = vmatpush1.msra.mxu0 0.0
    %1582 = vmatprep.subr.mxu0 0.0
    %1583 = vmatpush1.msra.mxu0 0.0
    %1584 = vmatprep.subr.mxu0 0.0
    %1585 = vmatpush1.msra.mxu0 0.0
    %1586 = vmatprep.subr.mxu0 0.0
    %1587 = vmatpush1.msra.mxu0 0.0
    %1588 = vmatprep.subr.mxu0 0.0
    %1589 = vmatpush1.msra.mxu0 0.0
    %1590 = vmatprep.subr.mxu0 0.0
    %1591 = vmatpush1.msra.mxu0 0.0
    %1592 = vmatprep.subr.mxu0 0.0
    %1593 = vmatpush1.msra.mxu0 0.0
    %1594 = vmatprep.subr.mxu0 0.0
    %1595 = vmatpush1.msra.mxu0 0.0
    %1596 = vmatprep.subr.mxu0 0.0
    %1597 = vmatpush1.msra.mxu0 0.0
    %1598 = vmatprep.subr.mxu0 0.0
    %1599 = vmatpush1.msra.mxu0 0.0
    %1600 = vmatprep.subr.mxu0 0.0
    %1601 = vmatpush1.msra.mxu0 0.0
    %1602 = vmatprep.subr.mxu0 0.0
    %1603 = vmatpush1.msra.mxu0 0.0
    %1604 = vmatprep.subr.mxu0 0.0
    %1605 = vmatpush1.msra.mxu0 0.0
    %1606 = vmatprep.subr.mxu0 0.0
    %1607 = vmatpush1.msra.mxu0 0.0
    %1608 = vmatprep.subr.mxu0 0.0
    %1609 = vmatpush1.msra.mxu0 0.0
    %1610 = vmatprep.subr.mxu0 0.0
    %1611 = vmatpush1.msra.mxu0 0.0
    %1612 = vmatprep.subr.mxu0 0.0
    %1613 = vmatpush1.msra.mxu0 0.0
    %1614 = vmatprep.subr.mxu0 0.0
    %1615 = vmatpush1.msra.mxu0 0.0
    %1616 = vmatprep.subr.mxu0 0.0
    %1617 = vmatpush1.msra.mxu0 0.0
    %1618 = vmatprep.subr.mxu0 0.0
    %1619 = vmatpush1.msra.mxu0 0.0
    %1620 = vmatprep.subr.mxu0 0.0
    %1621 = vmatpush1.msra.mxu0 0.0
    %1622 = vmatprep.subr.mxu0 0.0
    %1623 = vmatpush1.msra.mxu0 0.0
    %1624 = vmatprep.mubr.f32.mxu0 0.0
    %1625 = vmatmul.mubr.f32.gmra.mrb[0].mxu0 %v1558
    %v1626 = vpop.f32.mrb[0].mxu0
    %v1627 = vadd.f32 %v1556, %v1626
    %v1628 = vpop.f32.mrb[0].mxu0
    %1629 = vdwg.mxu0
    %v1630 = vsel %vm1152, %v1627, 0.0
    %1631 = vadd.xlane.f32.xlu0 %v1630
    %v1632 = vpop.xlane.xlu0 %1631
    %v1633 = vmul.f32 %v1632, %v1156
    %v1634 = vsub.f32 %v1627, %v1633
    %v1635 = vmul.f32 %v1634, %v1634
    %v1636 = vsel %vm1152, %v1635, 0.0
    %1637 = vadd.xlane.f32.xlu0 %v1636
    %v1638 = vpop.xlane.xlu0 %1637
    %v1639 = vmul.f32 %v1638, %v1156
    %v1640 = vadd.f32 %v1639, 1e-05
    %v1641 = vrsqrt.pop %v1640
    %v1642 = vmul.f32 %v1634, %v1641
    %v1644 = vrot.slane %v1642, 1
    %v1647 = vadd.f32 %v1455, %v1642
    %v1648 = vadd.f32 %v1456, %v1644
    %s1649 = scalar_lea.vmem %s6, 96
    %v1650 = vld [vmem:[%s1649] sm:$0xff]
    %v1651 = vld [vmem:[%s1649 + $0x8] sm:$0xff]
    %s1652 = sld [smem:[#allocation3 + $0x6]]
    %v1653 = vstv %s1652
    %v1656 = vrot.slane %v1648, 7
    %v1657 = vsel %vm1078, %v1656, %v1647
    %v1658 = vsel %vm832, %v1657, 0
    %1660 = vmatprep.subr.mxu0 0.0
    %1661 = vmatpush1.msra.mxu0 %v1650
    %1662 = vmatprep.subr.mxu0 0.0
    %1663 = vmatpush1.msra.mxu0 %v1651
    %1664 = vmatprep.subr.mxu0 0.0
    %1665 = vmatpush1.msra.mxu0 0.0
    %1666 = vmatprep.subr.mxu0 0.0
    %1667 = vmatpush1.msra.mxu0 0.0
    %1668 = vmatprep.subr.mxu0 0.0
    %1669 = vmatpush1.msra.mxu0 0.0
    %1670 = vmatprep.subr.mxu0 0.0
    %1671 = vmatpush1.msra.mxu0 0.0
    %1672 = vmatprep.subr.mxu0 0.0
    %1673 = vmatpush1.msra.mxu0 0.0
    %1674 = vmatprep.subr.mxu0 0.0
    %1675 = vmatpush1.msra.mxu0 0.0
    %1676 = vmatprep.subr.mxu0 0.0
    %1677 = vmatpush1.msra.mxu0 0.0
    %1678 = vmatprep.subr.mxu0 0.0
    %1679 = vmatpush1.msra.mxu0 0.0
    %1680 = vmatprep.subr.mxu0 0.0
    %1681 = vmatpush1.msra.mxu0 0.0
    %1682 = vmatprep.subr.mxu0 0.0
    %1683 = vmatpush1.msra.mxu0 0.0
    %1684 = vmatprep.subr.mxu0 0.0
    %1685 = vmatpush1.msra.mxu0 0.0
    %1686 = vmatprep.subr.mxu0 0.0
    %1687 = vmatpush1.msra.mxu0 0.0
    %1688 = vmatprep.subr.mxu0 0.0
    %1689 = vmatpush1.msra.mxu0 0.0
    %1690 = vmatprep.subr.mxu0 0.0
    %1691 = vmatpush1.msra.mxu0 0.0
    %1692 = vmatprep.subr.mxu0 0.0
    %1693 = vmatpush1.msra.mxu0 0.0
    %1694 = vmatprep.subr.mxu0 0.0
    %1695 = vmatpush1.msra.mxu0 0.0
    %1696 = vmatprep.subr.mxu0 0.0
    %1697 = vmatpush1.msra.mxu0 0.0
    %1698 = vmatprep.subr.mxu0 0.0
    %1699 = vmatpush1.msra.mxu0 0.0
    %1700 = vmatprep.subr.mxu0 0.0
    %1701 = vmatpush1.msra.mxu0 0.0
    %1702 = vmatprep.subr.mxu0 0.0
    %1703 = vmatpush1.msra.mxu0 0.0
    %1704 = vmatprep.subr.mxu0 0.0
    %1705 = vmatpush1.msra.mxu0 0.0
    %1706 = vmatprep.subr.mxu0 0.0
    %1707 = vmatpush1.msra.mxu0 0.0
    %1708 = vmatprep.subr.mxu0 0.0
    %1709 = vmatpush1.msra.mxu0 0.0
    %1710 = vmatprep.subr.mxu0 0.0
    %1711 = vmatpush1.msra.mxu0 0.0
    %1712 = vmatprep.subr.mxu0 0.0
    %1713 = vmatpush1.msra.mxu0 0.0
    %1714 = vmatprep.subr.mxu0 0.0
    %1715 = vmatpush1.msra.mxu0 0.0
    %1716 = vmatprep.subr.mxu0 0.0
    %1717 = vmatpush1.msra.mxu0 0.0
    %1718 = vmatprep.subr.mxu0 0.0
    %1719 = vmatpush1.msra.mxu0 0.0
    %1720 = vmatprep.subr.mxu0 0.0
    %1721 = vmatpush1.msra.mxu0 0.0
    %1722 = vmatprep.subr.mxu0 0.0
    %1723 = vmatpush1.msra.mxu0 0.0
    %1724 = vmatprep.mubr.f32.mxu0 0.0
    %1725 = vmatmul.mubr.f32.gmra.mrb[0].mxu0 %v1658
    %v1726 = vpop.f32.mrb[0].mxu0
    %v1727 = vadd.f32 %v1653, %v1726
    %v1728 = vpop.f32.mrb[0].mxu0
    %1729 = vdwg.mxu0
    %v1730 = vsel %vm1152, %v1727, 0.0
    %1731 = vadd.xlane.f32.xlu0 %v1730
    %v1732 = vpop.xlane.xlu0 %1731
    %v1733 = vmul.f32 %v1732, %v1156
    %v1734 = vsub.f32 %v1727, %v1733
    %v1735 = vmul.f32 %v1734, %v1734
    %v1736 = vsel %vm1152, %v1735, 0.0
    %1737 = vadd.xlane.f32.xlu0 %v1736
    %v1738 = vpop.xlane.xlu0 %1737
    %v1739 = vmul.f32 %v1738, %v1156
    %v1740 = vadd.f32 %v1739, 1e-05
    %v1741 = vrsqrt.pop %v1740
    %v1742 = vmul.f32 %v1734, %v1741
    %v1743 = vmax.f32 %v1742, 0.0
    %s1744 = scalar_lea.vmem %s6, 112
    %v1745 = vld [vmem:[%s1744] sm:$0xff]
    %v1746 = vld [vmem:[%s1744 + $0x8] sm:$0xff]
    %s1747 = sld [smem:[#allocation3 + $0x7]]
    %v1748 = vstv %s1747
    %v1750 = vsel %vm832, %v1743, 0
    %1752 = vmatprep.subr.mxu0 0.0
    %1753 = vmatpush1.msra.mxu0 %v1745
    %1754 = vmatprep.subr.mxu0 0.0
    %1755 = vmatpush1.msra.mxu0 %v1746
    %1756 = vmatprep.subr.mxu0 0.0
    %1757 = vmatpush1.msra.mxu0 0.0
    %1758 = vmatprep.subr.mxu0 0.0
    %1759 = vmatpush1.msra.mxu0 0.0
    %1760 = vmatprep.subr.mxu0 0.0
    %1761 = vmatpush1.msra.mxu0 0.0
    %1762 = vmatprep.subr.mxu0 0.0
    %1763 = vmatpush1.msra.mxu0 0.0
    %1764 = vmatprep.subr.mxu0 0.0
    %1765 = vmatpush1.msra.mxu0 0.0
    %1766 = vmatprep.subr.mxu0 0.0
    %1767 = vmatpush1.msra.mxu0 0.0
    %1768 = vmatprep.subr.mxu0 0.0
    %1769 = vmatpush1.msra.mxu0 0.0
    %1770 = vmatprep.subr.mxu0 0.0
    %1771 = vmatpush1.msra.mxu0 0.0
    %1772 = vmatprep.subr.mxu0 0.0
    %1773 = vmatpush1.msra.mxu0 0.0
    %1774 = vmatprep.subr.mxu0 0.0
    %1775 = vmatpush1.msra.mxu0 0.0
    %1776 = vmatprep.subr.mxu0 0.0
    %1777 = vmatpush1.msra.mxu0 0.0
    %1778 = vmatprep.subr.mxu0 0.0
    %1779 = vmatpush1.msra.mxu0 0.0
    %1780 = vmatprep.subr.mxu0 0.0
    %1781 = vmatpush1.msra.mxu0 0.0
    %1782 = vmatprep.subr.mxu0 0.0
    %1783 = vmatpush1.msra.mxu0 0.0
    %1784 = vmatprep.subr.mxu0 0.0
    %1785 = vmatpush1.msra.mxu0 0.0
    %1786 = vmatprep.subr.mxu0 0.0
    %1787 = vmatpush1.msra.mxu0 0.0
    %1788 = vmatprep.subr.mxu0 0.0
    %1789 = vmatpush1.msra.mxu0 0.0
    %1790 = vmatprep.subr.mxu0 0.0
    %1791 = vmatpush1.msra.mxu0 0.0
    %1792 = vmatprep.subr.mxu0 0.0
    %1793 = vmatpush1.msra.mxu0 0.0
    %1794 = vmatprep.subr.mxu0 0.0
    %1795 = vmatpush1.msra.mxu0 0.0
    %1796 = vmatprep.subr.mxu0 0.0
    %1797 = vmatpush1.msra.mxu0 0.0
    %1798 = vmatprep.subr.mxu0 0.0
    %1799 = vmatpush1.msra.mxu0 0.0
    %1800 = vmatprep.subr.mxu0 0.0
    %1801 = vmatpush1.msra.mxu0 0.0
    %1802 = vmatprep.subr.mxu0 0.0
    %1803 = vmatpush1.msra.mxu0 0.0
    %1804 = vmatprep.subr.mxu0 0.0
    %1805 = vmatpush1.msra.mxu0 0.0
    %1806 = vmatprep.subr.mxu0 0.0
    %1807 = vmatpush1.msra.mxu0 0.0
    %1808 = vmatprep.subr.mxu0 0.0
    %1809 = vmatpush1.msra.mxu0 0.0
    %1810 = vmatprep.subr.mxu0 0.0
    %1811 = vmatpush1.msra.mxu0 0.0
    %1812 = vmatprep.subr.mxu0 0.0
    %1813 = vmatpush1.msra.mxu0 0.0
    %1814 = vmatprep.subr.mxu0 0.0
    %1815 = vmatpush1.msra.mxu0 0.0
    %1816 = vmatprep.mubr.f32.mxu0 0.0
    %1817 = vmatmul.mubr.f32.gmra.mrb[0].mxu0 %v1750
    %v1818 = vpop.f32.mrb[0].mxu0
    %v1819 = vadd.f32 %v1748, %v1818
    %v1820 = vpop.f32.mrb[0].mxu0
    %1821 = vdwg.mxu0
    %v1822 = vsel %vm1152, %v1819, 0.0
    %1823 = vadd.xlane.f32.xlu0 %v1822
    %v1824 = vpop.xlane.xlu0 %1823
    %v1825 = vmul.f32 %v1824, %v1156
    %v1826 = vsub.f32 %v1819, %v1825
    %v1827 = vmul.f32 %v1826, %v1826
    %v1828 = vsel %vm1152, %v1827, 0.0
    %1829 = vadd.xlane.f32.xlu0 %v1828
    %v1830 = vpop.xlane.xlu0 %1829
    %v1831 = vmul.f32 %v1830, %v1156
    %v1832 = vadd.f32 %v1831, 1e-05
    %v1833 = vrsqrt.pop %v1832
    %v1834 = vmul.f32 %v1826, %v1833
    %v1836 = vrot.slane %v1834, 1
    %v1839 = vadd.f32 %v1647, %v1834
    %v1840 = vadd.f32 %v1648, %v1836
    %v1843 = vrot.slane %v1840, 7
    %v1844 = vsel %vm1078, %v1843, %v1839
    %1846 = vst.msk [vmem:[%s9] sm:$0x3] %vm1152, %v1844
    // Predicated region
    $region42: #{discriminator_forward.1} parent=1 // pred_check
      _
    $region43: #{discriminator_forward.1} parent=1 // pred_check_branch
      %1848 = sbr.rel (0) target = $region45
    $region44: #{discriminator_forward.1} parent=1 // pred_region
      _
    $region45: #{discriminator_forward.1} parent=1 // pred_fallthru
      _
    // Predicated region
    $region46: #{discriminator_forward.1} parent=1 // pred_check
      _
    $region47: #{discriminator_forward.1} parent=1 // pred_check_branch
      %1850 = sbr.rel (0) target = $region49
    $region48: #{discriminator_forward.1} parent=1 // pred_region
      _
    $region49: #{discriminator_forward.1} parent=1 // pred_fallthru
      _
    %1851 = vsyncpa [#allocation4], 1

</llo_original>
